<compile_context>
chip_gen: v6e
topology: v6e:2x2x1
jax: 0.10.0
libtpu: 0.0.40
codegen_flags: <defaults>
</compile_context>

<pallas_src>
import functools

import jax
import jax.numpy as jnp
from jax.experimental import pallas as pl
from jax.experimental.pallas import tpu as pltpu


# -----------------------------------------------------------------------------
# Pallas kernel: fused conv + (folded bias/BN) + optional residual + optional ReLU
# -----------------------------------------------------------------------------
def _conv_bn_kernel(*refs, taps, stride, oh, ow, relu, has_res):
    """Processes one batch element per grid step.

    refs (in order):
      xph_ref  : [stride*stride, HPp, WPp, Cin]  bf16  phase-split padded input
      w_ref    : [KH*KW, Cin, Cout]              bf16  BN-scale-folded weights
      shift_ref: [1, Cout]                       f32   folded conv-bias/BN shift
      res_ref  : [OH*OW, Cout]                   f32   (only if has_res)
      o_ref    : [OH*OW, Cout]                   f32
    """
    if has_res:
        xph_ref, w_ref, shift_ref, res_ref, o_ref = refs
    else:
        xph_ref, w_ref, shift_ref, o_ref = refs
        res_ref = None

    cin = xph_ref.shape[-1]
    cout = o_ref.shape[-1]

    # Load each phase once (tiny blocks; unused phases are dead-code eliminated).
    phases = [xph_ref[i] for i in range(stride * stride)]  # each [HPp, WPp, Cin]

    acc = jnp.zeros((oh * ow, cout), jnp.float32)
    # Unrolled per-tap accumulation: KH*KW small MXU dots into an f32 accumulator.
    for t, (kh, kw) in enumerate(taps):
        ph = (kh % stride) * stride + (kw % stride)
        r0, c0 = kh // stride, kw // stride
        patch = phases[ph][r0:r0 + oh, c0:c0 + ow, :]       # [OH, OW, Cin] bf16
        a = patch.reshape(oh * ow, cin)
        acc = acc + jnp.dot(a, w_ref[t], preferred_element_type=jnp.float32)

    y = acc + shift_ref[...]          # fused conv-bias + BatchNorm affine
    if has_res:
        y = y + res_ref[...]          # fused residual add
    if relu:
        y = jnp.maximum(y, 0.0)       # fused ReLU
    o_ref[...] = y


# -----------------------------------------------------------------------------
# Wrapper: layout plumbing (padding + phase split) + pallas_call
# -----------------------------------------------------------------------------
def _fold_bn(p, eps=1e-5):
    """Fold conv bias + eval-mode BatchNorm into (bf16 weights, f32 shift)."""
    scale = p["gamma"] * jax.lax.rsqrt(p["var"] + eps)
    w_folded = (p["w"] * scale).astype(jnp.bfloat16)                 # [KH,KW,Cin,Cout]
    shift = (p["beta"] + (p["b"] - p["mean"]) * scale).astype(jnp.float32)
    return w_folded, shift


def conv_bn_act(x, p, *, stride, pad, relu, residual=None, eps=1e-5):
    """Fused conv + BN (+ residual add) (+ ReLU).  x: [N, H, W, Cin] f32 NHWC."""
    N, H, W, Cin = x.shape
    KH, KW, _, Cout = p["w"].shape
    s = stride
    OH = (H + 2 * pad - KH) // s + 1
    OW = (W + 2 * pad - KW) // s + 1

    w_folded, shift = _fold_bn(p, eps)
    w_mat = w_folded.reshape(KH * KW, Cin, Cout)
    shift = shift.reshape(1, Cout)

    # Pad once, then split into s*s phases so every conv tap is a unit-stride
    # offset slice in-kernel (1x activation rewrite; no KH*KW im2col blow-up).
    xp = jnp.pad(x, ((0, 0), (pad, pad), (pad, pad), (0, 0)))
    HP, WP = H + 2 * pad, W + 2 * pad
    HPp, WPp = -(-HP // s), -(-WP // s)
    xp = jnp.pad(xp, ((0, 0), (0, HPp * s - HP), (0, WPp * s - WP), (0, 0)))
    phases = jnp.stack(
        [xp[:, ph::s, pw::s, :] for ph in range(s) for pw in range(s)], axis=1
    ).astype(jnp.bfloat16)                                # [N, s*s, HPp, WPp, Cin]
    phases = phases.reshape(N * s * s, HPp, WPp, Cin)

    taps = tuple((kh, kw) for kh in range(KH) for kw in range(KW))
    has_res = residual is not None

    in_specs = [
        pl.BlockSpec((s * s, HPp, WPp, Cin), lambda n: (n, 0, 0, 0)),
        pl.BlockSpec((KH * KW, Cin, Cout), lambda n: (0, 0, 0)),
        pl.BlockSpec((1, Cout), lambda n: (0, 0)),
    ]
    args = [phases, w_mat, shift]
    if has_res:
        in_specs.append(pl.BlockSpec((None, OH * OW, Cout), lambda n: (n, 0, 0)))
        args.append(residual.astype(jnp.float32).reshape(N, OH * OW, Cout))

    kernel = functools.partial(
        _conv_bn_kernel, taps=taps, stride=s, oh=OH, ow=OW, relu=relu, has_res=has_res
    )
    out = pl.pallas_call(
        kernel,
        out_shape=jax.ShapeDtypeStruct((N, OH * OW, Cout), jnp.float32),
        grid=(N,),
        in_specs=in_specs,
        out_specs=pl.BlockSpec((None, OH * OW, Cout), lambda n: (n, 0, 0)),
        compiler_params=pltpu.CompilerParams(dimension_semantics=("parallel",)),
    )(*args)
    return out.reshape(N, OH, OW, Cout)


# -----------------------------------------------------------------------------
# ResidualBlock forward (Pallas) — matches the PyTorch module semantics
# -----------------------------------------------------------------------------
def residual_block(x, p, *, stride):
    """x: [N, H, W, Cin] NHWC float32."""
    if "shortcut" in p:       # in_channels != out_channels -> 1x1 conv + BN branch
        r = conv_bn_act(x, p["shortcut"], stride=stride, pad=0, relu=False)
    else:                     # identity residual branch
        r = x
    y = conv_bn_act(x, p["conv1"], stride=stride, pad=1, relu=True)
    # conv2 + BN2 with the residual add and the block's final ReLU fused into the
    # matmul epilogue (no separate add_relu kernel / HBM round trip).
    return conv_bn_act(y, p["conv2"], stride=1, pad=1, relu=True, residual=r)


@functools.partial(jax.jit, static_argnames=("stride",))
def residual_block_nchw(x_nchw, p, stride):
    """PyTorch-layout entry point: NCHW in, NCHW out."""
    x = jnp.transpose(x_nchw, (0, 2, 3, 1)).astype(jnp.float32)
    y = residual_block(x, p, stride=stride)
    return jnp.transpose(y, (0, 3, 1, 2))


# -----------------------------------------------------------------------------
# Pure-JAX reference (same bf16-rounded operands, f32 accumulation)
# -----------------------------------------------------------------------------
def _conv_bn_ref(x, p, *, stride, pad, relu, residual=None, eps=1e-5):
    w_folded, shift = _fold_bn(p, eps)
    y = jax.lax.conv_general_dilated(
        x.astype(jnp.bfloat16).astype(jnp.float32),
        w_folded.astype(jnp.float32),
        window_strides=(stride, stride),
        padding=((pad, pad), (pad, pad)),
        dimension_numbers=("NHWC", "HWIO", "NHWC"),
        precision=jax.lax.Precision.HIGHEST,
    )
    y = y + shift
    if residual is not None:
        y = y + residual
    if relu:
        y = jnp.maximum(y, 0.0)
    return y


def residual_block_ref(x, p, *, stride):
    if "shortcut" in p:
        r = _conv_bn_ref(x, p["shortcut"], stride=stride, pad=0, relu=False)
    else:
        r = x
    y = _conv_bn_ref(x, p["conv1"], stride=stride, pad=1, relu=True)
    return _conv_bn_ref(y, p["conv2"], stride=1, pad=1, relu=True, residual=r)


# -----------------------------------------------------------------------------
# Deterministic synthetic parameters
# -----------------------------------------------------------------------------
def _make_conv_bn_params(key, kh, kw, cin, cout):
    ks = jax.random.split(key, 6)
    return dict(
        w=0.05 * jax.random.normal(ks[0], (kh, kw, cin, cout), jnp.float32),
        b=0.01 * jax.random.normal(ks[1], (cout,), jnp.float32),
        gamma=1.0 + 0.1 * jax.random.normal(ks[2], (cout,), jnp.float32),
        beta=0.1 * jax.random.normal(ks[3], (cout,), jnp.float32),
        mean=0.1 * jax.random.normal(ks[4], (cout,), jnp.float32),
        var=1.0 + 0.1 * jnp.abs(jax.random.normal(ks[5], (cout,), jnp.float32)),
    )


def make_residual_block_params(key, in_ch, out_ch):
    k1, k2, k3 = jax.random.split(key, 3)
    p = {
        "conv1": _make_conv_bn_params(k1, 3, 3, in_ch, out_ch),
        "conv2": _make_conv_bn_params(k2, 3, 3, out_ch, out_ch),
    }
    if in_ch != out_ch:  # matches ResidualBlock.conv_1x1 condition
        p["shortcut"] = _make_conv_bn_params(k3, 1, 1, in_ch, out_ch)
    return p


# -----------------------------------------------------------------------------
if __name__ == "__main__":
    key = jax.random.PRNGKey(0)
    k_pa, k_pb, k_x = jax.random.split(key, 3)

    N, Cin, H, W = 2, 4, 16, 16
    Cout = 16

    # Block A: in_channels != out_channels, stride 2 -> 1x1-conv residual branch.
    params_a = make_residual_block_params(k_pa, Cin, Cout)
    # Block B: in_channels == out_channels, stride 1 -> identity residual branch.
    params_b = make_residual_block_params(k_pb, Cout, Cout)

    x = jax.random.normal(k_x, (N, Cin, H, W), jnp.float32)  # NCHW like PyTorch

    y_a = residual_block_nchw(x, params_a, stride=2)
    y_b = residual_block_nchw(y_a, params_b, stride=1)
    y_b = jax.block_until_ready(y_b)

    assert y_a.shape == (N, Cout, H // 2, W // 2), y_a.shape
    assert y_b.shape == (N, Cout, H // 2, W // 2), y_b.shape
    assert bool(jnp.all(jnp.isfinite(y_b)))

    # Reference check (pure JAX, same bf16-rounded operands, f32 accumulation).
    x_nhwc = jnp.transpose(x, (0, 2, 3, 1))
    r_a = residual_block_ref(x_nhwc, params_a, stride=2)
    r_b = residual_block_ref(r_a, params_b, stride=1)
    assert jnp.allclose(jnp.transpose(y_a, (0, 2, 3, 1)), r_a, atol=2e-2, rtol=2e-2)
    assert jnp.allclose(jnp.transpose(y_b, (0, 2, 3, 1)), r_b, atol=2e-2, rtol=2e-2)

    print("KERNEL_OK")
</pallas_src>

<mosaic_0001>
module attributes {stable_mosaic.version = 11 : i64} {
  func.func @_conv_bn_kernel(%arg0: i32, %arg1: memref<4x9x9x4xbf16, #tpu.memory_space<vmem>>, %arg2: memref<9x4x16xbf16, #tpu.memory_space<vmem>>, %arg3: memref<1x16xf32, #tpu.memory_space<vmem>>, %arg4: memref<1x64x16xf32, #tpu.memory_space<vmem>>) attributes {dimension_semantics = [#tpu.dimension_semantics<parallel>], iteration_bounds = array<i64: 2>, scalar_prefetch = 0 : i64, scratch_operands = 0 : i64, tpu.core_type = #tpu.core_type<tc>, window_params = [{transform_indices = @transform_0, window_bounds = array<i64: 4, 9, 9, 4>}, {pipeline_mode = #tpu.pipeline_mode<synchronous>, transform_indices = @transform_1, window_bounds = array<i64: 9, 4, 16>}, {pipeline_mode = #tpu.pipeline_mode<synchronous>, transform_indices = @transform_2, window_bounds = array<i64: 1, 16>}, {transform_indices = @transform_3, window_bounds = array<i64: 1, 64, 16>}]} {
    %c0 = arith.constant 0 : index
    %c0_0 = arith.constant 0 : index
    %c0_1 = arith.constant 0 : index
    %c0_2 = arith.constant 0 : index
    %0 = vector.load %arg1[%c0, %c0_0, %c0_1, %c0_2] : memref<4x9x9x4xbf16, #tpu.memory_space<vmem>>, vector<1x9x9x4xbf16>
    %1 = vector.shape_cast %0 : vector<1x9x9x4xbf16> to vector<9x9x4xbf16>
    %c1 = arith.constant 1 : index
    %c0_3 = arith.constant 0 : index
    %c0_4 = arith.constant 0 : index
    %c0_5 = arith.constant 0 : index
    %2 = vector.load %arg1[%c1, %c0_3, %c0_4, %c0_5] : memref<4x9x9x4xbf16, #tpu.memory_space<vmem>>, vector<1x9x9x4xbf16>
    %3 = vector.shape_cast %2 : vector<1x9x9x4xbf16> to vector<9x9x4xbf16>
    %c2 = arith.constant 2 : index
    %c0_6 = arith.constant 0 : index
    %c0_7 = arith.constant 0 : index
    %c0_8 = arith.constant 0 : index
    %4 = vector.load %arg1[%c2, %c0_6, %c0_7, %c0_8] : memref<4x9x9x4xbf16, #tpu.memory_space<vmem>>, vector<1x9x9x4xbf16>
    %5 = vector.shape_cast %4 : vector<1x9x9x4xbf16> to vector<9x9x4xbf16>
    %c3 = arith.constant 3 : index
    %c0_9 = arith.constant 0 : index
    %c0_10 = arith.constant 0 : index
    %c0_11 = arith.constant 0 : index
    %6 = vector.load %arg1[%c3, %c0_9, %c0_10, %c0_11] : memref<4x9x9x4xbf16, #tpu.memory_space<vmem>>, vector<1x9x9x4xbf16>
    %7 = vector.shape_cast %6 : vector<1x9x9x4xbf16> to vector<9x9x4xbf16>
    %cst = arith.constant 0.000000e+00 : f32
    %8 = vector.broadcast %cst : f32 to vector<64x16xf32>
    %9 = vector.extract_strided_slice %1 {offsets = [0, 0, 0], sizes = [8, 8, 4], strides = [1, 1, 1]} : vector<9x9x4xbf16> to vector<8x8x4xbf16>
    %10 = vector.shape_cast %9 : vector<8x8x4xbf16> to vector<64x4xbf16>
    %c0_12 = arith.constant 0 : index
    %c0_13 = arith.constant 0 : index
    %c0_14 = arith.constant 0 : index
    %11 = vector.load %arg2[%c0_12, %c0_13, %c0_14] : memref<9x4x16xbf16, #tpu.memory_space<vmem>>, vector<1x4x16xbf16>
    %12 = vector.shape_cast %11 : vector<1x4x16xbf16> to vector<4x16xbf16>
    %cst_15 = arith.constant dense<0.000000e+00> : vector<64x16xf32>
    %13 = tpu.matmul %10, %12, %cst_15 {dimension_numbers = #tpu.dot_dimension_numbers<[1], [0], [0], [1], [0, 0, 1, 1], [], []>} : vector<64x4xbf16>, vector<4x16xbf16>, vector<64x16xf32> -> vector<64x16xf32>
    %14 = arith.addf %8, %13 : vector<64x16xf32>
    %15 = vector.extract_strided_slice %3 {offsets = [0, 0, 0], sizes = [8, 8, 4], strides = [1, 1, 1]} : vector<9x9x4xbf16> to vector<8x8x4xbf16>
    %16 = vector.shape_cast %15 : vector<8x8x4xbf16> to vector<64x4xbf16>
    %c1_16 = arith.constant 1 : index
    %c0_17 = arith.constant 0 : index
    %c0_18 = arith.constant 0 : index
    %17 = vector.load %arg2[%c1_16, %c0_17, %c0_18] : memref<9x4x16xbf16, #tpu.memory_space<vmem>>, vector<1x4x16xbf16>
    %18 = vector.shape_cast %17 : vector<1x4x16xbf16> to vector<4x16xbf16>
    %cst_19 = arith.constant dense<0.000000e+00> : vector<64x16xf32>
    %19 = tpu.matmul %16, %18, %cst_19 {dimension_numbers = #tpu.dot_dimension_numbers<[1], [0], [0], [1], [0, 0, 1, 1], [], []>} : vector<64x4xbf16>, vector<4x16xbf16>, vector<64x16xf32> -> vector<64x16xf32>
    %20 = arith.addf %14, %19 : vector<64x16xf32>
    %21 = vector.extract_strided_slice %1 {offsets = [0, 1, 0], sizes = [8, 8, 4], strides = [1, 1, 1]} : vector<9x9x4xbf16> to vector<8x8x4xbf16>
    %22 = vector.shape_cast %21 : vector<8x8x4xbf16> to vector<64x4xbf16>
    %c2_20 = arith.constant 2 : index
    %c0_21 = arith.constant 0 : index
    %c0_22 = arith.constant 0 : index
    %23 = vector.load %arg2[%c2_20, %c0_21, %c0_22] : memref<9x4x16xbf16, #tpu.memory_space<vmem>>, vector<1x4x16xbf16>
    %24 = vector.shape_cast %23 : vector<1x4x16xbf16> to vector<4x16xbf16>
    %cst_23 = arith.constant dense<0.000000e+00> : vector<64x16xf32>
    %25 = tpu.matmul %22, %24, %cst_23 {dimension_numbers = #tpu.dot_dimension_numbers<[1], [0], [0], [1], [0, 0, 1, 1], [], []>} : vector<64x4xbf16>, vector<4x16xbf16>, vector<64x16xf32> -> vector<64x16xf32>
    %26 = arith.addf %20, %25 : vector<64x16xf32>
    %27 = vector.extract_strided_slice %5 {offsets = [0, 0, 0], sizes = [8, 8, 4], strides = [1, 1, 1]} : vector<9x9x4xbf16> to vector<8x8x4xbf16>
    %28 = vector.shape_cast %27 : vector<8x8x4xbf16> to vector<64x4xbf16>
    %c3_24 = arith.constant 3 : index
    %c0_25 = arith.constant 0 : index
    %c0_26 = arith.constant 0 : index
    %29 = vector.load %arg2[%c3_24, %c0_25, %c0_26] : memref<9x4x16xbf16, #tpu.memory_space<vmem>>, vector<1x4x16xbf16>
    %30 = vector.shape_cast %29 : vector<1x4x16xbf16> to vector<4x16xbf16>
    %cst_27 = arith.constant dense<0.000000e+00> : vector<64x16xf32>
    %31 = tpu.matmul %28, %30, %cst_27 {dimension_numbers = #tpu.dot_dimension_numbers<[1], [0], [0], [1], [0, 0, 1, 1], [], []>} : vector<64x4xbf16>, vector<4x16xbf16>, vector<64x16xf32> -> vector<64x16xf32>
    %32 = arith.addf %26, %31 : vector<64x16xf32>
    %33 = vector.extract_strided_slice %7 {offsets = [0, 0, 0], sizes = [8, 8, 4], strides = [1, 1, 1]} : vector<9x9x4xbf16> to vector<8x8x4xbf16>
    %34 = vector.shape_cast %33 : vector<8x8x4xbf16> to vector<64x4xbf16>
    %c4 = arith.constant 4 : index
    %c0_28 = arith.constant 0 : index
    %c0_29 = arith.constant 0 : index
    %35 = vector.load %arg2[%c4, %c0_28, %c0_29] : memref<9x4x16xbf16, #tpu.memory_space<vmem>>, vector<1x4x16xbf16>
    %36 = vector.shape_cast %35 : vector<1x4x16xbf16> to vector<4x16xbf16>
    %cst_30 = arith.constant dense<0.000000e+00> : vector<64x16xf32>
    %37 = tpu.matmul %34, %36, %cst_30 {dimension_numbers = #tpu.dot_dimension_numbers<[1], [0], [0], [1], [0, 0, 1, 1], [], []>} : vector<64x4xbf16>, vector<4x16xbf16>, vector<64x16xf32> -> vector<64x16xf32>
    %38 = arith.addf %32, %37 : vector<64x16xf32>
    %39 = vector.extract_strided_slice %5 {offsets = [0, 1, 0], sizes = [8, 8, 4], strides = [1, 1, 1]} : vector<9x9x4xbf16> to vector<8x8x4xbf16>
    %40 = vector.shape_cast %39 : vector<8x8x4xbf16> to vector<64x4xbf16>
    %c5 = arith.constant 5 : index
    %c0_31 = arith.constant 0 : index
    %c0_32 = arith.constant 0 : index
    %41 = vector.load %arg2[%c5, %c0_31, %c0_32] : memref<9x4x16xbf16, #tpu.memory_space<vmem>>, vector<1x4x16xbf16>
    %42 = vector.shape_cast %41 : vector<1x4x16xbf16> to vector<4x16xbf16>
    %cst_33 = arith.constant dense<0.000000e+00> : vector<64x16xf32>
    %43 = tpu.matmul %40, %42, %cst_33 {dimension_numbers = #tpu.dot_dimension_numbers<[1], [0], [0], [1], [0, 0, 1, 1], [], []>} : vector<64x4xbf16>, vector<4x16xbf16>, vector<64x16xf32> -> vector<64x16xf32>
    %44 = arith.addf %38, %43 : vector<64x16xf32>
    %45 = vector.extract_strided_slice %1 {offsets = [1, 0, 0], sizes = [8, 8, 4], strides = [1, 1, 1]} : vector<9x9x4xbf16> to vector<8x8x4xbf16>
    %46 = vector.shape_cast %45 : vector<8x8x4xbf16> to vector<64x4xbf16>
    %c6 = arith.constant 6 : index
    %c0_34 = arith.constant 0 : index
    %c0_35 = arith.constant 0 : index
    %47 = vector.load %arg2[%c6, %c0_34, %c0_35] : memref<9x4x16xbf16, #tpu.memory_space<vmem>>, vector<1x4x16xbf16>
    %48 = vector.shape_cast %47 : vector<1x4x16xbf16> to vector<4x16xbf16>
    %cst_36 = arith.constant dense<0.000000e+00> : vector<64x16xf32>
    %49 = tpu.matmul %46, %48, %cst_36 {dimension_numbers = #tpu.dot_dimension_numbers<[1], [0], [0], [1], [0, 0, 1, 1], [], []>} : vector<64x4xbf16>, vector<4x16xbf16>, vector<64x16xf32> -> vector<64x16xf32>
    %50 = arith.addf %44, %49 : vector<64x16xf32>
    %51 = vector.extract_strided_slice %3 {offsets = [1, 0, 0], sizes = [8, 8, 4], strides = [1, 1, 1]} : vector<9x9x4xbf16> to vector<8x8x4xbf16>
    %52 = vector.shape_cast %51 : vector<8x8x4xbf16> to vector<64x4xbf16>
    %c7 = arith.constant 7 : index
    %c0_37 = arith.constant 0 : index
    %c0_38 = arith.constant 0 : index
    %53 = vector.load %arg2[%c7, %c0_37, %c0_38] : memref<9x4x16xbf16, #tpu.memory_space<vmem>>, vector<1x4x16xbf16>
    %54 = vector.shape_cast %53 : vector<1x4x16xbf16> to vector<4x16xbf16>
    %cst_39 = arith.constant dense<0.000000e+00> : vector<64x16xf32>
    %55 = tpu.matmul %52, %54, %cst_39 {dimension_numbers = #tpu.dot_dimension_numbers<[1], [0], [0], [1], [0, 0, 1, 1], [], []>} : vector<64x4xbf16>, vector<4x16xbf16>, vector<64x16xf32> -> vector<64x16xf32>
    %56 = arith.addf %50, %55 : vector<64x16xf32>
    %57 = vector.extract_strided_slice %1 {offsets = [1, 1, 0], sizes = [8, 8, 4], strides = [1, 1, 1]} : vector<9x9x4xbf16> to vector<8x8x4xbf16>
    %58 = vector.shape_cast %57 : vector<8x8x4xbf16> to vector<64x4xbf16>
    %c8 = arith.constant 8 : index
    %c0_40 = arith.constant 0 : index
    %c0_41 = arith.constant 0 : index
    %59 = vector.load %arg2[%c8, %c0_40, %c0_41] : memref<9x4x16xbf16, #tpu.memory_space<vmem>>, vector<1x4x16xbf16>
    %60 = vector.shape_cast %59 : vector<1x4x16xbf16> to vector<4x16xbf16>
    %cst_42 = arith.constant dense<0.000000e+00> : vector<64x16xf32>
    %61 = tpu.matmul %58, %60, %cst_42 {dimension_numbers = #tpu.dot_dimension_numbers<[1], [0], [0], [1], [0, 0, 1, 1], [], []>} : vector<64x4xbf16>, vector<4x16xbf16>, vector<64x16xf32> -> vector<64x16xf32>
    %62 = arith.addf %56, %61 : vector<64x16xf32>
    %c0_43 = arith.constant 0 : index
    %c0_44 = arith.constant 0 : index
    %63 = vector.load %arg3[%c0_43, %c0_44] : memref<1x16xf32, #tpu.memory_space<vmem>>, vector<1x16xf32>
    %64 = vector.broadcast %63 : vector<1x16xf32> to vector<64x16xf32>
    %65 = arith.addf %62, %64 : vector<64x16xf32>
    %cst_45 = arith.constant 0.000000e+00 : f32
    %66 = vector.broadcast %cst_45 : f32 to vector<64x16xf32>
    %67 = arith.maximumf %65, %66 : vector<64x16xf32>
    %c0_46 = arith.constant 0 : index
    %c0_47 = arith.constant 0 : index
    %c0_48 = arith.constant 0 : index
    %68 = vector.load %arg4[%c0_46, %c0_47, %c0_48] : memref<1x64x16xf32, #tpu.memory_space<vmem>>, vector<1x64x16xf32>
    %69 = vector.shape_cast %68 : vector<1x64x16xf32> to vector<64x16xf32>
    %70 = vector.shape_cast %67 : vector<64x16xf32> to vector<1x64x16xf32>
    tpu.vector_store %arg4[%c0_46, %c0_47, %c0_48], %70 {strides = array<i32>} : memref<1x64x16xf32, #tpu.memory_space<vmem>>, vector<1x64x16xf32>,
    return
  }
  func.func @transform_0(%arg0: i32) -> (i32, i32, i32, i32) {
    %c0_i32 = arith.constant 0 : i32
    %c0_i32_0 = arith.constant 0 : i32
    %c0_i32_1 = arith.constant 0 : i32
    %c0_i32_2 = arith.constant 0 : i32
    return %arg0, %c0_i32, %c0_i32_0, %c0_i32_1 : i32, i32, i32, i32
  }
  func.func @transform_1(%arg0: i32) -> (i32, i32, i32) {
    %c0_i32 = arith.constant 0 : i32
    %c0_i32_0 = arith.constant 0 : i32
    %c0_i32_1 = arith.constant 0 : i32
    %c0_i32_2 = arith.constant 0 : i32
    return %c0_i32, %c0_i32_0, %c0_i32_1 : i32, i32, i32
  }
  func.func @transform_2(%arg0: i32) -> (i32, i32) {
    %c0_i32 = arith.constant 0 : i32
    %c0_i32_0 = arith.constant 0 : i32
    %c0_i32_1 = arith.constant 0 : i32
    return %c0_i32, %c0_i32_0 : i32, i32
  }
  func.func @transform_3(%arg0: i32) -> (i32, i32, i32) {
    %c0_i32 = arith.constant 0 : i32
    %c0_i32_0 = arith.constant 0 : i32
    %c0_i32_1 = arith.constant 0 : i32
    return %arg0, %c0_i32, %c0_i32_0 : i32, i32, i32
  }
}

module attributes {stable_mosaic.version = 11 : i64} {
  func.func @_conv_bn_kernel(%arg0: i32, %arg1: memref<4x8x8x4xbf16, #tpu.memory_space<vmem>>, %arg2: memref<1x4x16xbf16, #tpu.memory_space<vmem>>, %arg3: memref<1x16xf32, #tpu.memory_space<vmem>>, %arg4: memref<1x64x16xf32, #tpu.memory_space<vmem>>) attributes {dimension_semantics = [#tpu.dimension_semantics<parallel>], iteration_bounds = array<i64: 2>, scalar_prefetch = 0 : i64, scratch_operands = 0 : i64, tpu.core_type = #tpu.core_type<tc>, window_params = [{transform_indices = @transform_0, window_bounds = array<i64: 4, 8, 8, 4>}, {pipeline_mode = #tpu.pipeline_mode<synchronous>, transform_indices = @transform_1, window_bounds = array<i64: 1, 4, 16>}, {pipeline_mode = #tpu.pipeline_mode<synchronous>, transform_indices = @transform_2, window_bounds = array<i64: 1, 16>}, {transform_indices = @transform_3, window_bounds = array<i64: 1, 64, 16>}]} {
    %c0 = arith.constant 0 : index
    %c0_0 = arith.constant 0 : index
    %c0_1 = arith.constant 0 : index
    %c0_2 = arith.constant 0 : index
    %0 = vector.load %arg1[%c0, %c0_0, %c0_1, %c0_2] : memref<4x8x8x4xbf16, #tpu.memory_space<vmem>>, vector<1x8x8x4xbf16>
    %1 = vector.shape_cast %0 : vector<1x8x8x4xbf16> to vector<8x8x4xbf16>
    %cst = arith.constant 0.000000e+00 : f32
    %2 = vector.broadcast %cst : f32 to vector<64x16xf32>
    %3 = vector.shape_cast %1 : vector<8x8x4xbf16> to vector<64x4xbf16>
    %c0_3 = arith.constant 0 : index
    %c0_4 = arith.constant 0 : index
    %c0_5 = arith.constant 0 : index
    %4 = vector.load %arg2[%c0_3, %c0_4, %c0_5] : memref<1x4x16xbf16, #tpu.memory_space<vmem>>, vector<1x4x16xbf16>
    %5 = vector.shape_cast %4 : vector<1x4x16xbf16> to vector<4x16xbf16>
    %cst_6 = arith.constant dense<0.000000e+00> : vector<64x16xf32>
    %6 = tpu.matmul %3, %5, %cst_6 {dimension_numbers = #tpu.dot_dimension_numbers<[1], [0], [0], [1], [0, 0, 1, 1], [], []>} : vector<64x4xbf16>, vector<4x16xbf16>, vector<64x16xf32> -> vector<64x16xf32>
    %7 = arith.addf %2, %6 : vector<64x16xf32>
    %c0_7 = arith.constant 0 : index
    %c0_8 = arith.constant 0 : index
    %8 = vector.load %arg3[%c0_7, %c0_8] : memref<1x16xf32, #tpu.memory_space<vmem>>, vector<1x16xf32>
    %9 = vector.broadcast %8 : vector<1x16xf32> to vector<64x16xf32>
    %10 = arith.addf %7, %9 : vector<64x16xf32>
    %c0_9 = arith.constant 0 : index
    %c0_10 = arith.constant 0 : index
    %c0_11 = arith.constant 0 : index
    %11 = vector.load %arg4[%c0_9, %c0_10, %c0_11] : memref<1x64x16xf32, #tpu.memory_space<vmem>>, vector<1x64x16xf32>
    %12 = vector.shape_cast %11 : vector<1x64x16xf32> to vector<64x16xf32>
    %13 = vector.shape_cast %10 : vector<64x16xf32> to vector<1x64x16xf32>
    tpu.vector_store %arg4[%c0_9, %c0_10, %c0_11], %13 {strides = array<i32>} : memref<1x64x16xf32, #tpu.memory_space<vmem>>, vector<1x64x16xf32>,
    return
  }
  func.func @transform_0(%arg0: i32) -> (i32, i32, i32, i32) {
    %c0_i32 = arith.constant 0 : i32
    %c0_i32_0 = arith.constant 0 : i32
    %c0_i32_1 = arith.constant 0 : i32
    %c0_i32_2 = arith.constant 0 : i32
    return %arg0, %c0_i32, %c0_i32_0, %c0_i32_1 : i32, i32, i32, i32
  }
  func.func @transform_1(%arg0: i32) -> (i32, i32, i32) {
    %c0_i32 = arith.constant 0 : i32
    %c0_i32_0 = arith.constant 0 : i32
    %c0_i32_1 = arith.constant 0 : i32
    %c0_i32_2 = arith.constant 0 : i32
    return %c0_i32, %c0_i32_0, %c0_i32_1 : i32, i32, i32
  }
  func.func @transform_2(%arg0: i32) -> (i32, i32) {
    %c0_i32 = arith.constant 0 : i32
    %c0_i32_0 = arith.constant 0 : i32
    %c0_i32_1 = arith.constant 0 : i32
    return %c0_i32, %c0_i32_0 : i32, i32
  }
  func.func @transform_3(%arg0: i32) -> (i32, i32, i32) {
    %c0_i32 = arith.constant 0 : i32
    %c0_i32_0 = arith.constant 0 : i32
    %c0_i32_1 = arith.constant 0 : i32
    return %arg0, %c0_i32, %c0_i32_0 : i32, i32, i32
  }
}

module attributes {stable_mosaic.version = 11 : i64} {
  func.func @_conv_bn_kernel(%arg0: i32, %arg1: memref<1x10x10x16xbf16, #tpu.memory_space<vmem>>, %arg2: memref<9x16x16xbf16, #tpu.memory_space<vmem>>, %arg3: memref<1x16xf32, #tpu.memory_space<vmem>>, %arg4: memref<1x64x16xf32, #tpu.memory_space<vmem>>, %arg5: memref<1x64x16xf32, #tpu.memory_space<vmem>>) attributes {dimension_semantics = [#tpu.dimension_semantics<parallel>], iteration_bounds = array<i64: 2>, scalar_prefetch = 0 : i64, scratch_operands = 0 : i64, tpu.core_type = #tpu.core_type<tc>, window_params = [{transform_indices = @transform_0, window_bounds = array<i64: 1, 10, 10, 16>}, {pipeline_mode = #tpu.pipeline_mode<synchronous>, transform_indices = @transform_1, window_bounds = array<i64: 9, 16, 16>}, {pipeline_mode = #tpu.pipeline_mode<synchronous>, transform_indices = @transform_2, window_bounds = array<i64: 1, 16>}, {transform_indices = @transform_3, window_bounds = array<i64: 1, 64, 16>}, {transform_indices = @transform_4, window_bounds = array<i64: 1, 64, 16>}]} {
    %c0 = arith.constant 0 : index
    %c0_0 = arith.constant 0 : index
    %c0_1 = arith.constant 0 : index
    %c0_2 = arith.constant 0 : index
    %0 = vector.load %arg1[%c0, %c0_0, %c0_1, %c0_2] : memref<1x10x10x16xbf16, #tpu.memory_space<vmem>>, vector<1x10x10x16xbf16>
    %1 = vector.shape_cast %0 : vector<1x10x10x16xbf16> to vector<10x10x16xbf16>
    %cst = arith.constant 0.000000e+00 : f32
    %2 = vector.broadcast %cst : f32 to vector<64x16xf32>
    %3 = vector.extract_strided_slice %1 {offsets = [0, 0, 0], sizes = [8, 8, 16], strides = [1, 1, 1]} : vector<10x10x16xbf16> to vector<8x8x16xbf16>
    %4 = vector.shape_cast %3 : vector<8x8x16xbf16> to vector<64x16xbf16>
    %c0_3 = arith.constant 0 : index
    %c0_4 = arith.constant 0 : index
    %c0_5 = arith.constant 0 : index
    %5 = vector.load %arg2[%c0_3, %c0_4, %c0_5] : memref<9x16x16xbf16, #tpu.memory_space<vmem>>, vector<1x16x16xbf16>
    %6 = vector.shape_cast %5 : vector<1x16x16xbf16> to vector<16x16xbf16>
    %cst_6 = arith.constant dense<0.000000e+00> : vector<64x16xf32>
    %7 = tpu.matmul %4, %6, %cst_6 {dimension_numbers = #tpu.dot_dimension_numbers<[1], [0], [0], [1], [0, 0, 1, 1], [], []>} : vector<64x16xbf16>, vector<16x16xbf16>, vector<64x16xf32> -> vector<64x16xf32>
    %8 = arith.addf %2, %7 : vector<64x16xf32>
    %9 = vector.extract_strided_slice %1 {offsets = [0, 1, 0], sizes = [8, 8, 16], strides = [1, 1, 1]} : vector<10x10x16xbf16> to vector<8x8x16xbf16>
    %10 = vector.shape_cast %9 : vector<8x8x16xbf16> to vector<64x16xbf16>
    %c1 = arith.constant 1 : index
    %c0_7 = arith.constant 0 : index
    %c0_8 = arith.constant 0 : index
    %11 = vector.load %arg2[%c1, %c0_7, %c0_8] : memref<9x16x16xbf16, #tpu.memory_space<vmem>>, vector<1x16x16xbf16>
    %12 = vector.shape_cast %11 : vector<1x16x16xbf16> to vector<16x16xbf16>
    %cst_9 = arith.constant dense<0.000000e+00> : vector<64x16xf32>
    %13 = tpu.matmul %10, %12, %cst_9 {dimension_numbers = #tpu.dot_dimension_numbers<[1], [0], [0], [1], [0, 0, 1, 1], [], []>} : vector<64x16xbf16>, vector<16x16xbf16>, vector<64x16xf32> -> vector<64x16xf32>
    %14 = arith.addf %8, %13 : vector<64x16xf32>
    %15 = vector.extract_strided_slice %1 {offsets = [0, 2, 0], sizes = [8, 8, 16], strides = [1, 1, 1]} : vector<10x10x16xbf16> to vector<8x8x16xbf16>
    %16 = vector.shape_cast %15 : vector<8x8x16xbf16> to vector<64x16xbf16>
    %c2 = arith.constant 2 : index
    %c0_10 = arith.constant 0 : index
    %c0_11 = arith.constant 0 : index
    %17 = vector.load %arg2[%c2, %c0_10, %c0_11] : memref<9x16x16xbf16, #tpu.memory_space<vmem>>, vector<1x16x16xbf16>
    %18 = vector.shape_cast %17 : vector<1x16x16xbf16> to vector<16x16xbf16>
    %cst_12 = arith.constant dense<0.000000e+00> : vector<64x16xf32>
    %19 = tpu.matmul %16, %18, %cst_12 {dimension_numbers = #tpu.dot_dimension_numbers<[1], [0], [0], [1], [0, 0, 1, 1], [], []>} : vector<64x16xbf16>, vector<16x16xbf16>, vector<64x16xf32> -> vector<64x16xf32>
    %20 = arith.addf %14, %19 : vector<64x16xf32>
    %21 = vector.extract_strided_slice %1 {offsets = [1, 0, 0], sizes = [8, 8, 16], strides = [1, 1, 1]} : vector<10x10x16xbf16> to vector<8x8x16xbf16>
    %22 = vector.shape_cast %21 : vector<8x8x16xbf16> to vector<64x16xbf16>
    %c3 = arith.constant 3 : index
    %c0_13 = arith.constant 0 : index
    %c0_14 = arith.constant 0 : index
    %23 = vector.load %arg2[%c3, %c0_13, %c0_14] : memref<9x16x16xbf16, #tpu.memory_space<vmem>>, vector<1x16x16xbf16>
    %24 = vector.shape_cast %23 : vector<1x16x16xbf16> to vector<16x16xbf16>
    %cst_15 = arith.constant dense<0.000000e+00> : vector<64x16xf32>
    %25 = tpu.matmul %22, %24, %cst_15 {dimension_numbers = #tpu.dot_dimension_numbers<[1], [0], [0], [1], [0, 0, 1, 1], [], []>} : vector<64x16xbf16>, vector<16x16xbf16>, vector<64x16xf32> -> vector<64x16xf32>
    %26 = arith.addf %20, %25 : vector<64x16xf32>
    %27 = vector.extract_strided_slice %1 {offsets = [1, 1, 0], sizes = [8, 8, 16], strides = [1, 1, 1]} : vector<10x10x16xbf16> to vector<8x8x16xbf16>
    %28 = vector.shape_cast %27 : vector<8x8x16xbf16> to vector<64x16xbf16>
    %c4 = arith.constant 4 : index
    %c0_16 = arith.constant 0 : index
    %c0_17 = arith.constant 0 : index
    %29 = vector.load %arg2[%c4, %c0_16, %c0_17] : memref<9x16x16xbf16, #tpu.memory_space<vmem>>, vector<1x16x16xbf16>
    %30 = vector.shape_cast %29 : vector<1x16x16xbf16> to vector<16x16xbf16>
    %cst_18 = arith.constant dense<0.000000e+00> : vector<64x16xf32>
    %31 = tpu.matmul %28, %30, %cst_18 {dimension_numbers = #tpu.dot_dimension_numbers<[1], [0], [0], [1], [0, 0, 1, 1], [], []>} : vector<64x16xbf16>, vector<16x16xbf16>, vector<64x16xf32> -> vector<64x16xf32>
    %32 = arith.addf %26, %31 : vector<64x16xf32>
    %33 = vector.extract_strided_slice %1 {offsets = [1, 2, 0], sizes = [8, 8, 16], strides = [1, 1, 1]} : vector<10x10x16xbf16> to vector<8x8x16xbf16>
    %34 = vector.shape_cast %33 : vector<8x8x16xbf16> to vector<64x16xbf16>
    %c5 = arith.constant 5 : index
    %c0_19 = arith.constant 0 : index
    %c0_20 = arith.constant 0 : index
    %35 = vector.load %arg2[%c5, %c0_19, %c0_20] : memref<9x16x16xbf16, #tpu.memory_space<vmem>>, vector<1x16x16xbf16>
    %36 = vector.shape_cast %35 : vector<1x16x16xbf16> to vector<16x16xbf16>
    %cst_21 = arith.constant dense<0.000000e+00> : vector<64x16xf32>
    %37 = tpu.matmul %34, %36, %cst_21 {dimension_numbers = #tpu.dot_dimension_numbers<[1], [0], [0], [1], [0, 0, 1, 1], [], []>} : vector<64x16xbf16>, vector<16x16xbf16>, vector<64x16xf32> -> vector<64x16xf32>
    %38 = arith.addf %32, %37 : vector<64x16xf32>
    %39 = vector.extract_strided_slice %1 {offsets = [2, 0, 0], sizes = [8, 8, 16], strides = [1, 1, 1]} : vector<10x10x16xbf16> to vector<8x8x16xbf16>
    %40 = vector.shape_cast %39 : vector<8x8x16xbf16> to vector<64x16xbf16>
    %c6 = arith.constant 6 : index
    %c0_22 = arith.constant 0 : index
    %c0_23 = arith.constant 0 : index
    %41 = vector.load %arg2[%c6, %c0_22, %c0_23] : memref<9x16x16xbf16, #tpu.memory_space<vmem>>, vector<1x16x16xbf16>
    %42 = vector.shape_cast %41 : vector<1x16x16xbf16> to vector<16x16xbf16>
    %cst_24 = arith.constant dense<0.000000e+00> : vector<64x16xf32>
    %43 = tpu.matmul %40, %42, %cst_24 {dimension_numbers = #tpu.dot_dimension_numbers<[1], [0], [0], [1], [0, 0, 1, 1], [], []>} : vector<64x16xbf16>, vector<16x16xbf16>, vector<64x16xf32> -> vector<64x16xf32>
    %44 = arith.addf %38, %43 : vector<64x16xf32>
    %45 = vector.extract_strided_slice %1 {offsets = [2, 1, 0], sizes = [8, 8, 16], strides = [1, 1, 1]} : vector<10x10x16xbf16> to vector<8x8x16xbf16>
    %46 = vector.shape_cast %45 : vector<8x8x16xbf16> to vector<64x16xbf16>
    %c7 = arith.constant 7 : index
    %c0_25 = arith.constant 0 : index
    %c0_26 = arith.constant 0 : index
    %47 = vector.load %arg2[%c7, %c0_25, %c0_26] : memref<9x16x16xbf16, #tpu.memory_space<vmem>>, vector<1x16x16xbf16>
    %48 = vector.shape_cast %47 : vector<1x16x16xbf16> to vector<16x16xbf16>
    %cst_27 = arith.constant dense<0.000000e+00> : vector<64x16xf32>
    %49 = tpu.matmul %46, %48, %cst_27 {dimension_numbers = #tpu.dot_dimension_numbers<[1], [0], [0], [1], [0, 0, 1, 1], [], []>} : vector<64x16xbf16>, vector<16x16xbf16>, vector<64x16xf32> -> vector<64x16xf32>
    %50 = arith.addf %44, %49 : vector<64x16xf32>
    %51 = vector.extract_strided_slice %1 {offsets = [2, 2, 0], sizes = [8, 8, 16], strides = [1, 1, 1]} : vector<10x10x16xbf16> to vector<8x8x16xbf16>
    %52 = vector.shape_cast %51 : vector<8x8x16xbf16> to vector<64x16xbf16>
    %c8 = arith.constant 8 : index
    %c0_28 = arith.constant 0 : index
    %c0_29 = arith.constant 0 : index
    %53 = vector.load %arg2[%c8, %c0_28, %c0_29] : memref<9x16x16xbf16, #tpu.memory_space<vmem>>, vector<1x16x16xbf16>
    %54 = vector.shape_cast %53 : vector<1x16x16xbf16> to vector<16x16xbf16>
    %cst_30 = arith.constant dense<0.000000e+00> : vector<64x16xf32>
    %55 = tpu.matmul %52, %54, %cst_30 {dimension_numbers = #tpu.dot_dimension_numbers<[1], [0], [0], [1], [0, 0, 1, 1], [], []>} : vector<64x16xbf16>, vector<16x16xbf16>, vector<64x16xf32> -> vector<64x16xf32>
    %56 = arith.addf %50, %55 : vector<64x16xf32>
    %c0_31 = arith.constant 0 : index
    %c0_32 = arith.constant 0 : index
    %57 = vector.load %arg3[%c0_31, %c0_32] : memref<1x16xf32, #tpu.memory_space<vmem>>, vector<1x16xf32>
    %58 = vector.broadcast %57 : vector<1x16xf32> to vector<64x16xf32>
    %59 = arith.addf %56, %58 : vector<64x16xf32>
    %c0_33 = arith.constant 0 : index
    %c0_34 = arith.constant 0 : index
    %c0_35 = arith.constant 0 : index
    %60 = vector.load %arg4[%c0_33, %c0_34, %c0_35] : memref<1x64x16xf32, #tpu.memory_space<vmem>>, vector<1x64x16xf32>
    %61 = vector.shape_cast %60 : vector<1x64x16xf32> to vector<64x16xf32>
    %62 = arith.addf %59, %61 : vector<64x16xf32>
    %cst_36 = arith.constant 0.000000e+00 : f32
    %63 = vector.broadcast %cst_36 : f32 to vector<64x16xf32>
    %64 = arith.maximumf %62, %63 : vector<64x16xf32>
    %c0_37 = arith.constant 0 : index
    %c0_38 = arith.constant 0 : index
    %c0_39 = arith.constant 0 : index
    %65 = vector.load %arg5[%c0_37, %c0_38, %c0_39] : memref<1x64x16xf32, #tpu.memory_space<vmem>>, vector<1x64x16xf32>
    %66 = vector.shape_cast %65 : vector<1x64x16xf32> to vector<64x16xf32>
    %67 = vector.shape_cast %64 : vector<64x16xf32> to vector<1x64x16xf32>
    tpu.vector_store %arg5[%c0_37, %c0_38, %c0_39], %67 {strides = array<i32>} : memref<1x64x16xf32, #tpu.memory_space<vmem>>, vector<1x64x16xf32>,
    return
  }
  func.func @transform_0(%arg0: i32) -> (i32, i32, i32, i32) {
    %c0_i32 = arith.constant 0 : i32
    %c0_i32_0 = arith.constant 0 : i32
    %c0_i32_1 = arith.constant 0 : i32
    %c0_i32_2 = arith.constant 0 : i32
    return %arg0, %c0_i32, %c0_i32_0, %c0_i32_1 : i32, i32, i32, i32
  }
  func.func @transform_1(%arg0: i32) -> (i32, i32, i32) {
    %c0_i32 = arith.constant 0 : i32
    %c0_i32_0 = arith.constant 0 : i32
    %c0_i32_1 = arith.constant 0 : i32
    %c0_i32_2 = arith.constant 0 : i32
    return %c0_i32, %c0_i32_0, %c0_i32_1 : i32, i32, i32
  }
  func.func @transform_2(%arg0: i32) -> (i32, i32) {
    %c0_i32 = arith.constant 0 : i32
    %c0_i32_0 = arith.constant 0 : i32
    %c0_i32_1 = arith.constant 0 : i32
    return %c0_i32, %c0_i32_0 : i32, i32
  }
  func.func @transform_3(%arg0: i32) -> (i32, i32, i32) {
    %c0_i32 = arith.constant 0 : i32
    %c0_i32_0 = arith.constant 0 : i32
    %c0_i32_1 = arith.constant 0 : i32
    return %arg0, %c0_i32, %c0_i32_0 : i32, i32, i32
  }
  func.func @transform_4(%arg0: i32) -> (i32, i32, i32) {
    %c0_i32 = arith.constant 0 : i32
    %c0_i32_0 = arith.constant 0 : i32
    %c0_i32_1 = arith.constant 0 : i32
    return %arg0, %c0_i32, %c0_i32_0 : i32, i32, i32
  }
}

</mosaic_0001>

<llo_original>
// kernel: residual_block_nchw.3
$region0: #{residual_block_nchw.3}
  #allocation0 [shape = 'u32[]', space=smem, size = 0x4, offset = 0x4, fixed_abs, tag = 'smem constant byte address 0x4 - core index']
  #allocation1 [shape = 'u32[144,128]{1,0:T(1,128)}', space=vmem, size = 0x12000, scoped, tag = 'internal scratch']
  %s0 = inlined_call_operand.vmem [shape: bf16[8,8,8,4], index: 0, kind: input, shape index: {}]
  %s1 = inlined_call_operand.vmem [shape: bf16[1,4,16], index: 1, kind: input, shape index: {}]
  %s2 = inlined_call_operand.vmem [shape: f32[1,16], index: 2, kind: input, shape index: {}]
  %s3 = inlined_call_operand.vmem [shape: f32[2,64,16], index: 3, kind: output, shape index: {}]
  %s4 = sld [smem:[#allocation0]]
  $region45: #{residual_block_nchw.3} parent=0
    _
  %s6 = ssub.s32 1, %s4
  %s7 = scalar_select 0, %s6, %s4
  loop: start=0, step=1, limit=4
  $region2: #{residual_block_nchw.3} parent=0 // loop_pre_header
    _
  $region3: #{residual_block_nchw.3} parent=0 // loop_header
    %s9 = sphi 0, %s13
    %p10 = scmp.ge.s32.totalorder %s9, 4
    %s19 = sphi 0, %s21
    %s22 = sphi 0, %s19
    %s23 = sphi 0, %s22
    %s39 = sphi 0, %s23
    %s43 = sphi 0, %s43
    %s45 = sphi 0, %s43
    %s46 = sphi 0, %s45
    %s60 = sphi 0, %s46
    %s64 = sphi 0, %s64
    %s66 = sphi 0, %s64
    %s67 = sphi 0, %s66
    %s81 = sphi 0, %s67
    %s87 = sphi 0, %s89
    %s90 = sphi 0, %s87
    %s91 = sphi 0, %s90
    %s107 = sphi 0, %s91
  $region4: #{residual_block_nchw.3} parent=0 // loop_header_branch
    %12 = sbr.rel (%p10) target = $region8
  $region5: #{residual_block_nchw.3} parent=0 // loop_body
    %s14 = ssub.s32 %s9, 1
    %s15 = ssub.s32 %s9, 2
    %s16 = sadd.s32 %s9, 1
    %s17 = ssub.s32 %s9, %s16
    %p18 = scmp.eq.s32.totalorder %s17, 0
    %s20 = sadd.s32 %s19, 1
    %s21 = scalar_select %p18, %s19, %s20
    %p24 = pneg %p18
    %p25 = scmp.eq.s32.totalorder %s9, 1
    %p26 = por %p24, %p25
    %p27 = scmp.ne.s32.totalorder %s19, %s22
    %p28 = scmp.eq.s32.totalorder %s9, 0
    %p29 = por %p27, %p28
    %p30 = scmp.ne.s32.totalorder %s19, %s22
    %p31 = scmp.eq.s32.totalorder %s14, 1
    %p32 = por %p30, %p31
    %p33 = scmp.ne.s32.totalorder %s22, %s23
    %p34 = scmp.eq.s32.totalorder %s14, 0
    %p35 = por %p33, %p34
    %p36 = scmp.ne.s32.totalorder %s22, %s23
    %p37 = scmp.eq.s32.totalorder %s15, 1
    %p38 = por %p36, %p37
    %p40 = scmp.ne.s32.totalorder %s23, %s39
    %p41 = scmp.eq.s32.totalorder %s15, 0
    %p42 = por %p40, %p41
    %s44 = sadd.s32 %s43, 1
    %p47 = scmp.eq.s32.totalorder %s9, 1
    %p48 = scmp.ne.s32.totalorder %s43, %s45
    %p49 = scmp.eq.s32.totalorder %s9, 0
    %p50 = por %p48, %p49
    %p51 = scmp.ne.s32.totalorder %s43, %s45
    %p52 = scmp.eq.s32.totalorder %s14, 1
    %p53 = por %p51, %p52
    %p54 = scmp.ne.s32.totalorder %s45, %s46
    %p55 = scmp.eq.s32.totalorder %s14, 0
    %p56 = por %p54, %p55
    %p57 = scmp.ne.s32.totalorder %s45, %s46
    %p58 = scmp.eq.s32.totalorder %s15, 1
    %p59 = por %p57, %p58
    %p61 = scmp.ne.s32.totalorder %s46, %s60
    %p62 = scmp.eq.s32.totalorder %s15, 0
    %p63 = por %p61, %p62
    %s65 = sadd.s32 %s64, 1
    %p68 = scmp.eq.s32.totalorder %s9, 1
    %p69 = scmp.ne.s32.totalorder %s64, %s66
    %p70 = scmp.eq.s32.totalorder %s9, 0
    %p71 = por %p69, %p70
    %p72 = scmp.ne.s32.totalorder %s64, %s66
    %p73 = scmp.eq.s32.totalorder %s14, 1
    %p74 = por %p72, %p73
    %p75 = scmp.ne.s32.totalorder %s66, %s67
    %p76 = scmp.eq.s32.totalorder %s14, 0
    %p77 = por %p75, %p76
    %p78 = scmp.ne.s32.totalorder %s66, %s67
    %p79 = scmp.eq.s32.totalorder %s15, 1
    %p80 = por %p78, %p79
    %p82 = scmp.ne.s32.totalorder %s67, %s81
    %p83 = scmp.eq.s32.totalorder %s15, 0
    %p84 = por %p82, %p83
    %s85 = ssub.s32 %s9, %s16
    %p86 = scmp.eq.s32.totalorder %s85, 0
    %s88 = sadd.s32 %s87, 1
    %s89 = scalar_select %p86, %s87, %s88
    %p92 = pneg %p86
    %p93 = scmp.eq.s32.totalorder %s9, 1
    %p94 = por %p92, %p93
    %p95 = scmp.ne.s32.totalorder %s87, %s90
    %p96 = scmp.eq.s32.totalorder %s9, 0
    %p97 = por %p95, %p96
    %p98 = scmp.ne.s32.totalorder %s87, %s90
    %p99 = scmp.eq.s32.totalorder %s14, 1
    %p100 = por %p98, %p99
    %p101 = scmp.ne.s32.totalorder %s90, %s91
    %p102 = scmp.eq.s32.totalorder %s14, 0
    %p103 = por %p101, %p102
    %p104 = scmp.ne.s32.totalorder %s90, %s91
    %p105 = scmp.eq.s32.totalorder %s15, 1
    %p106 = por %p104, %p105
    %p108 = scmp.ne.s32.totalorder %s91, %s107
    %p109 = scmp.eq.s32.totalorder %s15, 0
    %p110 = por %p108, %p109
    %p111 = scmp.le.s32.totalorder 1, %s9
    %p112 = scmp.lt.s32.totalorder %s9, 3
    %p113 = pnand %p111, %p112
    %p114 = pneg %p113
    // Predicated region
    $region9: #{residual_block_nchw.3} parent=5 // pred_check
      _
    $region10: #{residual_block_nchw.3} parent=5 // pred_check_branch
      %116 = sbr.rel (%p113) target = $region12
    $region11: #{residual_block_nchw.3} parent=5 // pred_region
      %s117 = ssub.s32 %s9, 1
      // Predicated region
      $region13: #{residual_block_nchw.3} parent=11 // pred_check
        %p118 = pneg %p56
      $region14: #{residual_block_nchw.3} parent=11 // pred_check_branch
        %120 = sbr.rel (%p118) target = $region16
      $region15: #{residual_block_nchw.3} parent=11 // pred_region
        _
      $region16: #{residual_block_nchw.3} parent=11 // pred_fallthru
        _
      // Predicated region
      $region17: #{residual_block_nchw.3} parent=11 // pred_check
        %p121 = pneg %p77
      $region18: #{residual_block_nchw.3} parent=11 // pred_check_branch
        %123 = sbr.rel (%p121) target = $region20
      $region19: #{residual_block_nchw.3} parent=11 // pred_region
        _
      $region20: #{residual_block_nchw.3} parent=11 // pred_fallthru
        _
    $region12: #{residual_block_nchw.3} parent=5 // pred_fallthru
      _
    %p124 = scmp.lt.s32.totalorder %s9, 2
    // Predicated region
    $region21: #{residual_block_nchw.3} parent=5 // pred_check
      %p125 = pneg %p124
    $region22: #{residual_block_nchw.3} parent=5 // pred_check_branch
      %127 = sbr.rel (%p125) target = $region24
    $region23: #{residual_block_nchw.3} parent=5 // pred_region
      // Predicated region
      $region25: #{residual_block_nchw.3} parent=23 // pred_check
        %p128 = pneg %p29
      $region26: #{residual_block_nchw.3} parent=23 // pred_check_branch
        %130 = sbr.rel (%p128) target = $region28
      $region27: #{residual_block_nchw.3} parent=23 // pred_region
        %s131 = smul.u32 4, %s9
        %p132 = scmp.lt.s32.totalorder %s131, 7
        %s133 = scalar_select %p132, %s131, 7
        %s134 = smul.addr %s133, 8
        %s135 = smul.addr %s134, 4
        %s136 = scalar_lea.vmem %s0, %s135
        %s137 = smul.u32 4, %s9
      $region28: #{residual_block_nchw.3} parent=23 // pred_fallthru
        _
    $region24: #{residual_block_nchw.3} parent=5 // pred_fallthru
      _
    %p138 = scmp.le.s32.totalorder 1, %s9
    %p139 = scmp.lt.s32.totalorder %s9, 3
    %p140 = pnand %p138, %p139
    %p141 = pneg %p140
    // Predicated region
    $region29: #{residual_block_nchw.3} parent=5 // pred_check
      _
    $region30: #{residual_block_nchw.3} parent=5 // pred_check_branch
      %143 = sbr.rel (%p140) target = $region32
    $region31: #{residual_block_nchw.3} parent=5 // pred_region
      %s144 = ssub.s32 %s9, 1
      %s145 = smul.u32 4, %s14
      %p146 = scmp.lt.s32.totalorder %s145, 7
      %s147 = scalar_select %p146, %s145, 7
      %s148 = smul.addr %s147, 8
      %s149 = smul.addr %s148, 4
      %s150 = scalar_lea.vmem %s0, %s149
      %p151 = pneg %p35
      %p152 = pneg %p32
      %p153 = pneg %p56
      %p154 = pneg %p53
      %p155 = pneg %p77
      %p156 = pneg %p74
      %p157 = pneg %p103
      %p158 = pneg %p100
      %p159 = scmp.lt.s32.totalorder %s14, 1
      %s160 = scalar_select %p159, %s14, 1
      %s161 = smul.addr %s160, 8
      %s162 = smul.addr %s161, 8
      %s163 = scalar_lea.vmem %s3, %s162
      %s164 = smul.u32 4, %s14
      %p165 = scmp.lt.s32.totalorder %s164, 7
      %s166 = scalar_select %p165, %s164, 7
      %s167 = smul.addr %s166, 8
      %s168 = smul.addr %s167, 4
      %s169 = scalar_lea.vmem %s0, %s168
      %s170 = smul.u32 4, %s14
      %p171 = scmp.lt.s32.totalorder %s14, 1
      %s172 = scalar_select %p171, %s14, 1
      %s173 = smul.addr %s172, 8
      %s174 = smul.addr %s173, 8
      %s175 = scalar_lea.vmem %s3, %s174
      %v177 = vld [vmem:[%s169] sm:$0xf]
      %v178 = vld [vmem:[%s169 + $0x4] sm:$0xf]
      %v179 = vld [vmem:[%s169 + $0x8] sm:$0xf]
      %v180 = vld [vmem:[%s169 + $0xc] sm:$0xf]
      %v181 = vld [vmem:[%s169 + $0x10] sm:$0xf]
      %v182 = vld [vmem:[%s169 + $0x14] sm:$0xf]
      %v183 = vld [vmem:[%s169 + $0x18] sm:$0xf]
      %v184 = vld [vmem:[%s169 + $0x1c] sm:$0xf]
      %v185 = vld [vmem:[%s1] sm:$0x3]
      %v186 = vld [vmem:[%s2] sm:$0x1]
      %v188 = vlaneseq
      %v189 = vshrl.u32 %v188, 7
      %v190 = vsub.s32 0, %v189
      %v191 = vrot.slane %v186, %v190
      %v201 = vunpack.c.l.b16 %v177
      %v202 = vunpack.c.l.b16 %v178
      %v203 = vunpack.c.l.b16 %v179
      %v204 = vunpack.c.l.b16 %v180
      %v205 = vunpack.c.l.b16 %v181
      %v206 = vunpack.c.l.b16 %v182
      %v207 = vunpack.c.l.b16 %v183
      %v208 = vunpack.c.l.b16 %v184
      %v209 = vpack.c.b16 %v202, %v201
      %v210 = vpack.c.b16 %v204, %v203
      %v211 = vpack.c.b16 %v206, %v205
      %v212 = vpack.c.b16 %v208, %v207
      %vm213 = vcmask 31744
      %v215 = vsel %vm213, %v209, 0
      %v218 = vsel %vm213, %v210, 0
      %v221 = vsel %vm213, %v211, 0
      %v224 = vsel %vm213, %v212, 0
      %vm226 = vcmask 1041408
      %v228 = vsel %vm226, %v185, 0
      %230 = vmatprep.subr.bf16.mxu0 0
      %231 = vmatpush1.bf16.msra.mxu0 0
      %232 = vmatprep.subr.bf16.mxu0 0
      %233 = vmatpush1.bf16.msra.mxu0 0
      %234 = vmatprep.subr.bf16.mxu0 0
      %235 = vmatpush1.bf16.msra.mxu0 0
      %236 = vmatprep.subr.bf16.mxu0 0
      %237 = vmatpush1.bf16.msra.mxu0 0
      %238 = vmatprep.subr.bf16.mxu0 0
      %239 = vmatpush1.bf16.msra.mxu0 0
      %240 = vmatprep.subr.bf16.mxu0 0
      %241 = vmatpush1.bf16.msra.mxu0 0
      %242 = vmatprep.subr.bf16.mxu0 0
      %243 = vmatpush1.bf16.msra.mxu0 0
      %244 = vmatprep.subr.bf16.mxu0 0
      %245 = vmatpush1.bf16.msra.mxu0 %v228
      %246 = vmatprep.subr.bf16.mxu0 0
      %247 = vmatpush2.bf16.msra.mxu0 0
      %248 = vmatprep.subr.bf16.mxu0 0
      %249 = vmatpush2.bf16.msra.mxu0 0
      %250 = vmatprep.subr.bf16.mxu0 0
      %251 = vmatpush2.bf16.msra.mxu0 0
      %252 = vmatprep.subr.bf16.mxu0 0
      %253 = vmatpush2.bf16.msra.mxu0 0
      %254 = vmatprep.subr.bf16.mxu0 0
      %255 = vmatpush2.bf16.msra.mxu0 0
      %256 = vmatprep.subr.bf16.mxu0 0
      %257 = vmatpush2.bf16.msra.mxu0 0
      %258 = vmatprep.subr.bf16.mxu0 0
      %259 = vmatpush2.bf16.msra.mxu0 0
      %260 = vmatprep.subr.bf16.mxu0 0
      %261 = vmatpush2.bf16.msra.mxu0 0
      %262 = vmatprep.mubr.bf16.mxu0 0
      %263 = vmatmul.mubr.bf16.gmra.mxu0 %v215
      %v264 = vpop.f32.mrf.mxu0
      %v265 = vadd.f32 %v191, %v264
      %v266 = vpop.f32.mrf.mxu0
      %v267 = vpop.f32.mrf.mxu0
      %v268 = vadd.f32 %v191, %v267
      %v269 = vpop.f32.mrf.mxu0
      %270 = vmatprep.mubr.bf16.mxu0 0
      %271 = vmatmul.mubr.bf16.gmra.mxu0 %v218
      %v272 = vpop.f32.mrf.mxu0
      %v273 = vadd.f32 %v191, %v272
      %v274 = vpop.f32.mrf.mxu0
      %v275 = vpop.f32.mrf.mxu0
      %v276 = vadd.f32 %v191, %v275
      %v277 = vpop.f32.mrf.mxu0
      %278 = vmatprep.mubr.bf16.mxu0 0
      %279 = vmatmul.mubr.bf16.gmra.mxu0 %v221
      %v280 = vpop.f32.mrf.mxu0
      %v281 = vadd.f32 %v191, %v280
      %v282 = vpop.f32.mrf.mxu0
      %v283 = vpop.f32.mrf.mxu0
      %v284 = vadd.f32 %v191, %v283
      %v285 = vpop.f32.mrf.mxu0
      %286 = vmatprep.mubr.bf16.mxu0 0
      %287 = vmatmul.mubr.bf16.gmra.mxu0 %v224
      %v288 = vpop.f32.mrf.mxu0
      %v289 = vadd.f32 %v191, %v288
      %v290 = vpop.f32.mrf.mxu0
      %v291 = vpop.f32.mrf.mxu0
      %v292 = vadd.f32 %v191, %v291
      %v293 = vpop.f32.mrf.mxu0
      %294 = vdwg.mxu0
      %vm295 = vcmask 130048
      %296 = vst.msk [vmem:[%s175] sm:$0xff] %vm295, %v265
      %297 = vst.msk [vmem:[%s175 + $0x8] sm:$0xff] %vm295, %v268
      %298 = vst.msk [vmem:[%s175 + $0x10] sm:$0xff] %vm295, %v273
      %299 = vst.msk [vmem:[%s175 + $0x18] sm:$0xff] %vm295, %v276
      %300 = vst.msk [vmem:[%s175 + $0x20] sm:$0xff] %vm295, %v281
      %301 = vst.msk [vmem:[%s175 + $0x28] sm:$0xff] %vm295, %v284
      %302 = vst.msk [vmem:[%s175 + $0x30] sm:$0xff] %vm295, %v289
      %303 = vst.msk [vmem:[%s175 + $0x38] sm:$0xff] %vm295, %v292
      %p304 = scmp.lt.s32.totalorder %s14, 1
      %s305 = scalar_select %p304, %s14, 1
      %s306 = smul.addr %s305, 8
      %s307 = smul.addr %s306, 8
      %s308 = scalar_lea.vmem %s3, %s307
      // Predicated region
      $region33: #{residual_block_nchw.3} parent=31 // pred_check
        %p309 = pneg %p100
      $region34: #{residual_block_nchw.3} parent=31 // pred_check_branch
        %311 = sbr.rel (%p309) target = $region36
      $region35: #{residual_block_nchw.3} parent=31 // pred_region
        _
      $region36: #{residual_block_nchw.3} parent=31 // pred_fallthru
        _
    $region32: #{residual_block_nchw.3} parent=5 // pred_fallthru
      _
    %p312 = scmp.le.s32.totalorder 2, %s9
    // Predicated region
    $region37: #{residual_block_nchw.3} parent=5 // pred_check
      %p313 = pneg %p312
    $region38: #{residual_block_nchw.3} parent=5 // pred_check_branch
      %315 = sbr.rel (%p313) target = $region40
    $region39: #{residual_block_nchw.3} parent=5 // pred_region
      %s316 = ssub.s32 %s9, 2
      // Predicated region
      $region41: #{residual_block_nchw.3} parent=39 // pred_check
        %p317 = pneg %p106
      $region42: #{residual_block_nchw.3} parent=39 // pred_check_branch
        %319 = sbr.rel (%p317) target = $region44
      $region43: #{residual_block_nchw.3} parent=39 // pred_region
        %p320 = scmp.lt.s32.totalorder %s15, 1
        %s321 = scalar_select %p320, %s15, 1
        %s322 = smul.addr %s321, 8
        %s323 = smul.addr %s322, 8
        %s324 = scalar_lea.vmem %s3, %s323
      $region44: #{residual_block_nchw.3} parent=39 // pred_fallthru
        _
    $region40: #{residual_block_nchw.3} parent=5 // pred_fallthru
      _
  $region6: #{residual_block_nchw.3} parent=0 // loop_footer
    %s13 = sadd.s32 1, %s9
  $region7: #{residual_block_nchw.3} parent=0 // loop_footer_branch
    %8 = sbr.rel target = $region3
  $region8: #{residual_block_nchw.3} parent=0 // loop_exit
    _

// kernel: residual_block_nchw.4
$region0: #{residual_block_nchw.4}
  #allocation0 [shape = 'u32[]', space=smem, size = 0x4, offset = 0x4, fixed_abs, tag = 'smem constant byte address 0x4 - core index']
  #allocation1 [shape = 'u32[144,128]{1,0:T(1,128)}', space=vmem, size = 0x12000, scoped, tag = 'internal scratch']
  %s0 = inlined_call_operand.vmem [shape: bf16[8,9,9,4], index: 0, kind: input, shape index: {}]
  %s1 = inlined_call_operand.vmem [shape: bf16[9,4,16], index: 1, kind: input, shape index: {}]
  %s2 = inlined_call_operand.vmem [shape: f32[1,16], index: 2, kind: input, shape index: {}]
  %s3 = inlined_call_operand.vmem [shape: f32[2,64,16], index: 3, kind: output, shape index: {}]
  %s4 = sld [smem:[#allocation0]]
  $region45: #{residual_block_nchw.4} parent=0
    _
  %s6 = ssub.s32 1, %s4
  %s7 = scalar_select 0, %s6, %s4
  loop: start=0, step=1, limit=4
  $region2: #{residual_block_nchw.4} parent=0 // loop_pre_header
    _
  $region3: #{residual_block_nchw.4} parent=0 // loop_header
    %s9 = sphi 0, %s13
    %p10 = scmp.ge.s32.totalorder %s9, 4
    %s19 = sphi 0, %s21
    %s22 = sphi 0, %s19
    %s23 = sphi 0, %s22
    %s39 = sphi 0, %s23
    %s43 = sphi 0, %s43
    %s45 = sphi 0, %s43
    %s46 = sphi 0, %s45
    %s60 = sphi 0, %s46
    %s64 = sphi 0, %s64
    %s66 = sphi 0, %s64
    %s67 = sphi 0, %s66
    %s81 = sphi 0, %s67
    %s87 = sphi 0, %s89
    %s90 = sphi 0, %s87
    %s91 = sphi 0, %s90
    %s107 = sphi 0, %s91
  $region4: #{residual_block_nchw.4} parent=0 // loop_header_branch
    %12 = sbr.rel (%p10) target = $region8
  $region5: #{residual_block_nchw.4} parent=0 // loop_body
    %s14 = ssub.s32 %s9, 1
    %s15 = ssub.s32 %s9, 2
    %s16 = sadd.s32 %s9, 1
    %s17 = ssub.s32 %s9, %s16
    %p18 = scmp.eq.s32.totalorder %s17, 0
    %s20 = sadd.s32 %s19, 1
    %s21 = scalar_select %p18, %s19, %s20
    %p24 = pneg %p18
    %p25 = scmp.eq.s32.totalorder %s9, 1
    %p26 = por %p24, %p25
    %p27 = scmp.ne.s32.totalorder %s19, %s22
    %p28 = scmp.eq.s32.totalorder %s9, 0
    %p29 = por %p27, %p28
    %p30 = scmp.ne.s32.totalorder %s19, %s22
    %p31 = scmp.eq.s32.totalorder %s14, 1
    %p32 = por %p30, %p31
    %p33 = scmp.ne.s32.totalorder %s22, %s23
    %p34 = scmp.eq.s32.totalorder %s14, 0
    %p35 = por %p33, %p34
    %p36 = scmp.ne.s32.totalorder %s22, %s23
    %p37 = scmp.eq.s32.totalorder %s15, 1
    %p38 = por %p36, %p37
    %p40 = scmp.ne.s32.totalorder %s23, %s39
    %p41 = scmp.eq.s32.totalorder %s15, 0
    %p42 = por %p40, %p41
    %s44 = sadd.s32 %s43, 1
    %p47 = scmp.eq.s32.totalorder %s9, 1
    %p48 = scmp.ne.s32.totalorder %s43, %s45
    %p49 = scmp.eq.s32.totalorder %s9, 0
    %p50 = por %p48, %p49
    %p51 = scmp.ne.s32.totalorder %s43, %s45
    %p52 = scmp.eq.s32.totalorder %s14, 1
    %p53 = por %p51, %p52
    %p54 = scmp.ne.s32.totalorder %s45, %s46
    %p55 = scmp.eq.s32.totalorder %s14, 0
    %p56 = por %p54, %p55
    %p57 = scmp.ne.s32.totalorder %s45, %s46
    %p58 = scmp.eq.s32.totalorder %s15, 1
    %p59 = por %p57, %p58
    %p61 = scmp.ne.s32.totalorder %s46, %s60
    %p62 = scmp.eq.s32.totalorder %s15, 0
    %p63 = por %p61, %p62
    %s65 = sadd.s32 %s64, 1
    %p68 = scmp.eq.s32.totalorder %s9, 1
    %p69 = scmp.ne.s32.totalorder %s64, %s66
    %p70 = scmp.eq.s32.totalorder %s9, 0
    %p71 = por %p69, %p70
    %p72 = scmp.ne.s32.totalorder %s64, %s66
    %p73 = scmp.eq.s32.totalorder %s14, 1
    %p74 = por %p72, %p73
    %p75 = scmp.ne.s32.totalorder %s66, %s67
    %p76 = scmp.eq.s32.totalorder %s14, 0
    %p77 = por %p75, %p76
    %p78 = scmp.ne.s32.totalorder %s66, %s67
    %p79 = scmp.eq.s32.totalorder %s15, 1
    %p80 = por %p78, %p79
    %p82 = scmp.ne.s32.totalorder %s67, %s81
    %p83 = scmp.eq.s32.totalorder %s15, 0
    %p84 = por %p82, %p83
    %s85 = ssub.s32 %s9, %s16
    %p86 = scmp.eq.s32.totalorder %s85, 0
    %s88 = sadd.s32 %s87, 1
    %s89 = scalar_select %p86, %s87, %s88
    %p92 = pneg %p86
    %p93 = scmp.eq.s32.totalorder %s9, 1
    %p94 = por %p92, %p93
    %p95 = scmp.ne.s32.totalorder %s87, %s90
    %p96 = scmp.eq.s32.totalorder %s9, 0
    %p97 = por %p95, %p96
    %p98 = scmp.ne.s32.totalorder %s87, %s90
    %p99 = scmp.eq.s32.totalorder %s14, 1
    %p100 = por %p98, %p99
    %p101 = scmp.ne.s32.totalorder %s90, %s91
    %p102 = scmp.eq.s32.totalorder %s14, 0
    %p103 = por %p101, %p102
    %p104 = scmp.ne.s32.totalorder %s90, %s91
    %p105 = scmp.eq.s32.totalorder %s15, 1
    %p106 = por %p104, %p105
    %p108 = scmp.ne.s32.totalorder %s91, %s107
    %p109 = scmp.eq.s32.totalorder %s15, 0
    %p110 = por %p108, %p109
    %p111 = scmp.le.s32.totalorder 1, %s9
    %p112 = scmp.lt.s32.totalorder %s9, 3
    %p113 = pnand %p111, %p112
    %p114 = pneg %p113
    // Predicated region
    $region9: #{residual_block_nchw.4} parent=5 // pred_check
      _
    $region10: #{residual_block_nchw.4} parent=5 // pred_check_branch
      %116 = sbr.rel (%p113) target = $region12
    $region11: #{residual_block_nchw.4} parent=5 // pred_region
      %s117 = ssub.s32 %s9, 1
      // Predicated region
      $region13: #{residual_block_nchw.4} parent=11 // pred_check
        %p118 = pneg %p56
      $region14: #{residual_block_nchw.4} parent=11 // pred_check_branch
        %120 = sbr.rel (%p118) target = $region16
      $region15: #{residual_block_nchw.4} parent=11 // pred_region
        _
      $region16: #{residual_block_nchw.4} parent=11 // pred_fallthru
        _
      // Predicated region
      $region17: #{residual_block_nchw.4} parent=11 // pred_check
        %p121 = pneg %p77
      $region18: #{residual_block_nchw.4} parent=11 // pred_check_branch
        %123 = sbr.rel (%p121) target = $region20
      $region19: #{residual_block_nchw.4} parent=11 // pred_region
        _
      $region20: #{residual_block_nchw.4} parent=11 // pred_fallthru
        _
    $region12: #{residual_block_nchw.4} parent=5 // pred_fallthru
      _
    %p124 = scmp.lt.s32.totalorder %s9, 2
    // Predicated region
    $region21: #{residual_block_nchw.4} parent=5 // pred_check
      %p125 = pneg %p124
    $region22: #{residual_block_nchw.4} parent=5 // pred_check_branch
      %127 = sbr.rel (%p125) target = $region24
    $region23: #{residual_block_nchw.4} parent=5 // pred_region
      // Predicated region
      $region25: #{residual_block_nchw.4} parent=23 // pred_check
        %p128 = pneg %p29
      $region26: #{residual_block_nchw.4} parent=23 // pred_check_branch
        %130 = sbr.rel (%p128) target = $region28
      $region27: #{residual_block_nchw.4} parent=23 // pred_region
        %s131 = smul.u32 4, %s9
        %p132 = scmp.lt.s32.totalorder %s131, 7
        %s133 = scalar_select %p132, %s131, 7
        %s134 = smul.addr %s133, 18
        %s135 = smul.addr %s134, 4
        %s136 = scalar_lea.vmem %s0, %s135
        %s137 = smul.u32 4, %s9
      $region28: #{residual_block_nchw.4} parent=23 // pred_fallthru
        _
    $region24: #{residual_block_nchw.4} parent=5 // pred_fallthru
      _
    %p138 = scmp.le.s32.totalorder 1, %s9
    %p139 = scmp.lt.s32.totalorder %s9, 3
    %p140 = pnand %p138, %p139
    %p141 = pneg %p140
    // Predicated region
    $region29: #{residual_block_nchw.4} parent=5 // pred_check
      _
    $region30: #{residual_block_nchw.4} parent=5 // pred_check_branch
      %143 = sbr.rel (%p140) target = $region32
    $region31: #{residual_block_nchw.4} parent=5 // pred_region
      %s144 = ssub.s32 %s9, 1
      %s145 = smul.u32 4, %s14
      %p146 = scmp.lt.s32.totalorder %s145, 7
      %s147 = scalar_select %p146, %s145, 7
      %s148 = smul.addr %s147, 18
      %s149 = smul.addr %s148, 4
      %s150 = scalar_lea.vmem %s0, %s149
      %p151 = pneg %p35
      %p152 = pneg %p32
      %p153 = pneg %p56
      %p154 = pneg %p53
      %p155 = pneg %p77
      %p156 = pneg %p74
      %p157 = pneg %p103
      %p158 = pneg %p100
      %p159 = scmp.lt.s32.totalorder %s14, 1
      %s160 = scalar_select %p159, %s14, 1
      %s161 = smul.addr %s160, 8
      %s162 = smul.addr %s161, 8
      %s163 = scalar_lea.vmem %s3, %s162
      %s164 = smul.u32 4, %s14
      %p165 = scmp.lt.s32.totalorder %s164, 7
      %s166 = scalar_select %p165, %s164, 7
      %s167 = smul.addr %s166, 18
      %s168 = smul.addr %s167, 4
      %s169 = scalar_lea.vmem %s0, %s168
      %s170 = smul.u32 4, %s14
      %p171 = scmp.lt.s32.totalorder %s14, 1
      %s172 = scalar_select %p171, %s14, 1
      %s173 = smul.addr %s172, 8
      %s174 = smul.addr %s173, 8
      %s175 = scalar_lea.vmem %s3, %s174
      %v177 = vld [vmem:[%s169] sm:$0xf]
      %v178 = vld [vmem:[%s169 + $0x4] sm:$0x1]
      %v179 = vld [vmem:[%s169 + $0x8] sm:$0xf]
      %v180 = vld [vmem:[%s169 + $0xc] sm:$0x1]
      %v181 = vld [vmem:[%s169 + $0x10] sm:$0xf]
      %v182 = vld [vmem:[%s169 + $0x14] sm:$0x1]
      %v183 = vld [vmem:[%s169 + $0x18] sm:$0xf]
      %v184 = vld [vmem:[%s169 + $0x1c] sm:$0x1]
      %v185 = vld [vmem:[%s169 + $0x20] sm:$0xf]
      %v186 = vld [vmem:[%s169 + $0x24] sm:$0x1]
      %v187 = vld [vmem:[%s169 + $0x28] sm:$0xf]
      %v188 = vld [vmem:[%s169 + $0x2c] sm:$0x1]
      %v189 = vld [vmem:[%s169 + $0x30] sm:$0xf]
      %v190 = vld [vmem:[%s169 + $0x34] sm:$0x1]
      %v191 = vld [vmem:[%s169 + $0x38] sm:$0xf]
      %v192 = vld [vmem:[%s169 + $0x3c] sm:$0x1]
      %v193 = vld [vmem:[%s169 + $0x40] sm:$0xf]
      %v194 = vld [vmem:[%s169 + $0x44] sm:$0x1]
      %s195 = scalar_lea.vmem %s169, 72
      %v196 = vld [vmem:[%s195] sm:$0xf]
      %v197 = vld [vmem:[%s195 + $0x8] sm:$0xf]
      %v198 = vld [vmem:[%s195 + $0x10] sm:$0xf]
      %v199 = vld [vmem:[%s195 + $0x18] sm:$0xf]
      %v200 = vld [vmem:[%s195 + $0x20] sm:$0xf]
      %v201 = vld [vmem:[%s195 + $0x28] sm:$0xf]
      %v202 = vld [vmem:[%s195 + $0x30] sm:$0xf]
      %v203 = vld [vmem:[%s195 + $0x38] sm:$0xf]
      %v204 = vld [vmem:[%s195 + $0x40] sm:$0xf]
      %s205 = scalar_lea.vmem %s169, 144
      %v206 = vld [vmem:[%s205] sm:$0xf]
      %v207 = vld [vmem:[%s205 + $0x4] sm:$0x1]
      %v208 = vld [vmem:[%s205 + $0x8] sm:$0xf]
      %v209 = vld [vmem:[%s205 + $0xc] sm:$0x1]
      %v210 = vld [vmem:[%s205 + $0x10] sm:$0xf]
      %v211 = vld [vmem:[%s205 + $0x14] sm:$0x1]
      %v212 = vld [vmem:[%s205 + $0x18] sm:$0xf]
      %v213 = vld [vmem:[%s205 + $0x1c] sm:$0x1]
      %v214 = vld [vmem:[%s205 + $0x20] sm:$0xf]
      %v215 = vld [vmem:[%s205 + $0x24] sm:$0x1]
      %v216 = vld [vmem:[%s205 + $0x28] sm:$0xf]
      %v217 = vld [vmem:[%s205 + $0x2c] sm:$0x1]
      %v218 = vld [vmem:[%s205 + $0x30] sm:$0xf]
      %v219 = vld [vmem:[%s205 + $0x34] sm:$0x1]
      %v220 = vld [vmem:[%s205 + $0x38] sm:$0xf]
      %v221 = vld [vmem:[%s205 + $0x3c] sm:$0x1]
      %s222 = scalar_lea.vmem %s169, 216
      %v223 = vld [vmem:[%s222] sm:$0xf]
      %v224 = vld [vmem:[%s222 + $0x8] sm:$0xf]
      %v225 = vld [vmem:[%s222 + $0x10] sm:$0xf]
      %v226 = vld [vmem:[%s222 + $0x18] sm:$0xf]
      %v227 = vld [vmem:[%s222 + $0x20] sm:$0xf]
      %v228 = vld [vmem:[%s222 + $0x28] sm:$0xf]
      %v229 = vld [vmem:[%s222 + $0x30] sm:$0xf]
      %v230 = vld [vmem:[%s222 + $0x38] sm:$0xf]
      %v231 = vld [vmem:[%s1] sm:$0x3]
      %s232 = scalar_lea.vmem %s1, 2
      %v233 = vld [vmem:[%s232] sm:$0x3]
      %v242 = vunpack.c.l.b16 %v196
      %v243 = vunpack.c.l.b16 %v197
      %v244 = vunpack.c.l.b16 %v198
      %v245 = vunpack.c.l.b16 %v199
      %v246 = vunpack.c.l.b16 %v200
      %v247 = vunpack.c.l.b16 %v201
      %v248 = vunpack.c.l.b16 %v202
      %v249 = vunpack.c.l.b16 %v203
      %v250 = vpack.c.b16 %v243, %v242
      %v251 = vpack.c.b16 %v245, %v244
      %v252 = vpack.c.b16 %v247, %v246
      %v253 = vpack.c.b16 %v249, %v248
      %vm254 = vcmask 31744
      %v256 = vsel %vm254, %v250, 0
      %v259 = vsel %vm254, %v251, 0
      %v262 = vsel %vm254, %v252, 0
      %v265 = vsel %vm254, %v253, 0
      %vm267 = vcmask 1041408
      %v269 = vsel %vm267, %v233, 0
      %271 = vmatprep.subr.bf16.mxu0 0
      %272 = vmatpush1.bf16.msra.mxu0 0
      %273 = vmatprep.subr.bf16.mxu0 0
      %274 = vmatpush1.bf16.msra.mxu0 0
      %275 = vmatprep.subr.bf16.mxu0 0
      %276 = vmatpush1.bf16.msra.mxu0 0
      %277 = vmatprep.subr.bf16.mxu0 0
      %278 = vmatpush1.bf16.msra.mxu0 0
      %279 = vmatprep.subr.bf16.mxu0 0
      %280 = vmatpush1.bf16.msra.mxu0 0
      %281 = vmatprep.subr.bf16.mxu0 0
      %282 = vmatpush1.bf16.msra.mxu0 0
      %283 = vmatprep.subr.bf16.mxu0 0
      %284 = vmatpush1.bf16.msra.mxu0 0
      %285 = vmatprep.subr.bf16.mxu0 0
      %286 = vmatpush1.bf16.msra.mxu0 %v269
      %287 = vmatprep.subr.bf16.mxu0 0
      %288 = vmatpush2.bf16.msra.mxu0 0
      %289 = vmatprep.subr.bf16.mxu0 0
      %290 = vmatpush2.bf16.msra.mxu0 0
      %291 = vmatprep.subr.bf16.mxu0 0
      %292 = vmatpush2.bf16.msra.mxu0 0
      %293 = vmatprep.subr.bf16.mxu0 0
      %294 = vmatpush2.bf16.msra.mxu0 0
      %295 = vmatprep.subr.bf16.mxu0 0
      %296 = vmatpush2.bf16.msra.mxu0 0
      %297 = vmatprep.subr.bf16.mxu0 0
      %298 = vmatpush2.bf16.msra.mxu0 0
      %299 = vmatprep.subr.bf16.mxu0 0
      %300 = vmatpush2.bf16.msra.mxu0 0
      %301 = vmatprep.subr.bf16.mxu0 0
      %302 = vmatpush2.bf16.msra.mxu0 0
      %303 = vmatprep.mubr.bf16.mxu0 0
      %304 = vmatmul.mubr.bf16.gmra.mxu0 %v256
      %v305 = vpop.f32.mrf.mxu0
      %v306 = vadd.f32 0.0, %v305
      %v307 = vpop.f32.mrf.mxu0
      %v308 = vpop.f32.mrf.mxu0
      %v309 = vadd.f32 0.0, %v308
      %v310 = vpop.f32.mrf.mxu0
      %311 = vmatprep.mubr.bf16.mxu0 0
      %312 = vmatmul.mubr.bf16.gmra.mxu0 %v259
      %v313 = vpop.f32.mrf.mxu0
      %v314 = vadd.f32 0.0, %v313
      %v315 = vpop.f32.mrf.mxu0
      %v316 = vpop.f32.mrf.mxu0
      %v317 = vadd.f32 0.0, %v316
      %v318 = vpop.f32.mrf.mxu0
      %319 = vmatprep.mubr.bf16.mxu0 0
      %320 = vmatmul.mubr.bf16.gmra.mxu0 %v262
      %v321 = vpop.f32.mrf.mxu0
      %v322 = vadd.f32 0.0, %v321
      %v323 = vpop.f32.mrf.mxu0
      %v324 = vpop.f32.mrf.mxu0
      %v325 = vadd.f32 0.0, %v324
      %v326 = vpop.f32.mrf.mxu0
      %327 = vmatprep.mubr.bf16.mxu0 0
      %328 = vmatmul.mubr.bf16.gmra.mxu0 %v265
      %v329 = vpop.f32.mrf.mxu0
      %v330 = vadd.f32 0.0, %v329
      %v331 = vpop.f32.mrf.mxu0
      %v332 = vpop.f32.mrf.mxu0
      %v333 = vadd.f32 0.0, %v332
      %v334 = vpop.f32.mrf.mxu0
      %335 = vdwg.mxu0
      %v344 = vunpack.c.l.b16 %v177
      %v345 = vunpack.c.l.b16 %v179
      %v346 = vunpack.c.l.b16 %v181
      %v347 = vunpack.c.l.b16 %v183
      %v348 = vunpack.c.l.b16 %v185
      %v349 = vunpack.c.l.b16 %v187
      %v350 = vunpack.c.l.b16 %v189
      %v351 = vunpack.c.l.b16 %v191
      %v352 = vpack.c.b16 %v345, %v344
      %v353 = vpack.c.b16 %v347, %v346
      %v354 = vpack.c.b16 %v349, %v348
      %v355 = vpack.c.b16 %v351, %v350
      %v357 = vsel %vm254, %v352, 0
      %v360 = vsel %vm254, %v353, 0
      %v363 = vsel %vm254, %v354, 0
      %v366 = vsel %vm254, %v355, 0
      %v369 = vsel %vm267, %v231, 0
      %371 = vmatprep.subr.bf16.mxu0 0
      %372 = vmatpush1.bf16.msra.mxu0 0
      %373 = vmatprep.subr.bf16.mxu0 0
      %374 = vmatpush1.bf16.msra.mxu0 0
      %375 = vmatprep.subr.bf16.mxu0 0
      %376 = vmatpush1.bf16.msra.mxu0 0
      %377 = vmatprep.subr.bf16.mxu0 0
      %378 = vmatpush1.bf16.msra.mxu0 0
      %379 = vmatprep.subr.bf16.mxu0 0
      %380 = vmatpush1.bf16.msra.mxu0 0
      %381 = vmatprep.subr.bf16.mxu0 0
      %382 = vmatpush1.bf16.msra.mxu0 0
      %383 = vmatprep.subr.bf16.mxu0 0
      %384 = vmatpush1.bf16.msra.mxu0 0
      %385 = vmatprep.subr.bf16.mxu0 0
      %386 = vmatpush1.bf16.msra.mxu0 %v369
      %387 = vmatprep.subr.bf16.mxu0 0
      %388 = vmatpush2.bf16.msra.mxu0 0
      %389 = vmatprep.subr.bf16.mxu0 0
      %390 = vmatpush2.bf16.msra.mxu0 0
      %391 = vmatprep.subr.bf16.mxu0 0
      %392 = vmatpush2.bf16.msra.mxu0 0
      %393 = vmatprep.subr.bf16.mxu0 0
      %394 = vmatpush2.bf16.msra.mxu0 0
      %395 = vmatprep.subr.bf16.mxu0 0
      %396 = vmatpush2.bf16.msra.mxu0 0
      %397 = vmatprep.subr.bf16.mxu0 0
      %398 = vmatpush2.bf16.msra.mxu0 0
      %399 = vmatprep.subr.bf16.mxu0 0
      %400 = vmatpush2.bf16.msra.mxu0 0
      %401 = vmatprep.subr.bf16.mxu0 0
      %402 = vmatpush2.bf16.msra.mxu0 0
      %403 = vmatprep.mubr.bf16.mxu0 0
      %404 = vmatmul.mubr.bf16.gmra.mxu0 %v357
      %v405 = vpop.f32.mrf.mxu0
      %v406 = vadd.f32 %v306, %v405
      %v407 = vpop.f32.mrf.mxu0
      %v408 = vpop.f32.mrf.mxu0
      %v409 = vadd.f32 %v309, %v408
      %v410 = vpop.f32.mrf.mxu0
      %411 = vmatprep.mubr.bf16.mxu0 0
      %412 = vmatmul.mubr.bf16.gmra.mxu0 %v360
      %v413 = vpop.f32.mrf.mxu0
      %v414 = vadd.f32 %v314, %v413
      %v415 = vpop.f32.mrf.mxu0
      %v416 = vpop.f32.mrf.mxu0
      %v417 = vadd.f32 %v317, %v416
      %v418 = vpop.f32.mrf.mxu0
      %419 = vmatprep.mubr.bf16.mxu0 0
      %420 = vmatmul.mubr.bf16.gmra.mxu0 %v363
      %v421 = vpop.f32.mrf.mxu0
      %v422 = vadd.f32 %v322, %v421
      %v423 = vpop.f32.mrf.mxu0
      %v424 = vpop.f32.mrf.mxu0
      %v425 = vadd.f32 %v325, %v424
      %v426 = vpop.f32.mrf.mxu0
      %427 = vmatprep.mubr.bf16.mxu0 0
      %428 = vmatmul.mubr.bf16.gmra.mxu0 %v366
      %v429 = vpop.f32.mrf.mxu0
      %v430 = vadd.f32 %v330, %v429
      %v431 = vpop.f32.mrf.mxu0
      %v432 = vpop.f32.mrf.mxu0
      %v433 = vadd.f32 %v333, %v432
      %v434 = vpop.f32.mrf.mxu0
      %435 = vdwg.mxu0
      %vm436 = vsmask.f32 3328
      %vm437 = vsmask.f32 7440
      %vm438 = vmor %vm436, %vm437
      %v440 = vshrl.u32 %v177, 16
      %v442 = vrot.slane %v440, 4
      %v443 = vshll.u32 %v177, 16
      %v445 = vrot.slane %v443, 5
      %v446 = vor.u32 %v442, %v445
      %v447 = vrot.slane %v446, 4
      %v449 = vshll.u32 %v178, 16
      %v451 = vrot.slane %v449, 5
      %v452 = vsel %vm438, %v447, %v451
      %v454 = vshrl.u32 %v179, 16
      %v456 = vrot.slane %v454, 4
      %v457 = vshll.u32 %v179, 16
      %v459 = vrot.slane %v457, 5
      %v460 = vor.u32 %v456, %v459
      %v461 = vrot.slane %v460, 4
      %v463 = vshll.u32 %v180, 16
      %v465 = vrot.slane %v463, 5
      %v466 = vsel %vm438, %v461, %v465
      %v468 = vshrl.u32 %v181, 16
      %v470 = vrot.slane %v468, 4
      %v471 = vshll.u32 %v181, 16
      %v473 = vrot.slane %v471, 5
      %v474 = vor.u32 %v470, %v473
      %v475 = vrot.slane %v474, 4
      %v477 = vshll.u32 %v182, 16
      %v479 = vrot.slane %v477, 5
      %v480 = vsel %vm438, %v475, %v479
      %v482 = vshrl.u32 %v183, 16
      %v484 = vrot.slane %v482, 4
      %v485 = vshll.u32 %v183, 16
      %v487 = vrot.slane %v485, 5
      %v488 = vor.u32 %v484, %v487
      %v489 = vrot.slane %v488, 4
      %v491 = vshll.u32 %v184, 16
      %v493 = vrot.slane %v491, 5
      %v494 = vsel %vm438, %v489, %v493
      %v496 = vshrl.u32 %v185, 16
      %v498 = vrot.slane %v496, 4
      %v499 = vshll.u32 %v185, 16
      %v501 = vrot.slane %v499, 5
      %v502 = vor.u32 %v498, %v501
      %v503 = vrot.slane %v502, 4
      %v505 = vshll.u32 %v186, 16
      %v507 = vrot.slane %v505, 5
      %v508 = vsel %vm438, %v503, %v507
      %v510 = vshrl.u32 %v187, 16
      %v512 = vrot.slane %v510, 4
      %v513 = vshll.u32 %v187, 16
      %v515 = vrot.slane %v513, 5
      %v516 = vor.u32 %v512, %v515
      %v517 = vrot.slane %v516, 4
      %v519 = vshll.u32 %v188, 16
      %v521 = vrot.slane %v519, 5
      %v522 = vsel %vm438, %v517, %v521
      %v524 = vshrl.u32 %v189, 16
      %v526 = vrot.slane %v524, 4
      %v527 = vshll.u32 %v189, 16
      %v529 = vrot.slane %v527, 5
      %v530 = vor.u32 %v526, %v529
      %v531 = vrot.slane %v530, 4
      %v533 = vshll.u32 %v190, 16
      %v535 = vrot.slane %v533, 5
      %v536 = vsel %vm438, %v531, %v535
      %v538 = vshrl.u32 %v191, 16
      %v540 = vrot.slane %v538, 4
      %v541 = vshll.u32 %v191, 16
      %v543 = vrot.slane %v541, 5
      %v544 = vor.u32 %v540, %v543
      %v545 = vrot.slane %v544, 4
      %v547 = vshll.u32 %v192, 16
      %v549 = vrot.slane %v547, 5
      %v550 = vsel %vm438, %v545, %v549
      %s551 = scalar_lea.vmem %s1, 4
      %v552 = vld [vmem:[%s551] sm:$0x3]
      %v553 = vunpack.c.l.b16 %v452
      %v554 = vunpack.c.l.b16 %v466
      %v555 = vunpack.c.l.b16 %v480
      %v556 = vunpack.c.l.b16 %v494
      %v557 = vunpack.c.l.b16 %v508
      %v558 = vunpack.c.l.b16 %v522
      %v559 = vunpack.c.l.b16 %v536
      %v560 = vunpack.c.l.b16 %v550
      %v561 = vpack.c.b16 %v554, %v553
      %v562 = vpack.c.b16 %v556, %v555
      %v563 = vpack.c.b16 %v558, %v557
      %v564 = vpack.c.b16 %v560, %v559
      %v566 = vsel %vm254, %v561, 0
      %v569 = vsel %vm254, %v562, 0
      %v572 = vsel %vm254, %v563, 0
      %v575 = vsel %vm254, %v564, 0
      %v578 = vsel %vm267, %v552, 0
      %580 = vmatprep.subr.bf16.mxu0 0
      %581 = vmatpush1.bf16.msra.mxu0 0
      %582 = vmatprep.subr.bf16.mxu0 0
      %583 = vmatpush1.bf16.msra.mxu0 0
      %584 = vmatprep.subr.bf16.mxu0 0
      %585 = vmatpush1.bf16.msra.mxu0 0
      %586 = vmatprep.subr.bf16.mxu0 0
      %587 = vmatpush1.bf16.msra.mxu0 0
      %588 = vmatprep.subr.bf16.mxu0 0
      %589 = vmatpush1.bf16.msra.mxu0 0
      %590 = vmatprep.subr.bf16.mxu0 0
      %591 = vmatpush1.bf16.msra.mxu0 0
      %592 = vmatprep.subr.bf16.mxu0 0
      %593 = vmatpush1.bf16.msra.mxu0 0
      %594 = vmatprep.subr.bf16.mxu0 0
      %595 = vmatpush1.bf16.msra.mxu0 %v578
      %596 = vmatprep.subr.bf16.mxu0 0
      %597 = vmatpush2.bf16.msra.mxu0 0
      %598 = vmatprep.subr.bf16.mxu0 0
      %599 = vmatpush2.bf16.msra.mxu0 0
      %600 = vmatprep.subr.bf16.mxu0 0
      %601 = vmatpush2.bf16.msra.mxu0 0
      %602 = vmatprep.subr.bf16.mxu0 0
      %603 = vmatpush2.bf16.msra.mxu0 0
      %604 = vmatprep.subr.bf16.mxu0 0
      %605 = vmatpush2.bf16.msra.mxu0 0
      %606 = vmatprep.subr.bf16.mxu0 0
      %607 = vmatpush2.bf16.msra.mxu0 0
      %608 = vmatprep.subr.bf16.mxu0 0
      %609 = vmatpush2.bf16.msra.mxu0 0
      %610 = vmatprep.subr.bf16.mxu0 0
      %611 = vmatpush2.bf16.msra.mxu0 0
      %612 = vmatprep.mubr.bf16.mxu0 0
      %613 = vmatmul.mubr.bf16.gmra.mxu0 %v566
      %v614 = vpop.f32.mrf.mxu0
      %v615 = vadd.f32 0.0, %v614
      %v616 = vpop.f32.mrf.mxu0
      %v617 = vpop.f32.mrf.mxu0
      %v618 = vadd.f32 0.0, %v617
      %v619 = vpop.f32.mrf.mxu0
      %620 = vmatprep.mubr.bf16.mxu0 0
      %621 = vmatmul.mubr.bf16.gmra.mxu0 %v569
      %v622 = vpop.f32.mrf.mxu0
      %v623 = vadd.f32 0.0, %v622
      %v624 = vpop.f32.mrf.mxu0
      %v625 = vpop.f32.mrf.mxu0
      %v626 = vadd.f32 0.0, %v625
      %v627 = vpop.f32.mrf.mxu0
      %628 = vmatprep.mubr.bf16.mxu0 0
      %629 = vmatmul.mubr.bf16.gmra.mxu0 %v572
      %v630 = vpop.f32.mrf.mxu0
      %v631 = vadd.f32 0.0, %v630
      %v632 = vpop.f32.mrf.mxu0
      %v633 = vpop.f32.mrf.mxu0
      %v634 = vadd.f32 0.0, %v633
      %v635 = vpop.f32.mrf.mxu0
      %636 = vmatprep.mubr.bf16.mxu0 0
      %637 = vmatmul.mubr.bf16.gmra.mxu0 %v575
      %v638 = vpop.f32.mrf.mxu0
      %v639 = vadd.f32 0.0, %v638
      %v640 = vpop.f32.mrf.mxu0
      %v641 = vpop.f32.mrf.mxu0
      %v642 = vadd.f32 0.0, %v641
      %v643 = vpop.f32.mrf.mxu0
      %644 = vdwg.mxu0
      %v645 = vadd.f32 %v406, %v615
      %v646 = vadd.f32 %v409, %v618
      %v647 = vadd.f32 %v414, %v623
      %v648 = vadd.f32 %v417, %v626
      %v649 = vadd.f32 %v422, %v631
      %v650 = vadd.f32 %v425, %v634
      %v651 = vadd.f32 %v430, %v639
      %v652 = vadd.f32 %v433, %v642
      %s653 = scalar_lea.vmem %s1, 6
      %v654 = vld [vmem:[%s653] sm:$0x3]
      %v663 = vunpack.c.l.b16 %v206
      %v664 = vunpack.c.l.b16 %v208
      %v665 = vunpack.c.l.b16 %v210
      %v666 = vunpack.c.l.b16 %v212
      %v667 = vunpack.c.l.b16 %v214
      %v668 = vunpack.c.l.b16 %v216
      %v669 = vunpack.c.l.b16 %v218
      %v670 = vunpack.c.l.b16 %v220
      %v671 = vpack.c.b16 %v664, %v663
      %v672 = vpack.c.b16 %v666, %v665
      %v673 = vpack.c.b16 %v668, %v667
      %v674 = vpack.c.b16 %v670, %v669
      %v676 = vsel %vm254, %v671, 0
      %v679 = vsel %vm254, %v672, 0
      %v682 = vsel %vm254, %v673, 0
      %v685 = vsel %vm254, %v674, 0
      %v688 = vsel %vm267, %v654, 0
      %690 = vmatprep.subr.bf16.mxu0 0
      %691 = vmatpush1.bf16.msra.mxu0 0
      %692 = vmatprep.subr.bf16.mxu0 0
      %693 = vmatpush1.bf16.msra.mxu0 0
      %694 = vmatprep.subr.bf16.mxu0 0
      %695 = vmatpush1.bf16.msra.mxu0 0
      %696 = vmatprep.subr.bf16.mxu0 0
      %697 = vmatpush1.bf16.msra.mxu0 0
      %698 = vmatprep.subr.bf16.mxu0 0
      %699 = vmatpush1.bf16.msra.mxu0 0
      %700 = vmatprep.subr.bf16.mxu0 0
      %701 = vmatpush1.bf16.msra.mxu0 0
      %702 = vmatprep.subr.bf16.mxu0 0
      %703 = vmatpush1.bf16.msra.mxu0 0
      %704 = vmatprep.subr.bf16.mxu0 0
      %705 = vmatpush1.bf16.msra.mxu0 %v688
      %706 = vmatprep.subr.bf16.mxu0 0
      %707 = vmatpush2.bf16.msra.mxu0 0
      %708 = vmatprep.subr.bf16.mxu0 0
      %709 = vmatpush2.bf16.msra.mxu0 0
      %710 = vmatprep.subr.bf16.mxu0 0
      %711 = vmatpush2.bf16.msra.mxu0 0
      %712 = vmatprep.subr.bf16.mxu0 0
      %713 = vmatpush2.bf16.msra.mxu0 0
      %714 = vmatprep.subr.bf16.mxu0 0
      %715 = vmatpush2.bf16.msra.mxu0 0
      %716 = vmatprep.subr.bf16.mxu0 0
      %717 = vmatpush2.bf16.msra.mxu0 0
      %718 = vmatprep.subr.bf16.mxu0 0
      %719 = vmatpush2.bf16.msra.mxu0 0
      %720 = vmatprep.subr.bf16.mxu0 0
      %721 = vmatpush2.bf16.msra.mxu0 0
      %722 = vmatprep.mubr.bf16.mxu0 0
      %723 = vmatmul.mubr.bf16.gmra.mxu0 %v676
      %v724 = vpop.f32.mrf.mxu0
      %v725 = vadd.f32 0.0, %v724
      %v726 = vpop.f32.mrf.mxu0
      %v727 = vpop.f32.mrf.mxu0
      %v728 = vadd.f32 0.0, %v727
      %v729 = vpop.f32.mrf.mxu0
      %730 = vmatprep.mubr.bf16.mxu0 0
      %731 = vmatmul.mubr.bf16.gmra.mxu0 %v679
      %v732 = vpop.f32.mrf.mxu0
      %v733 = vadd.f32 0.0, %v732
      %v734 = vpop.f32.mrf.mxu0
      %v735 = vpop.f32.mrf.mxu0
      %v736 = vadd.f32 0.0, %v735
      %v737 = vpop.f32.mrf.mxu0
      %738 = vmatprep.mubr.bf16.mxu0 0
      %739 = vmatmul.mubr.bf16.gmra.mxu0 %v682
      %v740 = vpop.f32.mrf.mxu0
      %v741 = vadd.f32 0.0, %v740
      %v742 = vpop.f32.mrf.mxu0
      %v743 = vpop.f32.mrf.mxu0
      %v744 = vadd.f32 0.0, %v743
      %v745 = vpop.f32.mrf.mxu0
      %746 = vmatprep.mubr.bf16.mxu0 0
      %747 = vmatmul.mubr.bf16.gmra.mxu0 %v685
      %v748 = vpop.f32.mrf.mxu0
      %v749 = vadd.f32 0.0, %v748
      %v750 = vpop.f32.mrf.mxu0
      %v751 = vpop.f32.mrf.mxu0
      %v752 = vadd.f32 0.0, %v751
      %v753 = vpop.f32.mrf.mxu0
      %754 = vdwg.mxu0
      %v755 = vadd.f32 %v645, %v725
      %v756 = vadd.f32 %v646, %v728
      %v757 = vadd.f32 %v647, %v733
      %v758 = vadd.f32 %v648, %v736
      %v759 = vadd.f32 %v649, %v741
      %v760 = vadd.f32 %v650, %v744
      %v761 = vadd.f32 %v651, %v749
      %v762 = vadd.f32 %v652, %v752
      %s763 = scalar_lea.vmem %s1, 8
      %v764 = vld [vmem:[%s763] sm:$0x3]
      %v773 = vunpack.c.l.b16 %v223
      %v774 = vunpack.c.l.b16 %v224
      %v775 = vunpack.c.l.b16 %v225
      %v776 = vunpack.c.l.b16 %v226
      %v777 = vunpack.c.l.b16 %v227
      %v778 = vunpack.c.l.b16 %v228
      %v779 = vunpack.c.l.b16 %v229
      %v780 = vunpack.c.l.b16 %v230
      %v781 = vpack.c.b16 %v774, %v773
      %v782 = vpack.c.b16 %v776, %v775
      %v783 = vpack.c.b16 %v778, %v777
      %v784 = vpack.c.b16 %v780, %v779
      %v786 = vsel %vm254, %v781, 0
      %v789 = vsel %vm254, %v782, 0
      %v792 = vsel %vm254, %v783, 0
      %v795 = vsel %vm254, %v784, 0
      %v798 = vsel %vm267, %v764, 0
      %800 = vmatprep.subr.bf16.mxu0 0
      %801 = vmatpush1.bf16.msra.mxu0 0
      %802 = vmatprep.subr.bf16.mxu0 0
      %803 = vmatpush1.bf16.msra.mxu0 0
      %804 = vmatprep.subr.bf16.mxu0 0
      %805 = vmatpush1.bf16.msra.mxu0 0
      %806 = vmatprep.subr.bf16.mxu0 0
      %807 = vmatpush1.bf16.msra.mxu0 0
      %808 = vmatprep.subr.bf16.mxu0 0
      %809 = vmatpush1.bf16.msra.mxu0 0
      %810 = vmatprep.subr.bf16.mxu0 0
      %811 = vmatpush1.bf16.msra.mxu0 0
      %812 = vmatprep.subr.bf16.mxu0 0
      %813 = vmatpush1.bf16.msra.mxu0 0
      %814 = vmatprep.subr.bf16.mxu0 0
      %815 = vmatpush1.bf16.msra.mxu0 %v798
      %816 = vmatprep.subr.bf16.mxu0 0
      %817 = vmatpush2.bf16.msra.mxu0 0
      %818 = vmatprep.subr.bf16.mxu0 0
      %819 = vmatpush2.bf16.msra.mxu0 0
      %820 = vmatprep.subr.bf16.mxu0 0
      %821 = vmatpush2.bf16.msra.mxu0 0
      %822 = vmatprep.subr.bf16.mxu0 0
      %823 = vmatpush2.bf16.msra.mxu0 0
      %824 = vmatprep.subr.bf16.mxu0 0
      %825 = vmatpush2.bf16.msra.mxu0 0
      %826 = vmatprep.subr.bf16.mxu0 0
      %827 = vmatpush2.bf16.msra.mxu0 0
      %828 = vmatprep.subr.bf16.mxu0 0
      %829 = vmatpush2.bf16.msra.mxu0 0
      %830 = vmatprep.subr.bf16.mxu0 0
      %831 = vmatpush2.bf16.msra.mxu0 0
      %832 = vmatprep.mubr.bf16.mxu0 0
      %833 = vmatmul.mubr.bf16.gmra.mxu0 %v786
      %v834 = vpop.f32.mrf.mxu0
      %v835 = vadd.f32 0.0, %v834
      %v836 = vpop.f32.mrf.mxu0
      %v837 = vpop.f32.mrf.mxu0
      %v838 = vadd.f32 0.0, %v837
      %v839 = vpop.f32.mrf.mxu0
      %840 = vmatprep.mubr.bf16.mxu0 0
      %841 = vmatmul.mubr.bf16.gmra.mxu0 %v789
      %v842 = vpop.f32.mrf.mxu0
      %v843 = vadd.f32 0.0, %v842
      %v844 = vpop.f32.mrf.mxu0
      %v845 = vpop.f32.mrf.mxu0
      %v846 = vadd.f32 0.0, %v845
      %v847 = vpop.f32.mrf.mxu0
      %848 = vmatprep.mubr.bf16.mxu0 0
      %849 = vmatmul.mubr.bf16.gmra.mxu0 %v792
      %v850 = vpop.f32.mrf.mxu0
      %v851 = vadd.f32 0.0, %v850
      %v852 = vpop.f32.mrf.mxu0
      %v853 = vpop.f32.mrf.mxu0
      %v854 = vadd.f32 0.0, %v853
      %v855 = vpop.f32.mrf.mxu0
      %856 = vmatprep.mubr.bf16.mxu0 0
      %857 = vmatmul.mubr.bf16.gmra.mxu0 %v795
      %v858 = vpop.f32.mrf.mxu0
      %v859 = vadd.f32 0.0, %v858
      %v860 = vpop.f32.mrf.mxu0
      %v861 = vpop.f32.mrf.mxu0
      %v862 = vadd.f32 0.0, %v861
      %v863 = vpop.f32.mrf.mxu0
      %864 = vdwg.mxu0
      %v865 = vadd.f32 %v755, %v835
      %v866 = vadd.f32 %v756, %v838
      %v867 = vadd.f32 %v757, %v843
      %v868 = vadd.f32 %v758, %v846
      %v869 = vadd.f32 %v759, %v851
      %v870 = vadd.f32 %v760, %v854
      %v871 = vadd.f32 %v761, %v859
      %v872 = vadd.f32 %v762, %v862
      %v874 = vshrl.u32 %v206, 16
      %v876 = vrot.slane %v874, 4
      %v877 = vshll.u32 %v206, 16
      %v879 = vrot.slane %v877, 5
      %v880 = vor.u32 %v876, %v879
      %v881 = vrot.slane %v880, 4
      %v883 = vshll.u32 %v207, 16
      %v885 = vrot.slane %v883, 5
      %v886 = vsel %vm438, %v881, %v885
      %v888 = vshrl.u32 %v208, 16
      %v890 = vrot.slane %v888, 4
      %v891 = vshll.u32 %v208, 16
      %v893 = vrot.slane %v891, 5
      %v894 = vor.u32 %v890, %v893
      %v895 = vrot.slane %v894, 4
      %v897 = vshll.u32 %v209, 16
      %v899 = vrot.slane %v897, 5
      %v900 = vsel %vm438, %v895, %v899
      %v902 = vshrl.u32 %v210, 16
      %v904 = vrot.slane %v902, 4
      %v905 = vshll.u32 %v210, 16
      %v907 = vrot.slane %v905, 5
      %v908 = vor.u32 %v904, %v907
      %v909 = vrot.slane %v908, 4
      %v911 = vshll.u32 %v211, 16
      %v913 = vrot.slane %v911, 5
      %v914 = vsel %vm438, %v909, %v913
      %v916 = vshrl.u32 %v212, 16
      %v918 = vrot.slane %v916, 4
      %v919 = vshll.u32 %v212, 16
      %v921 = vrot.slane %v919, 5
      %v922 = vor.u32 %v918, %v921
      %v923 = vrot.slane %v922, 4
      %v925 = vshll.u32 %v213, 16
      %v927 = vrot.slane %v925, 5
      %v928 = vsel %vm438, %v923, %v927
      %v930 = vshrl.u32 %v214, 16
      %v932 = vrot.slane %v930, 4
      %v933 = vshll.u32 %v214, 16
      %v935 = vrot.slane %v933, 5
      %v936 = vor.u32 %v932, %v935
      %v937 = vrot.slane %v936, 4
      %v939 = vshll.u32 %v215, 16
      %v941 = vrot.slane %v939, 5
      %v942 = vsel %vm438, %v937, %v941
      %v944 = vshrl.u32 %v216, 16
      %v946 = vrot.slane %v944, 4
      %v947 = vshll.u32 %v216, 16
      %v949 = vrot.slane %v947, 5
      %v950 = vor.u32 %v946, %v949
      %v951 = vrot.slane %v950, 4
      %v953 = vshll.u32 %v217, 16
      %v955 = vrot.slane %v953, 5
      %v956 = vsel %vm438, %v951, %v955
      %v958 = vshrl.u32 %v218, 16
      %v960 = vrot.slane %v958, 4
      %v961 = vshll.u32 %v218, 16
      %v963 = vrot.slane %v961, 5
      %v964 = vor.u32 %v960, %v963
      %v965 = vrot.slane %v964, 4
      %v967 = vshll.u32 %v219, 16
      %v969 = vrot.slane %v967, 5
      %v970 = vsel %vm438, %v965, %v969
      %v972 = vshrl.u32 %v220, 16
      %v974 = vrot.slane %v972, 4
      %v975 = vshll.u32 %v220, 16
      %v977 = vrot.slane %v975, 5
      %v978 = vor.u32 %v974, %v977
      %v979 = vrot.slane %v978, 4
      %v981 = vshll.u32 %v221, 16
      %v983 = vrot.slane %v981, 5
      %v984 = vsel %vm438, %v979, %v983
      %s985 = scalar_lea.vmem %s1, 10
      %v986 = vld [vmem:[%s985] sm:$0x3]
      %v987 = vunpack.c.l.b16 %v886
      %v988 = vunpack.c.l.b16 %v900
      %v989 = vunpack.c.l.b16 %v914
      %v990 = vunpack.c.l.b16 %v928
      %v991 = vunpack.c.l.b16 %v942
      %v992 = vunpack.c.l.b16 %v956
      %v993 = vunpack.c.l.b16 %v970
      %v994 = vunpack.c.l.b16 %v984
      %v995 = vpack.c.b16 %v988, %v987
      %v996 = vpack.c.b16 %v990, %v989
      %v997 = vpack.c.b16 %v992, %v991
      %v998 = vpack.c.b16 %v994, %v993
      %v1000 = vsel %vm254, %v995, 0
      %v1003 = vsel %vm254, %v996, 0
      %v1006 = vsel %vm254, %v997, 0
      %v1009 = vsel %vm254, %v998, 0
      %v1012 = vsel %vm267, %v986, 0
      %1014 = vmatprep.subr.bf16.mxu0 0
      %1015 = vmatpush1.bf16.msra.mxu0 0
      %1016 = vmatprep.subr.bf16.mxu0 0
      %1017 = vmatpush1.bf16.msra.mxu0 0
      %1018 = vmatprep.subr.bf16.mxu0 0
      %1019 = vmatpush1.bf16.msra.mxu0 0
      %1020 = vmatprep.subr.bf16.mxu0 0
      %1021 = vmatpush1.bf16.msra.mxu0 0
      %1022 = vmatprep.subr.bf16.mxu0 0
      %1023 = vmatpush1.bf16.msra.mxu0 0
      %1024 = vmatprep.subr.bf16.mxu0 0
      %1025 = vmatpush1.bf16.msra.mxu0 0
      %1026 = vmatprep.subr.bf16.mxu0 0
      %1027 = vmatpush1.bf16.msra.mxu0 0
      %1028 = vmatprep.subr.bf16.mxu0 0
      %1029 = vmatpush1.bf16.msra.mxu0 %v1012
      %1030 = vmatprep.subr.bf16.mxu0 0
      %1031 = vmatpush2.bf16.msra.mxu0 0
      %1032 = vmatprep.subr.bf16.mxu0 0
      %1033 = vmatpush2.bf16.msra.mxu0 0
      %1034 = vmatprep.subr.bf16.mxu0 0
      %1035 = vmatpush2.bf16.msra.mxu0 0
      %1036 = vmatprep.subr.bf16.mxu0 0
      %1037 = vmatpush2.bf16.msra.mxu0 0
      %1038 = vmatprep.subr.bf16.mxu0 0
      %1039 = vmatpush2.bf16.msra.mxu0 0
      %1040 = vmatprep.subr.bf16.mxu0 0
      %1041 = vmatpush2.bf16.msra.mxu0 0
      %1042 = vmatprep.subr.bf16.mxu0 0
      %1043 = vmatpush2.bf16.msra.mxu0 0
      %1044 = vmatprep.subr.bf16.mxu0 0
      %1045 = vmatpush2.bf16.msra.mxu0 0
      %1046 = vmatprep.mubr.bf16.mxu0 0
      %1047 = vmatmul.mubr.bf16.gmra.mxu0 %v1000
      %v1048 = vpop.f32.mrf.mxu0
      %v1049 = vadd.f32 0.0, %v1048
      %v1050 = vpop.f32.mrf.mxu0
      %v1051 = vpop.f32.mrf.mxu0
      %v1052 = vadd.f32 0.0, %v1051
      %v1053 = vpop.f32.mrf.mxu0
      %1054 = vmatprep.mubr.bf16.mxu0 0
      %1055 = vmatmul.mubr.bf16.gmra.mxu0 %v1003
      %v1056 = vpop.f32.mrf.mxu0
      %v1057 = vadd.f32 0.0, %v1056
      %v1058 = vpop.f32.mrf.mxu0
      %v1059 = vpop.f32.mrf.mxu0
      %v1060 = vadd.f32 0.0, %v1059
      %v1061 = vpop.f32.mrf.mxu0
      %1062 = vmatprep.mubr.bf16.mxu0 0
      %1063 = vmatmul.mubr.bf16.gmra.mxu0 %v1006
      %v1064 = vpop.f32.mrf.mxu0
      %v1065 = vadd.f32 0.0, %v1064
      %v1066 = vpop.f32.mrf.mxu0
      %v1067 = vpop.f32.mrf.mxu0
      %v1068 = vadd.f32 0.0, %v1067
      %v1069 = vpop.f32.mrf.mxu0
      %1070 = vmatprep.mubr.bf16.mxu0 0
      %1071 = vmatmul.mubr.bf16.gmra.mxu0 %v1009
      %v1072 = vpop.f32.mrf.mxu0
      %v1073 = vadd.f32 0.0, %v1072
      %v1074 = vpop.f32.mrf.mxu0
      %v1075 = vpop.f32.mrf.mxu0
      %v1076 = vadd.f32 0.0, %v1075
      %v1077 = vpop.f32.mrf.mxu0
      %1078 = vdwg.mxu0
      %v1079 = vadd.f32 %v865, %v1049
      %v1080 = vadd.f32 %v866, %v1052
      %v1081 = vadd.f32 %v867, %v1057
      %v1082 = vadd.f32 %v868, %v1060
      %v1083 = vadd.f32 %v869, %v1065
      %v1084 = vadd.f32 %v870, %v1068
      %v1085 = vadd.f32 %v871, %v1073
      %v1086 = vadd.f32 %v872, %v1076
      %s1087 = scalar_lea.vmem %s1, 12
      %v1088 = vld [vmem:[%s1087] sm:$0x3]
      %v1090 = vunpack.c.l.b16 %v193
      %v1091 = vpack.c.b16 %v346, %v345
      %v1092 = vpack.c.b16 %v348, %v347
      %v1093 = vpack.c.b16 %v350, %v349
      %v1094 = vpack.c.b16 %v1090, %v351
      %v1096 = vsel %vm254, %v1091, 0
      %v1099 = vsel %vm254, %v1092, 0
      %v1102 = vsel %vm254, %v1093, 0
      %v1105 = vsel %vm254, %v1094, 0
      %v1108 = vsel %vm267, %v1088, 0
      %1110 = vmatprep.subr.bf16.mxu0 0
      %1111 = vmatpush1.bf16.msra.mxu0 0
      %1112 = vmatprep.subr.bf16.mxu0 0
      %1113 = vmatpush1.bf16.msra.mxu0 0
      %1114 = vmatprep.subr.bf16.mxu0 0
      %1115 = vmatpush1.bf16.msra.mxu0 0
      %1116 = vmatprep.subr.bf16.mxu0 0
      %1117 = vmatpush1.bf16.msra.mxu0 0
      %1118 = vmatprep.subr.bf16.mxu0 0
      %1119 = vmatpush1.bf16.msra.mxu0 0
      %1120 = vmatprep.subr.bf16.mxu0 0
      %1121 = vmatpush1.bf16.msra.mxu0 0
      %1122 = vmatprep.subr.bf16.mxu0 0
      %1123 = vmatpush1.bf16.msra.mxu0 0
      %1124 = vmatprep.subr.bf16.mxu0 0
      %1125 = vmatpush1.bf16.msra.mxu0 %v1108
      %1126 = vmatprep.subr.bf16.mxu0 0
      %1127 = vmatpush2.bf16.msra.mxu0 0
      %1128 = vmatprep.subr.bf16.mxu0 0
      %1129 = vmatpush2.bf16.msra.mxu0 0
      %1130 = vmatprep.subr.bf16.mxu0 0
      %1131 = vmatpush2.bf16.msra.mxu0 0
      %1132 = vmatprep.subr.bf16.mxu0 0
      %1133 = vmatpush2.bf16.msra.mxu0 0
      %1134 = vmatprep.subr.bf16.mxu0 0
      %1135 = vmatpush2.bf16.msra.mxu0 0
      %1136 = vmatprep.subr.bf16.mxu0 0
      %1137 = vmatpush2.bf16.msra.mxu0 0
      %1138 = vmatprep.subr.bf16.mxu0 0
      %1139 = vmatpush2.bf16.msra.mxu0 0
      %1140 = vmatprep.subr.bf16.mxu0 0
      %1141 = vmatpush2.bf16.msra.mxu0 0
      %1142 = vmatprep.mubr.bf16.mxu0 0
      %1143 = vmatmul.mubr.bf16.gmra.mxu0 %v1096
      %v1144 = vpop.f32.mrf.mxu0
      %v1145 = vadd.f32 0.0, %v1144
      %v1146 = vpop.f32.mrf.mxu0
      %v1147 = vpop.f32.mrf.mxu0
      %v1148 = vadd.f32 0.0, %v1147
      %v1149 = vpop.f32.mrf.mxu0
      %1150 = vmatprep.mubr.bf16.mxu0 0
      %1151 = vmatmul.mubr.bf16.gmra.mxu0 %v1099
      %v1152 = vpop.f32.mrf.mxu0
      %v1153 = vadd.f32 0.0, %v1152
      %v1154 = vpop.f32.mrf.mxu0
      %v1155 = vpop.f32.mrf.mxu0
      %v1156 = vadd.f32 0.0, %v1155
      %v1157 = vpop.f32.mrf.mxu0
      %1158 = vmatprep.mubr.bf16.mxu0 0
      %1159 = vmatmul.mubr.bf16.gmra.mxu0 %v1102
      %v1160 = vpop.f32.mrf.mxu0
      %v1161 = vadd.f32 0.0, %v1160
      %v1162 = vpop.f32.mrf.mxu0
      %v1163 = vpop.f32.mrf.mxu0
      %v1164 = vadd.f32 0.0, %v1163
      %v1165 = vpop.f32.mrf.mxu0
      %1166 = vmatprep.mubr.bf16.mxu0 0
      %1167 = vmatmul.mubr.bf16.gmra.mxu0 %v1105
      %v1168 = vpop.f32.mrf.mxu0
      %v1169 = vadd.f32 0.0, %v1168
      %v1170 = vpop.f32.mrf.mxu0
      %v1171 = vpop.f32.mrf.mxu0
      %v1172 = vadd.f32 0.0, %v1171
      %v1173 = vpop.f32.mrf.mxu0
      %1174 = vdwg.mxu0
      %v1175 = vadd.f32 %v1079, %v1145
      %v1176 = vadd.f32 %v1080, %v1148
      %v1177 = vadd.f32 %v1081, %v1153
      %v1178 = vadd.f32 %v1082, %v1156
      %v1179 = vadd.f32 %v1083, %v1161
      %v1180 = vadd.f32 %v1084, %v1164
      %v1181 = vadd.f32 %v1085, %v1169
      %v1182 = vadd.f32 %v1086, %v1172
      %s1183 = scalar_lea.vmem %s1, 14
      %v1184 = vld [vmem:[%s1183] sm:$0x3]
      %v1186 = vunpack.c.l.b16 %v204
      %v1187 = vpack.c.b16 %v244, %v243
      %v1188 = vpack.c.b16 %v246, %v245
      %v1189 = vpack.c.b16 %v248, %v247
      %v1190 = vpack.c.b16 %v1186, %v249
      %v1192 = vsel %vm254, %v1187, 0
      %v1195 = vsel %vm254, %v1188, 0
      %v1198 = vsel %vm254, %v1189, 0
      %v1201 = vsel %vm254, %v1190, 0
      %v1204 = vsel %vm267, %v1184, 0
      %1206 = vmatprep.subr.bf16.mxu0 0
      %1207 = vmatpush1.bf16.msra.mxu0 0
      %1208 = vmatprep.subr.bf16.mxu0 0
      %1209 = vmatpush1.bf16.msra.mxu0 0
      %1210 = vmatprep.subr.bf16.mxu0 0
      %1211 = vmatpush1.bf16.msra.mxu0 0
      %1212 = vmatprep.subr.bf16.mxu0 0
      %1213 = vmatpush1.bf16.msra.mxu0 0
      %1214 = vmatprep.subr.bf16.mxu0 0
      %1215 = vmatpush1.bf16.msra.mxu0 0
      %1216 = vmatprep.subr.bf16.mxu0 0
      %1217 = vmatpush1.bf16.msra.mxu0 0
      %1218 = vmatprep.subr.bf16.mxu0 0
      %1219 = vmatpush1.bf16.msra.mxu0 0
      %1220 = vmatprep.subr.bf16.mxu0 0
      %1221 = vmatpush1.bf16.msra.mxu0 %v1204
      %1222 = vmatprep.subr.bf16.mxu0 0
      %1223 = vmatpush2.bf16.msra.mxu0 0
      %1224 = vmatprep.subr.bf16.mxu0 0
      %1225 = vmatpush2.bf16.msra.mxu0 0
      %1226 = vmatprep.subr.bf16.mxu0 0
      %1227 = vmatpush2.bf16.msra.mxu0 0
      %1228 = vmatprep.subr.bf16.mxu0 0
      %1229 = vmatpush2.bf16.msra.mxu0 0
      %1230 = vmatprep.subr.bf16.mxu0 0
      %1231 = vmatpush2.bf16.msra.mxu0 0
      %1232 = vmatprep.subr.bf16.mxu0 0
      %1233 = vmatpush2.bf16.msra.mxu0 0
      %1234 = vmatprep.subr.bf16.mxu0 0
      %1235 = vmatpush2.bf16.msra.mxu0 0
      %1236 = vmatprep.subr.bf16.mxu0 0
      %1237 = vmatpush2.bf16.msra.mxu0 0
      %1238 = vmatprep.mubr.bf16.mxu0 0
      %1239 = vmatmul.mubr.bf16.gmra.mxu0 %v1192
      %v1240 = vpop.f32.mrf.mxu0
      %v1241 = vadd.f32 0.0, %v1240
      %v1242 = vpop.f32.mrf.mxu0
      %v1243 = vpop.f32.mrf.mxu0
      %v1244 = vadd.f32 0.0, %v1243
      %v1245 = vpop.f32.mrf.mxu0
      %1246 = vmatprep.mubr.bf16.mxu0 0
      %1247 = vmatmul.mubr.bf16.gmra.mxu0 %v1195
      %v1248 = vpop.f32.mrf.mxu0
      %v1249 = vadd.f32 0.0, %v1248
      %v1250 = vpop.f32.mrf.mxu0
      %v1251 = vpop.f32.mrf.mxu0
      %v1252 = vadd.f32 0.0, %v1251
      %v1253 = vpop.f32.mrf.mxu0
      %1254 = vmatprep.mubr.bf16.mxu0 0
      %1255 = vmatmul.mubr.bf16.gmra.mxu0 %v1198
      %v1256 = vpop.f32.mrf.mxu0
      %v1257 = vadd.f32 0.0, %v1256
      %v1258 = vpop.f32.mrf.mxu0
      %v1259 = vpop.f32.mrf.mxu0
      %v1260 = vadd.f32 0.0, %v1259
      %v1261 = vpop.f32.mrf.mxu0
      %1262 = vmatprep.mubr.bf16.mxu0 0
      %1263 = vmatmul.mubr.bf16.gmra.mxu0 %v1201
      %v1264 = vpop.f32.mrf.mxu0
      %v1265 = vadd.f32 0.0, %v1264
      %v1266 = vpop.f32.mrf.mxu0
      %v1267 = vpop.f32.mrf.mxu0
      %v1268 = vadd.f32 0.0, %v1267
      %v1269 = vpop.f32.mrf.mxu0
      %1270 = vdwg.mxu0
      %v1271 = vadd.f32 %v1175, %v1241
      %v1272 = vadd.f32 %v1176, %v1244
      %v1273 = vadd.f32 %v1177, %v1249
      %v1274 = vadd.f32 %v1178, %v1252
      %v1275 = vadd.f32 %v1179, %v1257
      %v1276 = vadd.f32 %v1180, %v1260
      %v1277 = vadd.f32 %v1181, %v1265
      %v1278 = vadd.f32 %v1182, %v1268
      %v1280 = vshrl.u32 %v193, 16
      %v1282 = vrot.slane %v1280, 4
      %v1283 = vshll.u32 %v193, 16
      %v1285 = vrot.slane %v1283, 5
      %v1286 = vor.u32 %v1282, %v1285
      %v1287 = vrot.slane %v1286, 4
      %v1289 = vshll.u32 %v194, 16
      %v1291 = vrot.slane %v1289, 5
      %v1292 = vsel %vm438, %v1287, %v1291
      %s1293 = scalar_lea.vmem %s1, 16
      %v1294 = vld [vmem:[%s1293] sm:$0x3]
      %v1295 = vunpack.c.l.b16 %v1292
      %v1296 = vpack.c.b16 %v555, %v554
      %v1297 = vpack.c.b16 %v557, %v556
      %v1298 = vpack.c.b16 %v559, %v558
      %v1299 = vpack.c.b16 %v1295, %v560
      %v1301 = vsel %vm254, %v1296, 0
      %v1304 = vsel %vm254, %v1297, 0
      %v1307 = vsel %vm254, %v1298, 0
      %v1310 = vsel %vm254, %v1299, 0
      %v1313 = vsel %vm267, %v1294, 0
      %1315 = vmatprep.subr.bf16.mxu0 0
      %1316 = vmatpush1.bf16.msra.mxu0 0
      %1317 = vmatprep.subr.bf16.mxu0 0
      %1318 = vmatpush1.bf16.msra.mxu0 0
      %1319 = vmatprep.subr.bf16.mxu0 0
      %1320 = vmatpush1.bf16.msra.mxu0 0
      %1321 = vmatprep.subr.bf16.mxu0 0
      %1322 = vmatpush1.bf16.msra.mxu0 0
      %1323 = vmatprep.subr.bf16.mxu0 0
      %1324 = vmatpush1.bf16.msra.mxu0 0
      %1325 = vmatprep.subr.bf16.mxu0 0
      %1326 = vmatpush1.bf16.msra.mxu0 0
      %1327 = vmatprep.subr.bf16.mxu0 0
      %1328 = vmatpush1.bf16.msra.mxu0 0
      %1329 = vmatprep.subr.bf16.mxu0 0
      %1330 = vmatpush1.bf16.msra.mxu0 %v1313
      %1331 = vmatprep.subr.bf16.mxu0 0
      %1332 = vmatpush2.bf16.msra.mxu0 0
      %1333 = vmatprep.subr.bf16.mxu0 0
      %1334 = vmatpush2.bf16.msra.mxu0 0
      %1335 = vmatprep.subr.bf16.mxu0 0
      %1336 = vmatpush2.bf16.msra.mxu0 0
      %1337 = vmatprep.subr.bf16.mxu0 0
      %1338 = vmatpush2.bf16.msra.mxu0 0
      %1339 = vmatprep.subr.bf16.mxu0 0
      %1340 = vmatpush2.bf16.msra.mxu0 0
      %1341 = vmatprep.subr.bf16.mxu0 0
      %1342 = vmatpush2.bf16.msra.mxu0 0
      %1343 = vmatprep.subr.bf16.mxu0 0
      %1344 = vmatpush2.bf16.msra.mxu0 0
      %1345 = vmatprep.subr.bf16.mxu0 0
      %1346 = vmatpush2.bf16.msra.mxu0 0
      %1347 = vmatprep.mubr.bf16.mxu0 0
      %1348 = vmatmul.mubr.bf16.gmra.mxu0 %v1301
      %v1349 = vpop.f32.mrf.mxu0
      %v1350 = vadd.f32 0.0, %v1349
      %v1351 = vpop.f32.mrf.mxu0
      %v1352 = vpop.f32.mrf.mxu0
      %v1353 = vadd.f32 0.0, %v1352
      %v1354 = vpop.f32.mrf.mxu0
      %1355 = vmatprep.mubr.bf16.mxu0 0
      %1356 = vmatmul.mubr.bf16.gmra.mxu0 %v1304
      %v1357 = vpop.f32.mrf.mxu0
      %v1358 = vadd.f32 0.0, %v1357
      %v1359 = vpop.f32.mrf.mxu0
      %v1360 = vpop.f32.mrf.mxu0
      %v1361 = vadd.f32 0.0, %v1360
      %v1362 = vpop.f32.mrf.mxu0
      %1363 = vmatprep.mubr.bf16.mxu0 0
      %1364 = vmatmul.mubr.bf16.gmra.mxu0 %v1307
      %v1365 = vpop.f32.mrf.mxu0
      %v1366 = vadd.f32 0.0, %v1365
      %v1367 = vpop.f32.mrf.mxu0
      %v1368 = vpop.f32.mrf.mxu0
      %v1369 = vadd.f32 0.0, %v1368
      %v1370 = vpop.f32.mrf.mxu0
      %1371 = vmatprep.mubr.bf16.mxu0 0
      %1372 = vmatmul.mubr.bf16.gmra.mxu0 %v1310
      %v1373 = vpop.f32.mrf.mxu0
      %v1374 = vadd.f32 0.0, %v1373
      %v1375 = vpop.f32.mrf.mxu0
      %v1376 = vpop.f32.mrf.mxu0
      %v1377 = vadd.f32 0.0, %v1376
      %v1378 = vpop.f32.mrf.mxu0
      %1379 = vdwg.mxu0
      %v1380 = vadd.f32 %v1271, %v1350
      %v1381 = vadd.f32 %v1272, %v1353
      %v1382 = vadd.f32 %v1273, %v1358
      %v1383 = vadd.f32 %v1274, %v1361
      %v1384 = vadd.f32 %v1275, %v1366
      %v1385 = vadd.f32 %v1276, %v1369
      %v1386 = vadd.f32 %v1277, %v1374
      %v1387 = vadd.f32 %v1278, %v1377
      %v1388 = vld [vmem:[%s2] sm:$0x1]
      %v1390 = vlaneseq
      %v1391 = vshrl.u32 %v1390, 7
      %v1392 = vsub.s32 0, %v1391
      %v1393 = vrot.slane %v1388, %v1392
      %v1395 = vadd.f32 %v1380, %v1393
      %v1396 = vadd.f32 %v1381, %v1393
      %v1397 = vadd.f32 %v1382, %v1393
      %v1398 = vadd.f32 %v1383, %v1393
      %v1399 = vadd.f32 %v1384, %v1393
      %v1400 = vadd.f32 %v1385, %v1393
      %v1401 = vadd.f32 %v1386, %v1393
      %v1402 = vadd.f32 %v1387, %v1393
      %v1403 = vmax.f32 %v1395, 0.0
      %v1404 = vmax.f32 %v1396, 0.0
      %v1405 = vmax.f32 %v1397, 0.0
      %v1406 = vmax.f32 %v1398, 0.0
      %v1407 = vmax.f32 %v1399, 0.0
      %v1408 = vmax.f32 %v1400, 0.0
      %v1409 = vmax.f32 %v1401, 0.0
      %v1410 = vmax.f32 %v1402, 0.0
      %vm1411 = vcmask 130048
      %1412 = vst.msk [vmem:[%s175] sm:$0xff] %vm1411, %v1403
      %1413 = vst.msk [vmem:[%s175 + $0x8] sm:$0xff] %vm1411, %v1404
      %1414 = vst.msk [vmem:[%s175 + $0x10] sm:$0xff] %vm1411, %v1405
      %1415 = vst.msk [vmem:[%s175 + $0x18] sm:$0xff] %vm1411, %v1406
      %1416 = vst.msk [vmem:[%s175 + $0x20] sm:$0xff] %vm1411, %v1407
      %1417 = vst.msk [vmem:[%s175 + $0x28] sm:$0xff] %vm1411, %v1408
      %1418 = vst.msk [vmem:[%s175 + $0x30] sm:$0xff] %vm1411, %v1409
      %1419 = vst.msk [vmem:[%s175 + $0x38] sm:$0xff] %vm1411, %v1410
      %p1420 = scmp.lt.s32.totalorder %s14, 1
      %s1421 = scalar_select %p1420, %s14, 1
      %s1422 = smul.addr %s1421, 8
      %s1423 = smul.addr %s1422, 8
      %s1424 = scalar_lea.vmem %s3, %s1423
      // Predicated region
      $region33: #{residual_block_nchw.4} parent=31 // pred_check
        %p1425 = pneg %p100
      $region34: #{residual_block_nchw.4} parent=31 // pred_check_branch
        %1427 = sbr.rel (%p1425) target = $region36
      $region35: #{residual_block_nchw.4} parent=31 // pred_region
        _
      $region36: #{residual_block_nchw.4} parent=31 // pred_fallthru
        _
    $region32: #{residual_block_nchw.4} parent=5 // pred_fallthru
      _
    %p1428 = scmp.le.s32.totalorder 2, %s9
    // Predicated region
    $region37: #{residual_block_nchw.4} parent=5 // pred_check
      %p1429 = pneg %p1428
    $region38: #{residual_block_nchw.4} parent=5 // pred_check_branch
      %1431 = sbr.rel (%p1429) target = $region40
    $region39: #{residual_block_nchw.4} parent=5 // pred_region
      %s1432 = ssub.s32 %s9, 2
      // Predicated region
      $region41: #{residual_block_nchw.4} parent=39 // pred_check
        %p1433 = pneg %p106
      $region42: #{residual_block_nchw.4} parent=39 // pred_check_branch
        %1435 = sbr.rel (%p1433) target = $region44
      $region43: #{residual_block_nchw.4} parent=39 // pred_region
        %p1436 = scmp.lt.s32.totalorder %s15, 1
        %s1437 = scalar_select %p1436, %s15, 1
        %s1438 = smul.addr %s1437, 8
        %s1439 = smul.addr %s1438, 8
        %s1440 = scalar_lea.vmem %s3, %s1439
      $region44: #{residual_block_nchw.4} parent=39 // pred_fallthru
        _
    $region40: #{residual_block_nchw.4} parent=5 // pred_fallthru
      _
  $region6: #{residual_block_nchw.4} parent=0 // loop_footer
    %s13 = sadd.s32 1, %s9
  $region7: #{residual_block_nchw.4} parent=0 // loop_footer_branch
    %8 = sbr.rel target = $region3
  $region8: #{residual_block_nchw.4} parent=0 // loop_exit
    _

// kernel: residual_block_nchw.5
$region0: #{residual_block_nchw.5}
  #allocation0 [shape = 'u32[]', space=smem, size = 0x4, offset = 0x4, fixed_abs, tag = 'smem constant byte address 0x4 - core index']
  #allocation1 [shape = 'u32[144,128]{1,0:T(1,128)}', space=vmem, size = 0x12000, scoped, tag = 'internal scratch']
  %s0 = inlined_call_operand.vmem [shape: bf16[2,10,10,16], index: 0, kind: input, shape index: {}]
  %s1 = inlined_call_operand.vmem [shape: bf16[9,16,16], index: 1, kind: input, shape index: {}]
  %s2 = inlined_call_operand.vmem [shape: f32[1,16], index: 2, kind: input, shape index: {}]
  %s3 = inlined_call_operand.vmem [shape: f32[2,64,16], index: 3, kind: input, shape index: {}]
  %s4 = inlined_call_operand.hbm [shape: f32[2,64,16], index: 4, kind: output, shape index: {}]
  %s5 = sld [smem:[#allocation0]]
  $region49: #{residual_block_nchw.5} parent=0
    _
  %s7 = ssub.s32 1, %s5
  %s8 = scalar_select 0, %s7, %s5
  $region1: #{residual_block_nchw.5} parent=0
    #allocation2 [shape = 'u8[65536]{0}', space=vmem, size = 0x10000, scoped, tag = 'output window, operand 0']
    #allocation3 [shape = 's32[2]{0}', space=sflag, size = 0x8, scoped, tag = 'scoped memory for residual_block_nchw.5']
    %9 = vsyncpa [#allocation3], 0
    %s10 = scalar_lea.sflag [#allocation3], 1
    %11 = vsyncpa %s10, 0
    loop: start=0, step=1, limit=4
    $region2: #{residual_block_nchw.5} parent=1 // loop_pre_header
      _
    $region3: #{residual_block_nchw.5} parent=1 // loop_header
      %s13 = sphi 0, %s17
      %p14 = scmp.ge.s32.totalorder %s13, 4
      %s23 = sphi 0, %s25
      %s26 = sphi 0, %s23
      %s27 = sphi 0, %s26
      %s43 = sphi 0, %s27
      %s47 = sphi 0, %s47
      %s49 = sphi 0, %s47
      %s50 = sphi 0, %s49
      %s64 = sphi 0, %s50
      %s68 = sphi 0, %s68
      %s70 = sphi 0, %s68
      %s71 = sphi 0, %s70
      %s85 = sphi 0, %s71
      %s91 = sphi 0, %s93
      %s94 = sphi 0, %s91
      %s95 = sphi 0, %s94
      %s111 = sphi 0, %s95
      %s117 = sphi 0, %s119
      %s120 = sphi 0, %s117
      %s121 = sphi 0, %s120
      %s137 = sphi 0, %s121
    $region4: #{residual_block_nchw.5} parent=1 // loop_header_branch
      %16 = sbr.rel (%p14) target = $region8
    $region5: #{residual_block_nchw.5} parent=1 // loop_body
      %s18 = ssub.s32 %s13, 1
      %s19 = ssub.s32 %s13, 2
      %s20 = sadd.s32 %s13, 1
      %s21 = ssub.s32 %s13, %s20
      %p22 = scmp.eq.s32.totalorder %s21, 0
      %s24 = sadd.s32 %s23, 1
      %s25 = scalar_select %p22, %s23, %s24
      %p28 = pneg %p22
      %p29 = scmp.eq.s32.totalorder %s13, 1
      %p30 = por %p28, %p29
      %p31 = scmp.ne.s32.totalorder %s23, %s26
      %p32 = scmp.eq.s32.totalorder %s13, 0
      %p33 = por %p31, %p32
      %p34 = scmp.ne.s32.totalorder %s23, %s26
      %p35 = scmp.eq.s32.totalorder %s18, 1
      %p36 = por %p34, %p35
      %p37 = scmp.ne.s32.totalorder %s26, %s27
      %p38 = scmp.eq.s32.totalorder %s18, 0
      %p39 = por %p37, %p38
      %p40 = scmp.ne.s32.totalorder %s26, %s27
      %p41 = scmp.eq.s32.totalorder %s19, 1
      %p42 = por %p40, %p41
      %p44 = scmp.ne.s32.totalorder %s27, %s43
      %p45 = scmp.eq.s32.totalorder %s19, 0
      %p46 = por %p44, %p45
      %s48 = sadd.s32 %s47, 1
      %p51 = scmp.eq.s32.totalorder %s13, 1
      %p52 = scmp.ne.s32.totalorder %s47, %s49
      %p53 = scmp.eq.s32.totalorder %s13, 0
      %p54 = por %p52, %p53
      %p55 = scmp.ne.s32.totalorder %s47, %s49
      %p56 = scmp.eq.s32.totalorder %s18, 1
      %p57 = por %p55, %p56
      %p58 = scmp.ne.s32.totalorder %s49, %s50
      %p59 = scmp.eq.s32.totalorder %s18, 0
      %p60 = por %p58, %p59
      %p61 = scmp.ne.s32.totalorder %s49, %s50
      %p62 = scmp.eq.s32.totalorder %s19, 1
      %p63 = por %p61, %p62
      %p65 = scmp.ne.s32.totalorder %s50, %s64
      %p66 = scmp.eq.s32.totalorder %s19, 0
      %p67 = por %p65, %p66
      %s69 = sadd.s32 %s68, 1
      %p72 = scmp.eq.s32.totalorder %s13, 1
      %p73 = scmp.ne.s32.totalorder %s68, %s70
      %p74 = scmp.eq.s32.totalorder %s13, 0
      %p75 = por %p73, %p74
      %p76 = scmp.ne.s32.totalorder %s68, %s70
      %p77 = scmp.eq.s32.totalorder %s18, 1
      %p78 = por %p76, %p77
      %p79 = scmp.ne.s32.totalorder %s70, %s71
      %p80 = scmp.eq.s32.totalorder %s18, 0
      %p81 = por %p79, %p80
      %p82 = scmp.ne.s32.totalorder %s70, %s71
      %p83 = scmp.eq.s32.totalorder %s19, 1
      %p84 = por %p82, %p83
      %p86 = scmp.ne.s32.totalorder %s71, %s85
      %p87 = scmp.eq.s32.totalorder %s19, 0
      %p88 = por %p86, %p87
      %s89 = ssub.s32 %s13, %s20
      %p90 = scmp.eq.s32.totalorder %s89, 0
      %s92 = sadd.s32 %s91, 1
      %s93 = scalar_select %p90, %s91, %s92
      %p96 = pneg %p90
      %p97 = scmp.eq.s32.totalorder %s13, 1
      %p98 = por %p96, %p97
      %p99 = scmp.ne.s32.totalorder %s91, %s94
      %p100 = scmp.eq.s32.totalorder %s13, 0
      %p101 = por %p99, %p100
      %p102 = scmp.ne.s32.totalorder %s91, %s94
      %p103 = scmp.eq.s32.totalorder %s18, 1
      %p104 = por %p102, %p103
      %p105 = scmp.ne.s32.totalorder %s94, %s95
      %p106 = scmp.eq.s32.totalorder %s18, 0
      %p107 = por %p105, %p106
      %p108 = scmp.ne.s32.totalorder %s94, %s95
      %p109 = scmp.eq.s32.totalorder %s19, 1
      %p110 = por %p108, %p109
      %p112 = scmp.ne.s32.totalorder %s95, %s111
      %p113 = scmp.eq.s32.totalorder %s19, 0
      %p114 = por %p112, %p113
      %s115 = ssub.s32 %s13, %s20
      %p116 = scmp.eq.s32.totalorder %s115, 0
      %s118 = sadd.s32 %s117, 1
      %s119 = scalar_select %p116, %s117, %s118
      %p122 = pneg %p116
      %p123 = scmp.eq.s32.totalorder %s13, 1
      %p124 = por %p122, %p123
      %p125 = scmp.ne.s32.totalorder %s117, %s120
      %p126 = scmp.eq.s32.totalorder %s13, 0
      %p127 = por %p125, %p126
      %p128 = scmp.ne.s32.totalorder %s117, %s120
      %p129 = scmp.eq.s32.totalorder %s18, 1
      %p130 = por %p128, %p129
      %p131 = scmp.ne.s32.totalorder %s120, %s121
      %p132 = scmp.eq.s32.totalorder %s18, 0
      %p133 = por %p131, %p132
      %p134 = scmp.ne.s32.totalorder %s120, %s121
      %p135 = scmp.eq.s32.totalorder %s19, 1
      %p136 = por %p134, %p135
      %p138 = scmp.ne.s32.totalorder %s121, %s137
      %p139 = scmp.eq.s32.totalorder %s19, 0
      %p140 = por %p138, %p139
      %p141 = scmp.le.s32.totalorder 1, %s13
      %p142 = scmp.lt.s32.totalorder %s13, 3
      %p143 = pnand %p141, %p142
      %p144 = pneg %p143
      // Predicated region
      $region9: #{residual_block_nchw.5} parent=5 // pred_check
        _
      $region10: #{residual_block_nchw.5} parent=5 // pred_check_branch
        %146 = sbr.rel (%p143) target = $region12
      $region11: #{residual_block_nchw.5} parent=5 // pred_region
        %s147 = ssub.s32 %s13, 1
        // Predicated region
        $region13: #{residual_block_nchw.5} parent=11 // pred_check
          %p148 = pneg %p60
        $region14: #{residual_block_nchw.5} parent=11 // pred_check_branch
          %150 = sbr.rel (%p148) target = $region16
        $region15: #{residual_block_nchw.5} parent=11 // pred_region
          _
        $region16: #{residual_block_nchw.5} parent=11 // pred_fallthru
          _
        // Predicated region
        $region17: #{residual_block_nchw.5} parent=11 // pred_check
          %p151 = pneg %p81
        $region18: #{residual_block_nchw.5} parent=11 // pred_check_branch
          %153 = sbr.rel (%p151) target = $region20
        $region19: #{residual_block_nchw.5} parent=11 // pred_region
          _
        $region20: #{residual_block_nchw.5} parent=11 // pred_fallthru
          _
      $region12: #{residual_block_nchw.5} parent=5 // pred_fallthru
        _
      %p154 = scmp.lt.s32.totalorder %s13, 2
      // Predicated region
      $region21: #{residual_block_nchw.5} parent=5 // pred_check
        %p155 = pneg %p154
      $region22: #{residual_block_nchw.5} parent=5 // pred_check_branch
        %157 = sbr.rel (%p155) target = $region24
      $region23: #{residual_block_nchw.5} parent=5 // pred_region
        // Predicated region
        $region25: #{residual_block_nchw.5} parent=23 // pred_check
          %p158 = pneg %p33
        $region26: #{residual_block_nchw.5} parent=23 // pred_check_branch
          %160 = sbr.rel (%p158) target = $region28
        $region27: #{residual_block_nchw.5} parent=23 // pred_region
          %p161 = scmp.lt.s32.totalorder %s13, 1
          %s162 = scalar_select %p161, %s13, 1
          %s163 = smul.addr %s162, 20
          %s164 = smul.addr %s163, 4
          %s165 = scalar_lea.vmem %s0, %s164
        $region28: #{residual_block_nchw.5} parent=23 // pred_fallthru
          _
        // Predicated region
        $region29: #{residual_block_nchw.5} parent=23 // pred_check
          %p166 = pneg %p101
        $region30: #{residual_block_nchw.5} parent=23 // pred_check_branch
          %168 = sbr.rel (%p166) target = $region32
        $region31: #{residual_block_nchw.5} parent=23 // pred_region
          %p169 = scmp.lt.s32.totalorder %s13, 1
          %s170 = scalar_select %p169, %s13, 1
          %s171 = smul.addr %s170, 8
          %s172 = smul.addr %s171, 8
          %s173 = scalar_lea.vmem %s3, %s172
        $region32: #{residual_block_nchw.5} parent=23 // pred_fallthru
          _
      $region24: #{residual_block_nchw.5} parent=5 // pred_fallthru
        _
      %p174 = scmp.le.s32.totalorder 1, %s13
      %p175 = scmp.lt.s32.totalorder %s13, 3
      %p176 = pnand %p174, %p175
      %p177 = pneg %p176
      // Predicated region
      $region33: #{residual_block_nchw.5} parent=5 // pred_check
        _
      $region34: #{residual_block_nchw.5} parent=5 // pred_check_branch
        %179 = sbr.rel (%p176) target = $region36
      $region35: #{residual_block_nchw.5} parent=5 // pred_region
        %s180 = ssub.s32 %s13, 1
        %p181 = scmp.lt.s32.totalorder %s18, 1
        %s182 = scalar_select %p181, %s18, 1
        %s183 = smul.addr %s182, 20
        %s184 = smul.addr %s183, 4
        %s185 = scalar_lea.vmem %s0, %s184
        %p186 = pneg %p39
        %p187 = pneg %p36
        %p188 = pneg %p60
        %p189 = pneg %p57
        %p190 = pneg %p81
        %p191 = pneg %p78
        %p192 = scmp.lt.s32.totalorder %s18, 1
        %s193 = scalar_select %p192, %s18, 1
        %s194 = smul.addr %s193, 8
        %s195 = smul.addr %s194, 8
        %s196 = scalar_lea.vmem %s3, %s195
        %p197 = pneg %p107
        %p198 = pneg %p104
        %p199 = pneg %p133
        %p200 = pneg %p130
        %s201 = sand.u32 %s120, 1
        %s202 = scalar_lea.sflag [#allocation3], %s201
        %s203 = sand.u32 %s120, 1
        %s204 = smul.addr %s203, 64
        %s205 = scalar_lea.vmem [#allocation2], %s204
        %p206 = scmp.lt.s32.totalorder %s18, 1
        %s207 = scalar_select %p206, %s18, 1
        %s208 = smul.addr %s207, 20
        %s209 = smul.addr %s208, 4
        %s210 = scalar_lea.vmem %s0, %s209
        %p211 = scmp.lt.s32.totalorder %s18, 1
        %s212 = scalar_select %p211, %s18, 1
        %s213 = smul.addr %s212, 8
        %s214 = smul.addr %s213, 8
        %s215 = scalar_lea.vmem %s3, %s214
        %v217 = vld [vmem:[%s210] sm:$0xf]
        %v218 = vld [vmem:[%s210 + $0x4] sm:$0x1]
        %v219 = vld [vmem:[%s210 + $0x8] sm:$0xf]
        %v220 = vld [vmem:[%s210 + $0xc] sm:$0x1]
        %v221 = vld [vmem:[%s210 + $0x10] sm:$0xf]
        %v222 = vld [vmem:[%s210 + $0x14] sm:$0x1]
        %v223 = vld [vmem:[%s210 + $0x18] sm:$0xf]
        %v224 = vld [vmem:[%s210 + $0x1c] sm:$0x1]
        %v225 = vld [vmem:[%s210 + $0x20] sm:$0xf]
        %v226 = vld [vmem:[%s210 + $0x24] sm:$0x1]
        %v227 = vld [vmem:[%s210 + $0x28] sm:$0xf]
        %v228 = vld [vmem:[%s210 + $0x2c] sm:$0x1]
        %v229 = vld [vmem:[%s210 + $0x30] sm:$0xf]
        %v230 = vld [vmem:[%s210 + $0x34] sm:$0x1]
        %v231 = vld [vmem:[%s210 + $0x38] sm:$0xf]
        %v232 = vld [vmem:[%s210 + $0x3c] sm:$0x1]
        %v233 = vld [vmem:[%s210 + $0x40] sm:$0xf]
        %v234 = vld [vmem:[%s210 + $0x44] sm:$0x1]
        %v235 = vld [vmem:[%s210 + $0x48] sm:$0xf]
        %v236 = vld [vmem:[%s210 + $0x4c] sm:$0x1]
        %v237 = vld [vmem:[%s1] sm:$0xf]
        %v238 = vld [vmem:[%s1 + $0x4] sm:$0xf]
        %vm239 = vsmask.f32 3328
        %vm240 = vsmask.f32 7440
        %vm241 = vmor %vm239, %vm240
        %v243 = vshrl.u32 %v217, 16
        %v245 = vrot.slane %v243, 4
        %v246 = vshll.u32 %v217, 16
        %v248 = vrot.slane %v246, 5
        %v249 = vor.u32 %v245, %v248
        %v250 = vrot.slane %v249, 4
        %v252 = vshll.u32 %v218, 16
        %v254 = vrot.slane %v252, 5
        %v255 = vsel %vm241, %v250, %v254
        %v257 = vshrl.u32 %v219, 16
        %v259 = vrot.slane %v257, 4
        %v260 = vshll.u32 %v219, 16
        %v262 = vrot.slane %v260, 5
        %v263 = vor.u32 %v259, %v262
        %v264 = vrot.slane %v263, 4
        %v266 = vshll.u32 %v220, 16
        %v268 = vrot.slane %v266, 5
        %v269 = vsel %vm241, %v264, %v268
        %v271 = vshrl.u32 %v221, 16
        %v273 = vrot.slane %v271, 4
        %v274 = vshll.u32 %v221, 16
        %v276 = vrot.slane %v274, 5
        %v277 = vor.u32 %v273, %v276
        %v278 = vrot.slane %v277, 4
        %v280 = vshll.u32 %v222, 16
        %v282 = vrot.slane %v280, 5
        %v283 = vsel %vm241, %v278, %v282
        %v285 = vshrl.u32 %v223, 16
        %v287 = vrot.slane %v285, 4
        %v288 = vshll.u32 %v223, 16
        %v290 = vrot.slane %v288, 5
        %v291 = vor.u32 %v287, %v290
        %v292 = vrot.slane %v291, 4
        %v294 = vshll.u32 %v224, 16
        %v296 = vrot.slane %v294, 5
        %v297 = vsel %vm241, %v292, %v296
        %v299 = vshrl.u32 %v225, 16
        %v301 = vrot.slane %v299, 4
        %v302 = vshll.u32 %v225, 16
        %v304 = vrot.slane %v302, 5
        %v305 = vor.u32 %v301, %v304
        %v306 = vrot.slane %v305, 4
        %v308 = vshll.u32 %v226, 16
        %v310 = vrot.slane %v308, 5
        %v311 = vsel %vm241, %v306, %v310
        %v313 = vshrl.u32 %v227, 16
        %v315 = vrot.slane %v313, 4
        %v316 = vshll.u32 %v227, 16
        %v318 = vrot.slane %v316, 5
        %v319 = vor.u32 %v315, %v318
        %v320 = vrot.slane %v319, 4
        %v322 = vshll.u32 %v228, 16
        %v324 = vrot.slane %v322, 5
        %v325 = vsel %vm241, %v320, %v324
        %v327 = vshrl.u32 %v229, 16
        %v329 = vrot.slane %v327, 4
        %v330 = vshll.u32 %v229, 16
        %v332 = vrot.slane %v330, 5
        %v333 = vor.u32 %v329, %v332
        %v334 = vrot.slane %v333, 4
        %v336 = vshll.u32 %v230, 16
        %v338 = vrot.slane %v336, 5
        %v339 = vsel %vm241, %v334, %v338
        %v341 = vshrl.u32 %v231, 16
        %v343 = vrot.slane %v341, 4
        %v344 = vshll.u32 %v231, 16
        %v346 = vrot.slane %v344, 5
        %v347 = vor.u32 %v343, %v346
        %v348 = vrot.slane %v347, 4
        %v350 = vshll.u32 %v232, 16
        %v352 = vrot.slane %v350, 5
        %v353 = vsel %vm241, %v348, %v352
        %s354 = scalar_lea.vmem %s1, 8
        %v355 = vld [vmem:[%s354] sm:$0xf]
        %v356 = vld [vmem:[%s354 + $0x4] sm:$0xf]
        %v357 = vunpack.c.l.b16 %v255
        %v358 = vunpack.c.l.b16 %v269
        %v359 = vunpack.c.l.b16 %v283
        %v360 = vunpack.c.l.b16 %v297
        %v361 = vunpack.c.l.b16 %v311
        %v362 = vunpack.c.l.b16 %v325
        %v363 = vunpack.c.l.b16 %v339
        %v364 = vunpack.c.l.b16 %v353
        %v365 = vpack.c.b16 %v358, %v357
        %v366 = vpack.c.b16 %v360, %v359
        %v367 = vpack.c.b16 %v362, %v361
        %v368 = vpack.c.b16 %v364, %v363
        %v371 = vunpack.c.l.b16 %v355
        %v372 = vunpack.c.l.b16 %v356
        %v373 = vpack.c.b16 %v372, %v371
        %vm375 = vcmask 130048
        %v377 = vsel %vm375, %v365, 0
        %v380 = vsel %vm375, %v366, 0
        %v383 = vsel %vm375, %v367, 0
        %v386 = vsel %vm375, %v368, 0
        %388 = vmatprep.subr.bf16.mxu0 0
        %389 = vmatpush1.bf16.msra.mxu0 0
        %390 = vmatprep.subr.bf16.mxu0 0
        %391 = vmatpush1.bf16.msra.mxu0 0
        %392 = vmatprep.subr.bf16.mxu0 0
        %393 = vmatpush1.bf16.msra.mxu0 0
        %394 = vmatprep.subr.bf16.mxu0 0
        %395 = vmatpush1.bf16.msra.mxu0 0
        %396 = vmatprep.subr.bf16.mxu0 0
        %397 = vmatpush1.bf16.msra.mxu0 0
        %398 = vmatprep.subr.bf16.mxu0 0
        %399 = vmatpush1.bf16.msra.mxu0 0
        %400 = vmatprep.subr.bf16.mxu0 0
        %401 = vmatpush1.bf16.msra.mxu0 0
        %402 = vmatprep.subr.bf16.mxu0 0
        %403 = vmatpush1.bf16.msra.mxu0 %v373
        %404 = vmatprep.subr.bf16.mxu0 0
        %405 = vmatpush2.bf16.msra.mxu0 0
        %406 = vmatprep.subr.bf16.mxu0 0
        %407 = vmatpush2.bf16.msra.mxu0 0
        %408 = vmatprep.subr.bf16.mxu0 0
        %409 = vmatpush2.bf16.msra.mxu0 0
        %410 = vmatprep.subr.bf16.mxu0 0
        %411 = vmatpush2.bf16.msra.mxu0 0
        %412 = vmatprep.subr.bf16.mxu0 0
        %413 = vmatpush2.bf16.msra.mxu0 0
        %414 = vmatprep.subr.bf16.mxu0 0
        %415 = vmatpush2.bf16.msra.mxu0 0
        %416 = vmatprep.subr.bf16.mxu0 0
        %417 = vmatpush2.bf16.msra.mxu0 0
        %418 = vmatprep.subr.bf16.mxu0 0
        %419 = vmatpush2.bf16.msra.mxu0 0
        %420 = vmatprep.mubr.bf16.mxu0 0
        %421 = vmatmul.mubr.bf16.gmra.mxu0 %v377
        %v422 = vpop.f32.mrf.mxu0
        %v423 = vadd.f32 0.0, %v422
        %v424 = vpop.f32.mrf.mxu0
        %v425 = vpop.f32.mrf.mxu0
        %v426 = vadd.f32 0.0, %v425
        %v427 = vpop.f32.mrf.mxu0
        %428 = vmatprep.mubr.bf16.mxu0 0
        %429 = vmatmul.mubr.bf16.gmra.mxu0 %v380
        %v430 = vpop.f32.mrf.mxu0
        %v431 = vadd.f32 0.0, %v430
        %v432 = vpop.f32.mrf.mxu0
        %v433 = vpop.f32.mrf.mxu0
        %v434 = vadd.f32 0.0, %v433
        %v435 = vpop.f32.mrf.mxu0
        %436 = vmatprep.mubr.bf16.mxu0 0
        %437 = vmatmul.mubr.bf16.gmra.mxu0 %v383
        %v438 = vpop.f32.mrf.mxu0
        %v439 = vadd.f32 0.0, %v438
        %v440 = vpop.f32.mrf.mxu0
        %v441 = vpop.f32.mrf.mxu0
        %v442 = vadd.f32 0.0, %v441
        %v443 = vpop.f32.mrf.mxu0
        %444 = vmatprep.mubr.bf16.mxu0 0
        %445 = vmatmul.mubr.bf16.gmra.mxu0 %v386
        %v446 = vpop.f32.mrf.mxu0
        %v447 = vadd.f32 0.0, %v446
        %v448 = vpop.f32.mrf.mxu0
        %v449 = vpop.f32.mrf.mxu0
        %v450 = vadd.f32 0.0, %v449
        %v451 = vpop.f32.mrf.mxu0
        %452 = vdwg.mxu0
        %v461 = vunpack.c.l.b16 %v217
        %v462 = vunpack.c.l.b16 %v219
        %v463 = vunpack.c.l.b16 %v221
        %v464 = vunpack.c.l.b16 %v223
        %v465 = vunpack.c.l.b16 %v225
        %v466 = vunpack.c.l.b16 %v227
        %v467 = vunpack.c.l.b16 %v229
        %v468 = vunpack.c.l.b16 %v231
        %v469 = vpack.c.b16 %v462, %v461
        %v470 = vpack.c.b16 %v464, %v463
        %v471 = vpack.c.b16 %v466, %v465
        %v472 = vpack.c.b16 %v468, %v467
        %v475 = vunpack.c.l.b16 %v237
        %v476 = vunpack.c.l.b16 %v238
        %v477 = vpack.c.b16 %v476, %v475
        %v480 = vsel %vm375, %v469, 0
        %v483 = vsel %vm375, %v470, 0
        %v486 = vsel %vm375, %v471, 0
        %v489 = vsel %vm375, %v472, 0
        %491 = vmatprep.subr.bf16.mxu0 0
        %492 = vmatpush1.bf16.msra.mxu0 0
        %493 = vmatprep.subr.bf16.mxu0 0
        %494 = vmatpush1.bf16.msra.mxu0 0
        %495 = vmatprep.subr.bf16.mxu0 0
        %496 = vmatpush1.bf16.msra.mxu0 0
        %497 = vmatprep.subr.bf16.mxu0 0
        %498 = vmatpush1.bf16.msra.mxu0 0
        %499 = vmatprep.subr.bf16.mxu0 0
        %500 = vmatpush1.bf16.msra.mxu0 0
        %501 = vmatprep.subr.bf16.mxu0 0
        %502 = vmatpush1.bf16.msra.mxu0 0
        %503 = vmatprep.subr.bf16.mxu0 0
        %504 = vmatpush1.bf16.msra.mxu0 0
        %505 = vmatprep.subr.bf16.mxu0 0
        %506 = vmatpush1.bf16.msra.mxu0 %v477
        %507 = vmatprep.subr.bf16.mxu0 0
        %508 = vmatpush2.bf16.msra.mxu0 0
        %509 = vmatprep.subr.bf16.mxu0 0
        %510 = vmatpush2.bf16.msra.mxu0 0
        %511 = vmatprep.subr.bf16.mxu0 0
        %512 = vmatpush2.bf16.msra.mxu0 0
        %513 = vmatprep.subr.bf16.mxu0 0
        %514 = vmatpush2.bf16.msra.mxu0 0
        %515 = vmatprep.subr.bf16.mxu0 0
        %516 = vmatpush2.bf16.msra.mxu0 0
        %517 = vmatprep.subr.bf16.mxu0 0
        %518 = vmatpush2.bf16.msra.mxu0 0
        %519 = vmatprep.subr.bf16.mxu0 0
        %520 = vmatpush2.bf16.msra.mxu0 0
        %521 = vmatprep.subr.bf16.mxu0 0
        %522 = vmatpush2.bf16.msra.mxu0 0
        %523 = vmatprep.mubr.bf16.mxu0 0
        %524 = vmatmul.mubr.bf16.gmra.mxu0 %v480
        %v525 = vpop.f32.mrf.mxu0
        %v526 = vadd.f32 %v423, %v525
        %v527 = vpop.f32.mrf.mxu0
        %v528 = vpop.f32.mrf.mxu0
        %v529 = vadd.f32 %v426, %v528
        %v530 = vpop.f32.mrf.mxu0
        %531 = vmatprep.mubr.bf16.mxu0 0
        %532 = vmatmul.mubr.bf16.gmra.mxu0 %v483
        %v533 = vpop.f32.mrf.mxu0
        %v534 = vadd.f32 %v431, %v533
        %v535 = vpop.f32.mrf.mxu0
        %v536 = vpop.f32.mrf.mxu0
        %v537 = vadd.f32 %v434, %v536
        %v538 = vpop.f32.mrf.mxu0
        %539 = vmatprep.mubr.bf16.mxu0 0
        %540 = vmatmul.mubr.bf16.gmra.mxu0 %v486
        %v541 = vpop.f32.mrf.mxu0
        %v542 = vadd.f32 %v439, %v541
        %v543 = vpop.f32.mrf.mxu0
        %v544 = vpop.f32.mrf.mxu0
        %v545 = vadd.f32 %v442, %v544
        %v546 = vpop.f32.mrf.mxu0
        %547 = vmatprep.mubr.bf16.mxu0 0
        %548 = vmatmul.mubr.bf16.gmra.mxu0 %v489
        %v549 = vpop.f32.mrf.mxu0
        %v550 = vadd.f32 %v447, %v549
        %v551 = vpop.f32.mrf.mxu0
        %v552 = vpop.f32.mrf.mxu0
        %v553 = vadd.f32 %v450, %v552
        %v554 = vpop.f32.mrf.mxu0
        %555 = vdwg.mxu0
        %vm564 = vcmask 1042432
        %vm565 = vcmask 1046532
        %vm566 = vmor %vm564, %vm565
        %v567 = vrot.slane %v217, 5
        %v568 = vrot.slane %v567, 4
        %v569 = vrot.slane %v218, 5
        %v570 = vsel %vm566, %v568, %v569
        %v571 = vrot.slane %v219, 5
        %v572 = vrot.slane %v571, 4
        %v573 = vrot.slane %v220, 5
        %v574 = vsel %vm566, %v572, %v573
        %v575 = vrot.slane %v221, 5
        %v576 = vrot.slane %v575, 4
        %v577 = vrot.slane %v222, 5
        %v578 = vsel %vm566, %v576, %v577
        %v579 = vrot.slane %v223, 5
        %v580 = vrot.slane %v579, 4
        %v581 = vrot.slane %v224, 5
        %v582 = vsel %vm566, %v580, %v581
        %v583 = vrot.slane %v225, 5
        %v584 = vrot.slane %v583, 4
        %v585 = vrot.slane %v226, 5
        %v586 = vsel %vm566, %v584, %v585
        %v587 = vrot.slane %v227, 5
        %v588 = vrot.slane %v587, 4
        %v589 = vrot.slane %v228, 5
        %v590 = vsel %vm566, %v588, %v589
        %v591 = vrot.slane %v229, 5
        %v592 = vrot.slane %v591, 4
        %v593 = vrot.slane %v230, 5
        %v594 = vsel %vm566, %v592, %v593
        %v595 = vrot.slane %v231, 5
        %v596 = vrot.slane %v595, 4
        %v597 = vrot.slane %v232, 5
        %v598 = vsel %vm566, %v596, %v597
        %s599 = scalar_lea.vmem %s1, 16
        %v600 = vld [vmem:[%s599] sm:$0xf]
        %v601 = vld [vmem:[%s599 + $0x4] sm:$0xf]
        %v602 = vunpack.c.l.b16 %v570
        %v603 = vunpack.c.l.b16 %v574
        %v604 = vunpack.c.l.b16 %v578
        %v605 = vunpack.c.l.b16 %v582
        %v606 = vunpack.c.l.b16 %v586
        %v607 = vunpack.c.l.b16 %v590
        %v608 = vunpack.c.l.b16 %v594
        %v609 = vunpack.c.l.b16 %v598
        %v610 = vpack.c.b16 %v603, %v602
        %v611 = vpack.c.b16 %v605, %v604
        %v612 = vpack.c.b16 %v607, %v606
        %v613 = vpack.c.b16 %v609, %v608
        %v616 = vunpack.c.l.b16 %v600
        %v617 = vunpack.c.l.b16 %v601
        %v618 = vpack.c.b16 %v617, %v616
        %v621 = vsel %vm375, %v610, 0
        %v624 = vsel %vm375, %v611, 0
        %v627 = vsel %vm375, %v612, 0
        %v630 = vsel %vm375, %v613, 0
        %632 = vmatprep.subr.bf16.mxu0 0
        %633 = vmatpush1.bf16.msra.mxu0 0
        %634 = vmatprep.subr.bf16.mxu0 0
        %635 = vmatpush1.bf16.msra.mxu0 0
        %636 = vmatprep.subr.bf16.mxu0 0
        %637 = vmatpush1.bf16.msra.mxu0 0
        %638 = vmatprep.subr.bf16.mxu0 0
        %639 = vmatpush1.bf16.msra.mxu0 0
        %640 = vmatprep.subr.bf16.mxu0 0
        %641 = vmatpush1.bf16.msra.mxu0 0
        %642 = vmatprep.subr.bf16.mxu0 0
        %643 = vmatpush1.bf16.msra.mxu0 0
        %644 = vmatprep.subr.bf16.mxu0 0
        %645 = vmatpush1.bf16.msra.mxu0 0
        %646 = vmatprep.subr.bf16.mxu0 0
        %647 = vmatpush1.bf16.msra.mxu0 %v618
        %648 = vmatprep.subr.bf16.mxu0 0
        %649 = vmatpush2.bf16.msra.mxu0 0
        %650 = vmatprep.subr.bf16.mxu0 0
        %651 = vmatpush2.bf16.msra.mxu0 0
        %652 = vmatprep.subr.bf16.mxu0 0
        %653 = vmatpush2.bf16.msra.mxu0 0
        %654 = vmatprep.subr.bf16.mxu0 0
        %655 = vmatpush2.bf16.msra.mxu0 0
        %656 = vmatprep.subr.bf16.mxu0 0
        %657 = vmatpush2.bf16.msra.mxu0 0
        %658 = vmatprep.subr.bf16.mxu0 0
        %659 = vmatpush2.bf16.msra.mxu0 0
        %660 = vmatprep.subr.bf16.mxu0 0
        %661 = vmatpush2.bf16.msra.mxu0 0
        %662 = vmatprep.subr.bf16.mxu0 0
        %663 = vmatpush2.bf16.msra.mxu0 0
        %664 = vmatprep.mubr.bf16.mxu0 0
        %665 = vmatmul.mubr.bf16.gmra.mxu0 %v621
        %v666 = vpop.f32.mrf.mxu0
        %v667 = vadd.f32 0.0, %v666
        %v668 = vpop.f32.mrf.mxu0
        %v669 = vpop.f32.mrf.mxu0
        %v670 = vadd.f32 0.0, %v669
        %v671 = vpop.f32.mrf.mxu0
        %672 = vmatprep.mubr.bf16.mxu0 0
        %673 = vmatmul.mubr.bf16.gmra.mxu0 %v624
        %v674 = vpop.f32.mrf.mxu0
        %v675 = vadd.f32 0.0, %v674
        %v676 = vpop.f32.mrf.mxu0
        %v677 = vpop.f32.mrf.mxu0
        %v678 = vadd.f32 0.0, %v677
        %v679 = vpop.f32.mrf.mxu0
        %680 = vmatprep.mubr.bf16.mxu0 0
        %681 = vmatmul.mubr.bf16.gmra.mxu0 %v627
        %v682 = vpop.f32.mrf.mxu0
        %v683 = vadd.f32 0.0, %v682
        %v684 = vpop.f32.mrf.mxu0
        %v685 = vpop.f32.mrf.mxu0
        %v686 = vadd.f32 0.0, %v685
        %v687 = vpop.f32.mrf.mxu0
        %688 = vmatprep.mubr.bf16.mxu0 0
        %689 = vmatmul.mubr.bf16.gmra.mxu0 %v630
        %v690 = vpop.f32.mrf.mxu0
        %v691 = vadd.f32 0.0, %v690
        %v692 = vpop.f32.mrf.mxu0
        %v693 = vpop.f32.mrf.mxu0
        %v694 = vadd.f32 0.0, %v693
        %v695 = vpop.f32.mrf.mxu0
        %696 = vdwg.mxu0
        %v697 = vadd.f32 %v526, %v667
        %v698 = vadd.f32 %v529, %v670
        %v699 = vadd.f32 %v534, %v675
        %v700 = vadd.f32 %v537, %v678
        %v701 = vadd.f32 %v542, %v683
        %v702 = vadd.f32 %v545, %v686
        %v703 = vadd.f32 %v550, %v691
        %v704 = vadd.f32 %v553, %v694
        %s705 = scalar_lea.vmem %s1, 24
        %v706 = vld [vmem:[%s705] sm:$0xf]
        %v707 = vld [vmem:[%s705 + $0x4] sm:$0xf]
        %v709 = vunpack.c.l.b16 %v233
        %v710 = vpack.c.b16 %v463, %v462
        %v711 = vpack.c.b16 %v465, %v464
        %v712 = vpack.c.b16 %v467, %v466
        %v713 = vpack.c.b16 %v709, %v468
        %v716 = vunpack.c.l.b16 %v706
        %v717 = vunpack.c.l.b16 %v707
        %v718 = vpack.c.b16 %v717, %v716
        %v721 = vsel %vm375, %v710, 0
        %v724 = vsel %vm375, %v711, 0
        %v727 = vsel %vm375, %v712, 0
        %v730 = vsel %vm375, %v713, 0
        %732 = vmatprep.subr.bf16.mxu0 0
        %733 = vmatpush1.bf16.msra.mxu0 0
        %734 = vmatprep.subr.bf16.mxu0 0
        %735 = vmatpush1.bf16.msra.mxu0 0
        %736 = vmatprep.subr.bf16.mxu0 0
        %737 = vmatpush1.bf16.msra.mxu0 0
        %738 = vmatprep.subr.bf16.mxu0 0
        %739 = vmatpush1.bf16.msra.mxu0 0
        %740 = vmatprep.subr.bf16.mxu0 0
        %741 = vmatpush1.bf16.msra.mxu0 0
        %742 = vmatprep.subr.bf16.mxu0 0
        %743 = vmatpush1.bf16.msra.mxu0 0
        %744 = vmatprep.subr.bf16.mxu0 0
        %745 = vmatpush1.bf16.msra.mxu0 0
        %746 = vmatprep.subr.bf16.mxu0 0
        %747 = vmatpush1.bf16.msra.mxu0 %v718
        %748 = vmatprep.subr.bf16.mxu0 0
        %749 = vmatpush2.bf16.msra.mxu0 0
        %750 = vmatprep.subr.bf16.mxu0 0
        %751 = vmatpush2.bf16.msra.mxu0 0
        %752 = vmatprep.subr.bf16.mxu0 0
        %753 = vmatpush2.bf16.msra.mxu0 0
        %754 = vmatprep.subr.bf16.mxu0 0
        %755 = vmatpush2.bf16.msra.mxu0 0
        %756 = vmatprep.subr.bf16.mxu0 0
        %757 = vmatpush2.bf16.msra.mxu0 0
        %758 = vmatprep.subr.bf16.mxu0 0
        %759 = vmatpush2.bf16.msra.mxu0 0
        %760 = vmatprep.subr.bf16.mxu0 0
        %761 = vmatpush2.bf16.msra.mxu0 0
        %762 = vmatprep.subr.bf16.mxu0 0
        %763 = vmatpush2.bf16.msra.mxu0 0
        %764 = vmatprep.mubr.bf16.mxu0 0
        %765 = vmatmul.mubr.bf16.gmra.mxu0 %v721
        %v766 = vpop.f32.mrf.mxu0
        %v767 = vadd.f32 0.0, %v766
        %v768 = vpop.f32.mrf.mxu0
        %v769 = vpop.f32.mrf.mxu0
        %v770 = vadd.f32 0.0, %v769
        %v771 = vpop.f32.mrf.mxu0
        %772 = vmatprep.mubr.bf16.mxu0 0
        %773 = vmatmul.mubr.bf16.gmra.mxu0 %v724
        %v774 = vpop.f32.mrf.mxu0
        %v775 = vadd.f32 0.0, %v774
        %v776 = vpop.f32.mrf.mxu0
        %v777 = vpop.f32.mrf.mxu0
        %v778 = vadd.f32 0.0, %v777
        %v779 = vpop.f32.mrf.mxu0
        %780 = vmatprep.mubr.bf16.mxu0 0
        %781 = vmatmul.mubr.bf16.gmra.mxu0 %v727
        %v782 = vpop.f32.mrf.mxu0
        %v783 = vadd.f32 0.0, %v782
        %v784 = vpop.f32.mrf.mxu0
        %v785 = vpop.f32.mrf.mxu0
        %v786 = vadd.f32 0.0, %v785
        %v787 = vpop.f32.mrf.mxu0
        %788 = vmatprep.mubr.bf16.mxu0 0
        %789 = vmatmul.mubr.bf16.gmra.mxu0 %v730
        %v790 = vpop.f32.mrf.mxu0
        %v791 = vadd.f32 0.0, %v790
        %v792 = vpop.f32.mrf.mxu0
        %v793 = vpop.f32.mrf.mxu0
        %v794 = vadd.f32 0.0, %v793
        %v795 = vpop.f32.mrf.mxu0
        %796 = vdwg.mxu0
        %v797 = vadd.f32 %v697, %v767
        %v798 = vadd.f32 %v698, %v770
        %v799 = vadd.f32 %v699, %v775
        %v800 = vadd.f32 %v700, %v778
        %v801 = vadd.f32 %v701, %v783
        %v802 = vadd.f32 %v702, %v786
        %v803 = vadd.f32 %v703, %v791
        %v804 = vadd.f32 %v704, %v794
        %v806 = vshrl.u32 %v233, 16
        %v808 = vrot.slane %v806, 4
        %v809 = vshll.u32 %v233, 16
        %v811 = vrot.slane %v809, 5
        %v812 = vor.u32 %v808, %v811
        %v813 = vrot.slane %v812, 4
        %v815 = vshll.u32 %v234, 16
        %v817 = vrot.slane %v815, 5
        %v818 = vsel %vm241, %v813, %v817
        %s819 = scalar_lea.vmem %s1, 32
        %v820 = vld [vmem:[%s819] sm:$0xf]
        %v821 = vld [vmem:[%s819 + $0x4] sm:$0xf]
        %v822 = vunpack.c.l.b16 %v818
        %v823 = vpack.c.b16 %v359, %v358
        %v824 = vpack.c.b16 %v361, %v360
        %v825 = vpack.c.b16 %v363, %v362
        %v826 = vpack.c.b16 %v822, %v364
        %v829 = vunpack.c.l.b16 %v820
        %v830 = vunpack.c.l.b16 %v821
        %v831 = vpack.c.b16 %v830, %v829
        %v834 = vsel %vm375, %v823, 0
        %v837 = vsel %vm375, %v824, 0
        %v840 = vsel %vm375, %v825, 0
        %v843 = vsel %vm375, %v826, 0
        %845 = vmatprep.subr.bf16.mxu0 0
        %846 = vmatpush1.bf16.msra.mxu0 0
        %847 = vmatprep.subr.bf16.mxu0 0
        %848 = vmatpush1.bf16.msra.mxu0 0
        %849 = vmatprep.subr.bf16.mxu0 0
        %850 = vmatpush1.bf16.msra.mxu0 0
        %851 = vmatprep.subr.bf16.mxu0 0
        %852 = vmatpush1.bf16.msra.mxu0 0
        %853 = vmatprep.subr.bf16.mxu0 0
        %854 = vmatpush1.bf16.msra.mxu0 0
        %855 = vmatprep.subr.bf16.mxu0 0
        %856 = vmatpush1.bf16.msra.mxu0 0
        %857 = vmatprep.subr.bf16.mxu0 0
        %858 = vmatpush1.bf16.msra.mxu0 0
        %859 = vmatprep.subr.bf16.mxu0 0
        %860 = vmatpush1.bf16.msra.mxu0 %v831
        %861 = vmatprep.subr.bf16.mxu0 0
        %862 = vmatpush2.bf16.msra.mxu0 0
        %863 = vmatprep.subr.bf16.mxu0 0
        %864 = vmatpush2.bf16.msra.mxu0 0
        %865 = vmatprep.subr.bf16.mxu0 0
        %866 = vmatpush2.bf16.msra.mxu0 0
        %867 = vmatprep.subr.bf16.mxu0 0
        %868 = vmatpush2.bf16.msra.mxu0 0
        %869 = vmatprep.subr.bf16.mxu0 0
        %870 = vmatpush2.bf16.msra.mxu0 0
        %871 = vmatprep.subr.bf16.mxu0 0
        %872 = vmatpush2.bf16.msra.mxu0 0
        %873 = vmatprep.subr.bf16.mxu0 0
        %874 = vmatpush2.bf16.msra.mxu0 0
        %875 = vmatprep.subr.bf16.mxu0 0
        %876 = vmatpush2.bf16.msra.mxu0 0
        %877 = vmatprep.mubr.bf16.mxu0 0
        %878 = vmatmul.mubr.bf16.gmra.mxu0 %v834
        %v879 = vpop.f32.mrf.mxu0
        %v880 = vadd.f32 0.0, %v879
        %v881 = vpop.f32.mrf.mxu0
        %v882 = vpop.f32.mrf.mxu0
        %v883 = vadd.f32 0.0, %v882
        %v884 = vpop.f32.mrf.mxu0
        %885 = vmatprep.mubr.bf16.mxu0 0
        %886 = vmatmul.mubr.bf16.gmra.mxu0 %v837
        %v887 = vpop.f32.mrf.mxu0
        %v888 = vadd.f32 0.0, %v887
        %v889 = vpop.f32.mrf.mxu0
        %v890 = vpop.f32.mrf.mxu0
        %v891 = vadd.f32 0.0, %v890
        %v892 = vpop.f32.mrf.mxu0
        %893 = vmatprep.mubr.bf16.mxu0 0
        %894 = vmatmul.mubr.bf16.gmra.mxu0 %v840
        %v895 = vpop.f32.mrf.mxu0
        %v896 = vadd.f32 0.0, %v895
        %v897 = vpop.f32.mrf.mxu0
        %v898 = vpop.f32.mrf.mxu0
        %v899 = vadd.f32 0.0, %v898
        %v900 = vpop.f32.mrf.mxu0
        %901 = vmatprep.mubr.bf16.mxu0 0
        %902 = vmatmul.mubr.bf16.gmra.mxu0 %v843
        %v903 = vpop.f32.mrf.mxu0
        %v904 = vadd.f32 0.0, %v903
        %v905 = vpop.f32.mrf.mxu0
        %v906 = vpop.f32.mrf.mxu0
        %v907 = vadd.f32 0.0, %v906
        %v908 = vpop.f32.mrf.mxu0
        %909 = vdwg.mxu0
        %v910 = vadd.f32 %v797, %v880
        %v911 = vadd.f32 %v798, %v883
        %v912 = vadd.f32 %v799, %v888
        %v913 = vadd.f32 %v800, %v891
        %v914 = vadd.f32 %v801, %v896
        %v915 = vadd.f32 %v802, %v899
        %v916 = vadd.f32 %v803, %v904
        %v917 = vadd.f32 %v804, %v907
        %v919 = vrot.slane %v233, 5
        %v920 = vrot.slane %v919, 4
        %v921 = vrot.slane %v234, 5
        %v922 = vsel %vm566, %v920, %v921
        %s923 = scalar_lea.vmem %s1, 40
        %v924 = vld [vmem:[%s923] sm:$0xf]
        %v925 = vld [vmem:[%s923 + $0x4] sm:$0xf]
        %v926 = vunpack.c.l.b16 %v922
        %v927 = vpack.c.b16 %v604, %v603
        %v928 = vpack.c.b16 %v606, %v605
        %v929 = vpack.c.b16 %v608, %v607
        %v930 = vpack.c.b16 %v926, %v609
        %v933 = vunpack.c.l.b16 %v924
        %v934 = vunpack.c.l.b16 %v925
        %v935 = vpack.c.b16 %v934, %v933
        %v938 = vsel %vm375, %v927, 0
        %v941 = vsel %vm375, %v928, 0
        %v944 = vsel %vm375, %v929, 0
        %v947 = vsel %vm375, %v930, 0
        %949 = vmatprep.subr.bf16.mxu0 0
        %950 = vmatpush1.bf16.msra.mxu0 0
        %951 = vmatprep.subr.bf16.mxu0 0
        %952 = vmatpush1.bf16.msra.mxu0 0
        %953 = vmatprep.subr.bf16.mxu0 0
        %954 = vmatpush1.bf16.msra.mxu0 0
        %955 = vmatprep.subr.bf16.mxu0 0
        %956 = vmatpush1.bf16.msra.mxu0 0
        %957 = vmatprep.subr.bf16.mxu0 0
        %958 = vmatpush1.bf16.msra.mxu0 0
        %959 = vmatprep.subr.bf16.mxu0 0
        %960 = vmatpush1.bf16.msra.mxu0 0
        %961 = vmatprep.subr.bf16.mxu0 0
        %962 = vmatpush1.bf16.msra.mxu0 0
        %963 = vmatprep.subr.bf16.mxu0 0
        %964 = vmatpush1.bf16.msra.mxu0 %v935
        %965 = vmatprep.subr.bf16.mxu0 0
        %966 = vmatpush2.bf16.msra.mxu0 0
        %967 = vmatprep.subr.bf16.mxu0 0
        %968 = vmatpush2.bf16.msra.mxu0 0
        %969 = vmatprep.subr.bf16.mxu0 0
        %970 = vmatpush2.bf16.msra.mxu0 0
        %971 = vmatprep.subr.bf16.mxu0 0
        %972 = vmatpush2.bf16.msra.mxu0 0
        %973 = vmatprep.subr.bf16.mxu0 0
        %974 = vmatpush2.bf16.msra.mxu0 0
        %975 = vmatprep.subr.bf16.mxu0 0
        %976 = vmatpush2.bf16.msra.mxu0 0
        %977 = vmatprep.subr.bf16.mxu0 0
        %978 = vmatpush2.bf16.msra.mxu0 0
        %979 = vmatprep.subr.bf16.mxu0 0
        %980 = vmatpush2.bf16.msra.mxu0 0
        %981 = vmatprep.mubr.bf16.mxu0 0
        %982 = vmatmul.mubr.bf16.gmra.mxu0 %v938
        %v983 = vpop.f32.mrf.mxu0
        %v984 = vadd.f32 0.0, %v983
        %v985 = vpop.f32.mrf.mxu0
        %v986 = vpop.f32.mrf.mxu0
        %v987 = vadd.f32 0.0, %v986
        %v988 = vpop.f32.mrf.mxu0
        %989 = vmatprep.mubr.bf16.mxu0 0
        %990 = vmatmul.mubr.bf16.gmra.mxu0 %v941
        %v991 = vpop.f32.mrf.mxu0
        %v992 = vadd.f32 0.0, %v991
        %v993 = vpop.f32.mrf.mxu0
        %v994 = vpop.f32.mrf.mxu0
        %v995 = vadd.f32 0.0, %v994
        %v996 = vpop.f32.mrf.mxu0
        %997 = vmatprep.mubr.bf16.mxu0 0
        %998 = vmatmul.mubr.bf16.gmra.mxu0 %v944
        %v999 = vpop.f32.mrf.mxu0
        %v1000 = vadd.f32 0.0, %v999
        %v1001 = vpop.f32.mrf.mxu0
        %v1002 = vpop.f32.mrf.mxu0
        %v1003 = vadd.f32 0.0, %v1002
        %v1004 = vpop.f32.mrf.mxu0
        %1005 = vmatprep.mubr.bf16.mxu0 0
        %1006 = vmatmul.mubr.bf16.gmra.mxu0 %v947
        %v1007 = vpop.f32.mrf.mxu0
        %v1008 = vadd.f32 0.0, %v1007
        %v1009 = vpop.f32.mrf.mxu0
        %v1010 = vpop.f32.mrf.mxu0
        %v1011 = vadd.f32 0.0, %v1010
        %v1012 = vpop.f32.mrf.mxu0
        %1013 = vdwg.mxu0
        %v1014 = vadd.f32 %v910, %v984
        %v1015 = vadd.f32 %v911, %v987
        %v1016 = vadd.f32 %v912, %v992
        %v1017 = vadd.f32 %v913, %v995
        %v1018 = vadd.f32 %v914, %v1000
        %v1019 = vadd.f32 %v915, %v1003
        %v1020 = vadd.f32 %v916, %v1008
        %v1021 = vadd.f32 %v917, %v1011
        %s1022 = scalar_lea.vmem %s1, 48
        %v1023 = vld [vmem:[%s1022] sm:$0xf]
        %v1024 = vld [vmem:[%s1022 + $0x4] sm:$0xf]
        %v1026 = vunpack.c.l.b16 %v235
        %v1027 = vpack.c.b16 %v1026, %v709
        %v1030 = vunpack.c.l.b16 %v1023
        %v1031 = vunpack.c.l.b16 %v1024
        %v1032 = vpack.c.b16 %v1031, %v1030
        %v1035 = vsel %vm375, %v1027, 0
        %1037 = vmatprep.subr.bf16.mxu0 0
        %1038 = vmatpush1.bf16.msra.mxu0 0
        %1039 = vmatprep.subr.bf16.mxu0 0
        %1040 = vmatpush1.bf16.msra.mxu0 0
        %1041 = vmatprep.subr.bf16.mxu0 0
        %1042 = vmatpush1.bf16.msra.mxu0 0
        %1043 = vmatprep.subr.bf16.mxu0 0
        %1044 = vmatpush1.bf16.msra.mxu0 0
        %1045 = vmatprep.subr.bf16.mxu0 0
        %1046 = vmatpush1.bf16.msra.mxu0 0
        %1047 = vmatprep.subr.bf16.mxu0 0
        %1048 = vmatpush1.bf16.msra.mxu0 0
        %1049 = vmatprep.subr.bf16.mxu0 0
        %1050 = vmatpush1.bf16.msra.mxu0 0
        %1051 = vmatprep.subr.bf16.mxu0 0
        %1052 = vmatpush1.bf16.msra.mxu0 %v1032
        %1053 = vmatprep.subr.bf16.mxu0 0
        %1054 = vmatpush2.bf16.msra.mxu0 0
        %1055 = vmatprep.subr.bf16.mxu0 0
        %1056 = vmatpush2.bf16.msra.mxu0 0
        %1057 = vmatprep.subr.bf16.mxu0 0
        %1058 = vmatpush2.bf16.msra.mxu0 0
        %1059 = vmatprep.subr.bf16.mxu0 0
        %1060 = vmatpush2.bf16.msra.mxu0 0
        %1061 = vmatprep.subr.bf16.mxu0 0
        %1062 = vmatpush2.bf16.msra.mxu0 0
        %1063 = vmatprep.subr.bf16.mxu0 0
        %1064 = vmatpush2.bf16.msra.mxu0 0
        %1065 = vmatprep.subr.bf16.mxu0 0
        %1066 = vmatpush2.bf16.msra.mxu0 0
        %1067 = vmatprep.subr.bf16.mxu0 0
        %1068 = vmatpush2.bf16.msra.mxu0 0
        %1069 = vmatprep.mubr.bf16.mxu0 0
        %1070 = vmatmul.mubr.bf16.gmra.mxu0 %v483
        %v1071 = vpop.f32.mrf.mxu0
        %v1072 = vadd.f32 0.0, %v1071
        %v1073 = vpop.f32.mrf.mxu0
        %v1074 = vpop.f32.mrf.mxu0
        %v1075 = vadd.f32 0.0, %v1074
        %v1076 = vpop.f32.mrf.mxu0
        %1077 = vmatprep.mubr.bf16.mxu0 0
        %1078 = vmatmul.mubr.bf16.gmra.mxu0 %v486
        %v1079 = vpop.f32.mrf.mxu0
        %v1080 = vadd.f32 0.0, %v1079
        %v1081 = vpop.f32.mrf.mxu0
        %v1082 = vpop.f32.mrf.mxu0
        %v1083 = vadd.f32 0.0, %v1082
        %v1084 = vpop.f32.mrf.mxu0
        %1085 = vmatprep.mubr.bf16.mxu0 0
        %1086 = vmatmul.mubr.bf16.gmra.mxu0 %v489
        %v1087 = vpop.f32.mrf.mxu0
        %v1088 = vadd.f32 0.0, %v1087
        %v1089 = vpop.f32.mrf.mxu0
        %v1090 = vpop.f32.mrf.mxu0
        %v1091 = vadd.f32 0.0, %v1090
        %v1092 = vpop.f32.mrf.mxu0
        %1093 = vmatprep.mubr.bf16.mxu0 0
        %1094 = vmatmul.mubr.bf16.gmra.mxu0 %v1035
        %v1095 = vpop.f32.mrf.mxu0
        %v1096 = vadd.f32 0.0, %v1095
        %v1097 = vpop.f32.mrf.mxu0
        %v1098 = vpop.f32.mrf.mxu0
        %v1099 = vadd.f32 0.0, %v1098
        %v1100 = vpop.f32.mrf.mxu0
        %1101 = vdwg.mxu0
        %v1102 = vadd.f32 %v1014, %v1072
        %v1103 = vadd.f32 %v1015, %v1075
        %v1104 = vadd.f32 %v1016, %v1080
        %v1105 = vadd.f32 %v1017, %v1083
        %v1106 = vadd.f32 %v1018, %v1088
        %v1107 = vadd.f32 %v1019, %v1091
        %v1108 = vadd.f32 %v1020, %v1096
        %v1109 = vadd.f32 %v1021, %v1099
        %v1111 = vshrl.u32 %v235, 16
        %v1113 = vrot.slane %v1111, 4
        %v1114 = vshll.u32 %v235, 16
        %v1116 = vrot.slane %v1114, 5
        %v1117 = vor.u32 %v1113, %v1116
        %v1118 = vrot.slane %v1117, 4
        %v1120 = vshll.u32 %v236, 16
        %v1122 = vrot.slane %v1120, 5
        %v1123 = vsel %vm241, %v1118, %v1122
        %s1124 = scalar_lea.vmem %s1, 56
        %v1125 = vld [vmem:[%s1124] sm:$0xf]
        %v1126 = vld [vmem:[%s1124 + $0x4] sm:$0xf]
        %v1127 = vunpack.c.l.b16 %v1123
        %v1128 = vpack.c.b16 %v1127, %v822
        %v1131 = vunpack.c.l.b16 %v1125
        %v1132 = vunpack.c.l.b16 %v1126
        %v1133 = vpack.c.b16 %v1132, %v1131
        %v1136 = vsel %vm375, %v1128, 0
        %1138 = vmatprep.subr.bf16.mxu0 0
        %1139 = vmatpush1.bf16.msra.mxu0 0
        %1140 = vmatprep.subr.bf16.mxu0 0
        %1141 = vmatpush1.bf16.msra.mxu0 0
        %1142 = vmatprep.subr.bf16.mxu0 0
        %1143 = vmatpush1.bf16.msra.mxu0 0
        %1144 = vmatprep.subr.bf16.mxu0 0
        %1145 = vmatpush1.bf16.msra.mxu0 0
        %1146 = vmatprep.subr.bf16.mxu0 0
        %1147 = vmatpush1.bf16.msra.mxu0 0
        %1148 = vmatprep.subr.bf16.mxu0 0
        %1149 = vmatpush1.bf16.msra.mxu0 0
        %1150 = vmatprep.subr.bf16.mxu0 0
        %1151 = vmatpush1.bf16.msra.mxu0 0
        %1152 = vmatprep.subr.bf16.mxu0 0
        %1153 = vmatpush1.bf16.msra.mxu0 %v1133
        %1154 = vmatprep.subr.bf16.mxu0 0
        %1155 = vmatpush2.bf16.msra.mxu0 0
        %1156 = vmatprep.subr.bf16.mxu0 0
        %1157 = vmatpush2.bf16.msra.mxu0 0
        %1158 = vmatprep.subr.bf16.mxu0 0
        %1159 = vmatpush2.bf16.msra.mxu0 0
        %1160 = vmatprep.subr.bf16.mxu0 0
        %1161 = vmatpush2.bf16.msra.mxu0 0
        %1162 = vmatprep.subr.bf16.mxu0 0
        %1163 = vmatpush2.bf16.msra.mxu0 0
        %1164 = vmatprep.subr.bf16.mxu0 0
        %1165 = vmatpush2.bf16.msra.mxu0 0
        %1166 = vmatprep.subr.bf16.mxu0 0
        %1167 = vmatpush2.bf16.msra.mxu0 0
        %1168 = vmatprep.subr.bf16.mxu0 0
        %1169 = vmatpush2.bf16.msra.mxu0 0
        %1170 = vmatprep.mubr.bf16.mxu0 0
        %1171 = vmatmul.mubr.bf16.gmra.mxu0 %v380
        %v1172 = vpop.f32.mrf.mxu0
        %v1173 = vadd.f32 0.0, %v1172
        %v1174 = vpop.f32.mrf.mxu0
        %v1175 = vpop.f32.mrf.mxu0
        %v1176 = vadd.f32 0.0, %v1175
        %v1177 = vpop.f32.mrf.mxu0
        %1178 = vmatprep.mubr.bf16.mxu0 0
        %1179 = vmatmul.mubr.bf16.gmra.mxu0 %v383
        %v1180 = vpop.f32.mrf.mxu0
        %v1181 = vadd.f32 0.0, %v1180
        %v1182 = vpop.f32.mrf.mxu0
        %v1183 = vpop.f32.mrf.mxu0
        %v1184 = vadd.f32 0.0, %v1183
        %v1185 = vpop.f32.mrf.mxu0
        %1186 = vmatprep.mubr.bf16.mxu0 0
        %1187 = vmatmul.mubr.bf16.gmra.mxu0 %v386
        %v1188 = vpop.f32.mrf.mxu0
        %v1189 = vadd.f32 0.0, %v1188
        %v1190 = vpop.f32.mrf.mxu0
        %v1191 = vpop.f32.mrf.mxu0
        %v1192 = vadd.f32 0.0, %v1191
        %v1193 = vpop.f32.mrf.mxu0
        %1194 = vmatprep.mubr.bf16.mxu0 0
        %1195 = vmatmul.mubr.bf16.gmra.mxu0 %v1136
        %v1196 = vpop.f32.mrf.mxu0
        %v1197 = vadd.f32 0.0, %v1196
        %v1198 = vpop.f32.mrf.mxu0
        %v1199 = vpop.f32.mrf.mxu0
        %v1200 = vadd.f32 0.0, %v1199
        %v1201 = vpop.f32.mrf.mxu0
        %1202 = vdwg.mxu0
        %v1203 = vadd.f32 %v1102, %v1173
        %v1204 = vadd.f32 %v1103, %v1176
        %v1205 = vadd.f32 %v1104, %v1181
        %v1206 = vadd.f32 %v1105, %v1184
        %v1207 = vadd.f32 %v1106, %v1189
        %v1208 = vadd.f32 %v1107, %v1192
        %v1209 = vadd.f32 %v1108, %v1197
        %v1210 = vadd.f32 %v1109, %v1200
        %v1212 = vrot.slane %v235, 5
        %v1213 = vrot.slane %v1212, 4
        %v1214 = vrot.slane %v236, 5
        %v1215 = vsel %vm566, %v1213, %v1214
        %s1216 = scalar_lea.vmem %s1, 64
        %v1217 = vld [vmem:[%s1216] sm:$0xf]
        %v1218 = vld [vmem:[%s1216 + $0x4] sm:$0xf]
        %v1219 = vunpack.c.l.b16 %v1215
        %v1220 = vpack.c.b16 %v1219, %v926
        %v1223 = vunpack.c.l.b16 %v1217
        %v1224 = vunpack.c.l.b16 %v1218
        %v1225 = vpack.c.b16 %v1224, %v1223
        %v1228 = vsel %vm375, %v1220, 0
        %1230 = vmatprep.subr.bf16.mxu0 0
        %1231 = vmatpush1.bf16.msra.mxu0 0
        %1232 = vmatprep.subr.bf16.mxu0 0
        %1233 = vmatpush1.bf16.msra.mxu0 0
        %1234 = vmatprep.subr.bf16.mxu0 0
        %1235 = vmatpush1.bf16.msra.mxu0 0
        %1236 = vmatprep.subr.bf16.mxu0 0
        %1237 = vmatpush1.bf16.msra.mxu0 0
        %1238 = vmatprep.subr.bf16.mxu0 0
        %1239 = vmatpush1.bf16.msra.mxu0 0
        %1240 = vmatprep.subr.bf16.mxu0 0
        %1241 = vmatpush1.bf16.msra.mxu0 0
        %1242 = vmatprep.subr.bf16.mxu0 0
        %1243 = vmatpush1.bf16.msra.mxu0 0
        %1244 = vmatprep.subr.bf16.mxu0 0
        %1245 = vmatpush1.bf16.msra.mxu0 %v1225
        %1246 = vmatprep.subr.bf16.mxu0 0
        %1247 = vmatpush2.bf16.msra.mxu0 0
        %1248 = vmatprep.subr.bf16.mxu0 0
        %1249 = vmatpush2.bf16.msra.mxu0 0
        %1250 = vmatprep.subr.bf16.mxu0 0
        %1251 = vmatpush2.bf16.msra.mxu0 0
        %1252 = vmatprep.subr.bf16.mxu0 0
        %1253 = vmatpush2.bf16.msra.mxu0 0
        %1254 = vmatprep.subr.bf16.mxu0 0
        %1255 = vmatpush2.bf16.msra.mxu0 0
        %1256 = vmatprep.subr.bf16.mxu0 0
        %1257 = vmatpush2.bf16.msra.mxu0 0
        %1258 = vmatprep.subr.bf16.mxu0 0
        %1259 = vmatpush2.bf16.msra.mxu0 0
        %1260 = vmatprep.subr.bf16.mxu0 0
        %1261 = vmatpush2.bf16.msra.mxu0 0
        %1262 = vmatprep.mubr.bf16.mxu0 0
        %1263 = vmatmul.mubr.bf16.gmra.mxu0 %v624
        %v1264 = vpop.f32.mrf.mxu0
        %v1265 = vadd.f32 0.0, %v1264
        %v1266 = vpop.f32.mrf.mxu0
        %v1267 = vpop.f32.mrf.mxu0
        %v1268 = vadd.f32 0.0, %v1267
        %v1269 = vpop.f32.mrf.mxu0
        %1270 = vmatprep.mubr.bf16.mxu0 0
        %1271 = vmatmul.mubr.bf16.gmra.mxu0 %v627
        %v1272 = vpop.f32.mrf.mxu0
        %v1273 = vadd.f32 0.0, %v1272
        %v1274 = vpop.f32.mrf.mxu0
        %v1275 = vpop.f32.mrf.mxu0
        %v1276 = vadd.f32 0.0, %v1275
        %v1277 = vpop.f32.mrf.mxu0
        %1278 = vmatprep.mubr.bf16.mxu0 0
        %1279 = vmatmul.mubr.bf16.gmra.mxu0 %v630
        %v1280 = vpop.f32.mrf.mxu0
        %v1281 = vadd.f32 0.0, %v1280
        %v1282 = vpop.f32.mrf.mxu0
        %v1283 = vpop.f32.mrf.mxu0
        %v1284 = vadd.f32 0.0, %v1283
        %v1285 = vpop.f32.mrf.mxu0
        %1286 = vmatprep.mubr.bf16.mxu0 0
        %1287 = vmatmul.mubr.bf16.gmra.mxu0 %v1228
        %v1288 = vpop.f32.mrf.mxu0
        %v1289 = vadd.f32 0.0, %v1288
        %v1290 = vpop.f32.mrf.mxu0
        %v1291 = vpop.f32.mrf.mxu0
        %v1292 = vadd.f32 0.0, %v1291
        %v1293 = vpop.f32.mrf.mxu0
        %1294 = vdwg.mxu0
        %v1295 = vadd.f32 %v1203, %v1265
        %v1296 = vadd.f32 %v1204, %v1268
        %v1297 = vadd.f32 %v1205, %v1273
        %v1298 = vadd.f32 %v1206, %v1276
        %v1299 = vadd.f32 %v1207, %v1281
        %v1300 = vadd.f32 %v1208, %v1284
        %v1301 = vadd.f32 %v1209, %v1289
        %v1302 = vadd.f32 %v1210, %v1292
        %v1303 = vld [vmem:[%s2] sm:$0x1]
        %v1305 = vlaneseq
        %v1306 = vshrl.u32 %v1305, 7
        %v1307 = vsub.s32 0, %v1306
        %v1308 = vrot.slane %v1303, %v1307
        %v1310 = vadd.f32 %v1295, %v1308
        %v1311 = vadd.f32 %v1296, %v1308
        %v1312 = vadd.f32 %v1297, %v1308
        %v1313 = vadd.f32 %v1298, %v1308
        %v1314 = vadd.f32 %v1299, %v1308
        %v1315 = vadd.f32 %v1300, %v1308
        %v1316 = vadd.f32 %v1301, %v1308
        %v1317 = vadd.f32 %v1302, %v1308
        %v1318 = vld [vmem:[%s215] sm:$0xff]
        %v1319 = vld [vmem:[%s215 + $0x8] sm:$0xff]
        %v1320 = vld [vmem:[%s215 + $0x10] sm:$0xff]
        %v1321 = vld [vmem:[%s215 + $0x18] sm:$0xff]
        %v1322 = vld [vmem:[%s215 + $0x20] sm:$0xff]
        %v1323 = vld [vmem:[%s215 + $0x28] sm:$0xff]
        %v1324 = vld [vmem:[%s215 + $0x30] sm:$0xff]
        %v1325 = vld [vmem:[%s215 + $0x38] sm:$0xff]
        %v1326 = vadd.f32 %v1310, %v1318
        %v1327 = vadd.f32 %v1311, %v1319
        %v1328 = vadd.f32 %v1312, %v1320
        %v1329 = vadd.f32 %v1313, %v1321
        %v1330 = vadd.f32 %v1314, %v1322
        %v1331 = vadd.f32 %v1315, %v1323
        %v1332 = vadd.f32 %v1316, %v1324
        %v1333 = vadd.f32 %v1317, %v1325
        %v1334 = vmax.f32 %v1326, 0.0
        %v1335 = vmax.f32 %v1327, 0.0
        %v1336 = vmax.f32 %v1328, 0.0
        %v1337 = vmax.f32 %v1329, 0.0
        %v1338 = vmax.f32 %v1330, 0.0
        %v1339 = vmax.f32 %v1331, 0.0
        %v1340 = vmax.f32 %v1332, 0.0
        %v1341 = vmax.f32 %v1333, 0.0
        %1342 = vst.msk [vmem:[%s205] sm:$0xff] %vm375, %v1334
        %1343 = vst.msk [vmem:[%s205 + $0x8] sm:$0xff] %vm375, %v1335
        %1344 = vst.msk [vmem:[%s205 + $0x10] sm:$0xff] %vm375, %v1336
        %1345 = vst.msk [vmem:[%s205 + $0x18] sm:$0xff] %vm375, %v1337
        %1346 = vst.msk [vmem:[%s205 + $0x20] sm:$0xff] %vm375, %v1338
        %1347 = vst.msk [vmem:[%s205 + $0x28] sm:$0xff] %vm375, %v1339
        %1348 = vst.msk [vmem:[%s205 + $0x30] sm:$0xff] %vm375, %v1340
        %1349 = vst.msk [vmem:[%s205 + $0x38] sm:$0xff] %vm375, %v1341
        %s1350 = sand.u32 %s120, 1
        %s1351 = scalar_lea.sflag [#allocation3], %s1350
        %s1352 = sand.u32 %s120, 1
        %s1353 = smul.addr %s1352, 64
        %s1354 = scalar_lea.vmem [#allocation2], %s1353
        // Predicated region
        $region37: #{residual_block_nchw.5} parent=35 // pred_check
          %p1355 = pneg %p130
        $region38: #{residual_block_nchw.5} parent=35 // pred_check_branch
          %1357 = sbr.rel (%p1355) target = $region40
        $region39: #{residual_block_nchw.5} parent=35 // pred_region
          %s1359 = ssub.s32 1024, 1024
          %1360 = vsyncadd %s1351, %s1359
          %s1361 = smul.addr %s18, 8
          %s1362 = smul.addr %s1361, 128
          %s1363 = scalar_lea.hbm %s4, %s1362
          %s1364 = sshll.u32 %s1354, 4
          %s1365 = int_to_ptr.vmem [resolvable:$true] %s1364
          %1370 = dma.vmem_to_hbm [thread:$0]  %s1365, 1024, %s1363, %s1351, 128, 128, 8
        $region40: #{residual_block_nchw.5} parent=35 // pred_fallthru
          _
      $region36: #{residual_block_nchw.5} parent=5 // pred_fallthru
        _
      %p1371 = scmp.le.s32.totalorder 2, %s13
      // Predicated region
      $region41: #{residual_block_nchw.5} parent=5 // pred_check
        %p1372 = pneg %p1371
      $region42: #{residual_block_nchw.5} parent=5 // pred_check_branch
        %1374 = sbr.rel (%p1372) target = $region44
      $region43: #{residual_block_nchw.5} parent=5 // pred_region
        %s1375 = ssub.s32 %s13, 2
        // Predicated region
        $region45: #{residual_block_nchw.5} parent=43 // pred_check
          %p1376 = pneg %p136
        $region46: #{residual_block_nchw.5} parent=43 // pred_check_branch
          %1378 = sbr.rel (%p1376) target = $region48
        $region47: #{residual_block_nchw.5} parent=43 // pred_region
          %s1379 = sand.u32 %s121, 1
          %s1380 = scalar_lea.sflag [#allocation3], %s1379
          %s1381 = sand.u32 %s121, 1
          %s1382 = smul.addr %s1381, 64
          %s1383 = scalar_lea.vmem [#allocation2], %s1382
          %1384 = dma.done %s1380, 1024
        $region48: #{residual_block_nchw.5} parent=43 // pred_fallthru
          _
      $region44: #{residual_block_nchw.5} parent=5 // pred_fallthru
        _
    $region6: #{residual_block_nchw.5} parent=1 // loop_footer
      %s17 = sadd.s32 1, %s13
    $region7: #{residual_block_nchw.5} parent=1 // loop_footer_branch
      %12 = sbr.rel target = $region3
    $region8: #{residual_block_nchw.5} parent=1 // loop_exit
      _
    %1385 = vsyncpa [#allocation3], 1
    %s1386 = scalar_lea.sflag [#allocation3], 1
    %1387 = vsyncpa %s1386, 1

</llo_original>
